<compile_context>
chip_gen: v6e
topology: v6e:2x2x1
jax: 0.10.0
libtpu: 0.0.40
codegen_flags: <defaults>
</compile_context>

<pallas_src>
import functools

import jax
import jax.numpy as jnp
import numpy as np
from jax.experimental import pallas as pl
from jax.experimental.pallas import tpu as pltpu


GATE_TILE = 128   # lane-tile-aligned width reserved per GRU timestep (needs 3*H <= 128)


# ----------------------------------------------------------------------------
# Fused kernel: GCN + fused spatial/temporal attention + GRU + projection.
# One grid program handles Bb folded batch elements (M = Bb*N rows).
# ----------------------------------------------------------------------------
def rex_kernel(x_ref, a_ref, wxk_ref, bgk_ref, wsc_ref, em_ref,
               wik_ref, whcat_ref, gbias_ref, wp_ref, bp_ref, o_ref,
               *, n_nodes, n_batch):
    f32 = jnp.float32
    T, TH = em_ref.shape            # TH == T * H
    H = whcat_ref.shape[0]
    GW = wik_ref.shape[1] // T      # padded gate-tile width (128)

    # --- GCNConv:  h0 = A_blk @ (x W) + b   (all timesteps in one dot pair) --
    xw = jnp.dot(x_ref[...], wxk_ref[...], preferred_element_type=f32)   # (M, T*H)
    h = jnp.dot(a_ref[...], xw, preferred_element_type=f32) + bgk_ref[...]

    # --- Fused spatial + temporal attention ----------------------------------
    # Both raw score matmuls from the PRE-attention h in one dot -> (M, 2T).
    sc = jnp.dot(h, wsc_ref[...], preferred_element_type=f32)
    s_sa = sc[:, :T]                 # spatial raw scores
    q_ta = sc[:, T:]                 # temporal raw scores of pre-attention h
    # spatial softmax over nodes, segmented per folded batch element
    parts = []
    for b in range(n_batch):
        sb = s_sa[b * n_nodes:(b + 1) * n_nodes, :]
        e = jnp.exp(sb - jnp.max(sb, axis=0, keepdims=True))
        parts.append(e / jnp.sum(e, axis=0, keepdims=True))
    w_sa = parts[0] if n_batch == 1 else jnp.concatenate(parts, axis=0)  # (M, T)
    # temporal score of the spatially-modulated h:  w_sa ⊙ q_ta
    s_ta = w_sa * q_ta
    e = jnp.exp(s_ta - jnp.max(s_ta, axis=1, keepdims=True))
    w_ta = e / jnp.sum(e, axis=1, keepdims=True)                          # (M, T)
    # one combined modulation, one expand dot
    h = h * jnp.dot(w_sa * w_ta, em_ref[...], preferred_element_type=f32)

    # --- GRU over T (all rows in parallel) ------------------------------------
    # Input-gate contributions for ALL timesteps hoisted off the recurrence:
    # gx[:, t*GW : t*GW+3H] = [h_t @ W_ir | h_t @ W_iz | h_t @ W_in], rest pad.
    gx = jnp.dot(h, wik_ref[...], preferred_element_type=f32)             # (M, T*GW)
    whcat = whcat_ref[...]                                                # (H, 3H)
    gb = gbias_ref[...]                                                   # (4, H)
    b_r, b_z, b_in, b_hn = gb[0:1, :], gb[1:2, :], gb[2:3, :], gb[3:4, :]

    # t = 0 peeled: hstate == 0, so the hidden-state matmul is dead.
    gxt = gx[:, 0:GW]
    r = jax.nn.sigmoid(gxt[:, 0:H] + b_r)
    z = jax.nn.sigmoid(gxt[:, H:2 * H] + b_z)
    n = jnp.tanh(gxt[:, 2 * H:3 * H] + b_in + r * b_hn)
    hstate = (1.0 - z) * n

    for t in range(1, T):                                                 # fully unrolled, T small
        gxt = gx[:, t * GW:(t + 1) * GW]                                  # lane-tile-aligned view
        gh = jnp.dot(hstate, whcat, preferred_element_type=f32)           # (M, 3H)
        r = jax.nn.sigmoid(gxt[:, 0:H] + gh[:, 0:H] + b_r)
        z = jax.nn.sigmoid(gxt[:, H:2 * H] + gh[:, H:2 * H] + b_z)
        n = jnp.tanh(gxt[:, 2 * H:3 * H] + b_in + r * (gh[:, 2 * H:3 * H] + b_hn))
        hstate = (1.0 - z) * n + z * hstate

    # --- Output projection -----------------------------------------------------
    out = jnp.dot(hstate, wp_ref[...], preferred_element_type=f32) + bp_ref[...]
    o_ref[...] = out.astype(o_ref.dtype)


# ----------------------------------------------------------------------------
# Wrapper
# ----------------------------------------------------------------------------
def _grid_programs(batch):
    """v7x has 2 TensorCores/chip -> keep 2 grid programs there; fold fully on 1-TC chips."""
    try:
        kind = jax.devices()[0].device_kind
    except Exception:
        kind = ""
    two_tc = "7" in kind           # "TPU7x" / "TPU v7x"; no other TPU name contains '7'
    if two_tc and batch >= 2 and batch % 2 == 0:
        return 2
    return 1


def rex_gnn_forward(x, a_hat, p, grid_programs=None):
    B, T, N, C = x.shape
    H = p["W_gcn"].shape[1]
    S = p["W_proj"].shape[1]
    TH = T * H
    f32 = jnp.float32
    assert 3 * H <= GATE_TILE

    G = grid_programs if grid_programs is not None else _grid_programs(B)
    if B % G != 0:
        G = 1
    Bb = B // G              # batch elements folded into rows per grid program
    M = Bb * N               # rows per program

    # ---- wrapper-side parameter packing (tiny, plain JAX) -------------------
    eyeT = jnp.eye(T, dtype=f32)
    wxk = jnp.kron(eyeT, p["W_gcn"])                            # (T*C, T*H)
    bgk = jnp.tile(p["b_gcn"], (1, T))                          # (1, T*H)
    wsak = jnp.kron(eyeT, p["w_sa"].T)                          # (T*H, T)
    wtak = jnp.kron(eyeT, p["w_ta"].T)                          # (T*H, T)
    wsc = jnp.concatenate([wsak, wtak], axis=1)                 # (T*H, 2T)  fused scores
    expm = jnp.kron(eyeT, jnp.ones((1, H), f32))                # (T, T*H)
    wi = jnp.concatenate([p["W_ir"], p["W_iz"], p["W_in"]], axis=1)   # (H, 3H)
    wi = jnp.pad(wi, ((0, 0), (0, GATE_TILE - 3 * H)))                # (H, 128) lane-tile pad
    wik = jnp.kron(eyeT, wi)                                          # (T*H, T*128)
    whcat = jnp.concatenate([p["W_hr"], p["W_hz"], p["W_hn"]], axis=1)        # (H, 3H)
    gbias = jnp.concatenate([p["b_r"], p["b_z"], p["b_in"], p["b_hn"]], axis=0)  # (4, H)

    # batch folded into rows: x2d[b*N + n, t*C + c] = x[b, t, n, c]
    x2d = jnp.transpose(x, (0, 2, 1, 3)).reshape(B * N, T * C)
    # block-diagonal adjacency so one dot applies A_hat within every batch segment
    a_blk = jnp.kron(jnp.eye(Bb, dtype=f32), a_hat)             # (M, M)

    full2 = lambda g: (0, 0)
    kernel = functools.partial(rex_kernel, n_nodes=N, n_batch=Bb)
    out = pl.pallas_call(
        kernel,
        out_shape=jax.ShapeDtypeStruct((B * N, S), f32),
        grid=(G,),
        in_specs=[
            pl.BlockSpec((M, T * C), lambda g: (g, 0)),
            pl.BlockSpec((M, M), full2),
            pl.BlockSpec((T * C, TH), full2),
            pl.BlockSpec((1, TH), full2),
            pl.BlockSpec((TH, 2 * T), full2),
            pl.BlockSpec((T, TH), full2),
            pl.BlockSpec((TH, T * GATE_TILE), full2),
            pl.BlockSpec((H, 3 * H), full2),
            pl.BlockSpec((4, H), full2),
            pl.BlockSpec((H, S), full2),
            pl.BlockSpec((1, S), full2),
        ],
        out_specs=pl.BlockSpec((M, S), lambda g: (g, 0)),
        compiler_params=pltpu.CompilerParams(dimension_semantics=("parallel",)),
    )(x2d, a_blk, wxk, bgk, wsc, expm, wik, whcat, gbias, p["W_proj"], p["b_proj"])

    # (B*N, S) -> (B, S, N, 1)   (matches PyTorch TemporalGRU output)
    return jnp.transpose(out.reshape(B, N, S), (0, 2, 1))[..., None]


def normalized_adj(edge_index, n):
    """Dense D^-1/2 (A + I) D^-1/2, matching PyG GCNConv default normalize."""
    # TODO(synk): PyG uses add_remaining_self_loops; this adds +I unconditionally.
    src, dst = edge_index[0], edge_index[1]
    a = jnp.zeros((n, n), jnp.float32).at[dst, src].add(1.0)
    a = a + jnp.eye(n, dtype=jnp.float32)
    deg = jnp.sum(a, axis=1)
    dinv = 1.0 / jnp.sqrt(deg)
    return a * dinv[:, None] * dinv[None, :]


def init_params(key, c, h, s):
    ks = jax.random.split(key, 12)
    w = lambda k, shape: (0.1 * jax.random.normal(k, shape)).astype(jnp.float32)
    p = {}
    # GCNConv
    p["W_gcn"] = w(ks[0], (c, h))
    p["b_gcn"] = w(ks[1], (1, h))
    # Spatial / temporal attention  (nn.Linear(h, 1): weight (1,h), bias (1,))
    p["w_sa"] = w(ks[2], (1, h)); p["b_sa"] = w(ks[3], (1, 1))
    p["w_ta"] = w(ks[4], (1, h)); p["b_ta"] = w(ks[5], (1, 1))
    # GRU (torch layout: weight_ih (3H,H) [r|z|n], weight_hh (3H,H), biases (3H,))
    wih = w(ks[6], (3 * h, h)); whh = w(ks[7], (3 * h, h))
    bih = w(ks[8], (3 * h,));   bhh = w(ks[9], (3 * h,))
    p["W_ir"] = wih[0:h].T;       p["W_iz"] = wih[h:2 * h].T; p["W_in"] = wih[2 * h:].T
    p["W_hr"] = whh[0:h].T;       p["W_hz"] = whh[h:2 * h].T; p["W_hn"] = whh[2 * h:].T
    p["b_r"] = (bih[0:h] + bhh[0:h]).reshape(1, h)
    p["b_z"] = (bih[h:2 * h] + bhh[h:2 * h]).reshape(1, h)
    p["b_in"] = bih[2 * h:].reshape(1, h)
    p["b_hn"] = bhh[2 * h:].reshape(1, h)
    # Output projection nn.Linear(h, out_steps)
    p["W_proj"] = w(ks[10], (s, h)).T     # stored transposed: (H, S)
    p["b_proj"] = w(ks[11], (1, s))
    return p


# ----------------------------------------------------------------------------
# Pure-JAX reference (mirrors the PyTorch semantics) for correctness check
# ----------------------------------------------------------------------------
def ref_forward(x, a_hat, p):
    B, T, N, C = x.shape
    H = p["W_gcn"].shape[1]
    # GCN
    xw = jnp.einsum("btnc,ch->btnh", x, p["W_gcn"])
    h = jnp.einsum("nm,btmh->btnh", a_hat, xw) + p["b_gcn"]
    # spatial attention (softmax over node axis=2)
    s = jnp.sum(h * p["w_sa"], axis=-1, keepdims=True) + p["b_sa"]
    h = h * jax.nn.softmax(s, axis=2)
    # temporal attention (softmax over time axis=1)
    s = jnp.sum(h * p["w_ta"], axis=-1, keepdims=True) + p["b_ta"]
    h = h * jax.nn.softmax(s, axis=1)
    # GRU over time, batch = B*N
    seq = jnp.transpose(h, (0, 2, 1, 3)).reshape(B * N, T, H)
    hst = jnp.zeros((B * N, H), jnp.float32)
    for t in range(T):
        xt = seq[:, t]
        r = jax.nn.sigmoid(xt @ p["W_ir"] + hst @ p["W_hr"] + p["b_r"])
        z = jax.nn.sigmoid(xt @ p["W_iz"] + hst @ p["W_hz"] + p["b_z"])
        n = jnp.tanh(xt @ p["W_in"] + p["b_in"] + r * (hst @ p["W_hn"] + p["b_hn"]))
        hst = (1.0 - z) * n + z * hst
    out = hst @ p["W_proj"] + p["b_proj"]                 # (B*N, S)
    return jnp.transpose(out.reshape(B, N, -1), (0, 2, 1))[..., None]


if __name__ == "__main__":
    B, T, N, C, H, S = 2, 8, 16, 1, 32, 4   # batch, time, nodes, in_ch, hidden, out_steps

    key = jax.random.PRNGKey(0)
    kx, kp = jax.random.split(key)
    # PyTorch input was (B, T, N, 1[, 1]); squeeze(-1).unsqueeze(-1) is identity here.
    x = jax.random.normal(kx, (B, T, N, C), jnp.float32)

    # deterministic bidirectional ring graph
    src = jnp.arange(N, dtype=jnp.int32)
    dst = (src + 1) % N
    edge_index = jnp.stack([jnp.concatenate([src, dst]),
                            jnp.concatenate([dst, src])])
    a_hat = normalized_adj(edge_index, N)

    params = init_params(kp, C, H, S)
    ref = ref_forward(x, a_hat, params)

    # auto-selected grid (1 program on 1-TC chips, 2 on v7x)
    out = jax.block_until_ready(rex_gnn_forward(x, a_hat, params))
    assert out.shape == (B, S, N, 1), out.shape
    np.testing.assert_allclose(np.asarray(out), np.asarray(ref), rtol=2e-4, atol=2e-4)

    # also exercise the other code path (fully-folded and per-batch-program)
    out1 = jax.block_until_ready(rex_gnn_forward(x, a_hat, params, grid_programs=1))
    np.testing.assert_allclose(np.asarray(out1), np.asarray(ref), rtol=2e-4, atol=2e-4)
    out2 = jax.block_until_ready(rex_gnn_forward(x, a_hat, params, grid_programs=2))
    np.testing.assert_allclose(np.asarray(out2), np.asarray(ref), rtol=2e-4, atol=2e-4)

    print("KERNEL_OK")
</pallas_src>

<mosaic_0001>
module attributes {stable_mosaic.version = 11 : i64} {
  func.func @rex_kernel(%arg0: i32, %arg1: memref<32x8xf32, #tpu.memory_space<vmem>>, %arg2: memref<32x32xf32, #tpu.memory_space<vmem>>, %arg3: memref<8x256xf32, #tpu.memory_space<vmem>>, %arg4: memref<1x256xf32, #tpu.memory_space<vmem>>, %arg5: memref<256x16xf32, #tpu.memory_space<vmem>>, %arg6: memref<8x256xf32, #tpu.memory_space<vmem>>, %arg7: memref<256x1024xf32, #tpu.memory_space<vmem>>, %arg8: memref<32x96xf32, #tpu.memory_space<vmem>>, %arg9: memref<4x32xf32, #tpu.memory_space<vmem>>, %arg10: memref<32x4xf32, #tpu.memory_space<vmem>>, %arg11: memref<1x4xf32, #tpu.memory_space<vmem>>, %arg12: memref<32x4xf32, #tpu.memory_space<vmem>>) attributes {dimension_semantics = [#tpu.dimension_semantics<parallel>], iteration_bounds = array<i64: 1>, scalar_prefetch = 0 : i64, scratch_operands = 0 : i64, tpu.core_type = #tpu.core_type<tc>, window_params = [{transform_indices = @transform_0, window_bounds = array<i64: 32, 8>}, {pipeline_mode = #tpu.pipeline_mode<synchronous>, transform_indices = @transform_1, window_bounds = array<i64: 32, 32>}, {pipeline_mode = #tpu.pipeline_mode<synchronous>, transform_indices = @transform_2, window_bounds = array<i64: 8, 256>}, {pipeline_mode = #tpu.pipeline_mode<synchronous>, transform_indices = @transform_3, window_bounds = array<i64: 1, 256>}, {pipeline_mode = #tpu.pipeline_mode<synchronous>, transform_indices = @transform_4, window_bounds = array<i64: 256, 16>}, {pipeline_mode = #tpu.pipeline_mode<synchronous>, transform_indices = @transform_5, window_bounds = array<i64: 8, 256>}, {pipeline_mode = #tpu.pipeline_mode<synchronous>, transform_indices = @transform_6, window_bounds = array<i64: 256, 1024>}, {pipeline_mode = #tpu.pipeline_mode<synchronous>, transform_indices = @transform_7, window_bounds = array<i64: 32, 96>}, {pipeline_mode = #tpu.pipeline_mode<synchronous>, transform_indices = @transform_8, window_bounds = array<i64: 4, 32>}, {pipeline_mode = #tpu.pipeline_mode<synchronous>, transform_indices = @transform_9, window_bounds = array<i64: 32, 4>}, {pipeline_mode = #tpu.pipeline_mode<synchronous>, transform_indices = @transform_10, window_bounds = array<i64: 1, 4>}, {transform_indices = @transform_11, window_bounds = array<i64: 32, 4>}]} {
    %c0 = arith.constant 0 : index
    %c0_0 = arith.constant 0 : index
    %0 = vector.load %arg1[%c0, %c0_0] : memref<32x8xf32, #tpu.memory_space<vmem>>, vector<32x8xf32>
    %c0_1 = arith.constant 0 : index
    %c0_2 = arith.constant 0 : index
    %1 = vector.load %arg3[%c0_1, %c0_2] : memref<8x256xf32, #tpu.memory_space<vmem>>, vector<8x256xf32>
    %cst = arith.constant dense<0.000000e+00> : vector<32x256xf32>
    %2 = tpu.matmul %0, %1, %cst {dimension_numbers = #tpu.dot_dimension_numbers<[1], [0], [0], [1], [0, 0, 1, 1], [], []>} : vector<32x8xf32>, vector<8x256xf32>, vector<32x256xf32> -> vector<32x256xf32>
    %c0_3 = arith.constant 0 : index
    %c0_4 = arith.constant 0 : index
    %3 = vector.load %arg2[%c0_3, %c0_4] : memref<32x32xf32, #tpu.memory_space<vmem>>, vector<32x32xf32>
    %cst_5 = arith.constant dense<0.000000e+00> : vector<32x256xf32>
    %4 = tpu.matmul %3, %2, %cst_5 {dimension_numbers = #tpu.dot_dimension_numbers<[1], [0], [0], [1], [0, 0, 1, 1], [], []>} : vector<32x32xf32>, vector<32x256xf32>, vector<32x256xf32> -> vector<32x256xf32>
    %c0_6 = arith.constant 0 : index
    %c0_7 = arith.constant 0 : index
    %5 = vector.load %arg4[%c0_6, %c0_7] : memref<1x256xf32, #tpu.memory_space<vmem>>, vector<1x256xf32>
    %6 = vector.broadcast %5 : vector<1x256xf32> to vector<32x256xf32>
    %7 = arith.addf %4, %6 : vector<32x256xf32>
    %c0_8 = arith.constant 0 : index
    %c0_9 = arith.constant 0 : index
    %8 = vector.load %arg5[%c0_8, %c0_9] : memref<256x16xf32, #tpu.memory_space<vmem>>, vector<256x16xf32>
    %cst_10 = arith.constant dense<0.000000e+00> : vector<32x16xf32>
    %9 = tpu.matmul %7, %8, %cst_10 {dimension_numbers = #tpu.dot_dimension_numbers<[1], [0], [0], [1], [0, 0, 1, 1], [], []>} : vector<32x256xf32>, vector<256x16xf32>, vector<32x16xf32> -> vector<32x16xf32>
    %10 = vector.extract_strided_slice %9 {offsets = [0, 0], sizes = [32, 8], strides = [1, 1]} : vector<32x16xf32> to vector<32x8xf32>
    %11 = vector.extract_strided_slice %9 {offsets = [0, 8], sizes = [32, 8], strides = [1, 1]} : vector<32x16xf32> to vector<32x8xf32>
    %12 = vector.extract_strided_slice %10 {offsets = [0, 0], sizes = [16, 8], strides = [1, 1]} : vector<32x8xf32> to vector<16x8xf32>
    %cst_11 = arith.constant dense<0xFF800000> : vector<8xf32>
    %13 = vector.multi_reduction <maximumf>, %12, %cst_11 [0] : vector<16x8xf32> to vector<8xf32>
    %14 = vector.shape_cast %13 : vector<8xf32> to vector<1x8xf32>
    %15 = vector.broadcast %14 : vector<1x8xf32> to vector<16x8xf32>
    %16 = arith.subf %12, %15 : vector<16x8xf32>
    %17 = math.exp %16 : vector<16x8xf32>
    %cst_12 = arith.constant dense<0.000000e+00> : vector<8xf32>
    %18 = vector.multi_reduction <add>, %17, %cst_12 [0] : vector<16x8xf32> to vector<8xf32>
    %19 = vector.shape_cast %18 : vector<8xf32> to vector<1x8xf32>
    %20 = vector.broadcast %19 : vector<1x8xf32> to vector<16x8xf32>
    %21 = arith.divf %17, %20 : vector<16x8xf32>
    %22 = vector.extract_strided_slice %10 {offsets = [16, 0], sizes = [16, 8], strides = [1, 1]} : vector<32x8xf32> to vector<16x8xf32>
    %cst_13 = arith.constant dense<0xFF800000> : vector<8xf32>
    %23 = vector.multi_reduction <maximumf>, %22, %cst_13 [0] : vector<16x8xf32> to vector<8xf32>
    %24 = vector.shape_cast %23 : vector<8xf32> to vector<1x8xf32>
    %25 = vector.broadcast %24 : vector<1x8xf32> to vector<16x8xf32>
    %26 = arith.subf %22, %25 : vector<16x8xf32>
    %27 = math.exp %26 : vector<16x8xf32>
    %cst_14 = arith.constant dense<0.000000e+00> : vector<8xf32>
    %28 = vector.multi_reduction <add>, %27, %cst_14 [0] : vector<16x8xf32> to vector<8xf32>
    %29 = vector.shape_cast %28 : vector<8xf32> to vector<1x8xf32>
    %30 = vector.broadcast %29 : vector<1x8xf32> to vector<16x8xf32>
    %31 = arith.divf %27, %30 : vector<16x8xf32>
    %32 = tpu.concatenate %21, %31 in 0 : vector<16x8xf32>, vector<16x8xf32> -> vector<32x8xf32>
    %33 = arith.mulf %32, %11 : vector<32x8xf32>
    %cst_15 = arith.constant dense<0xFF800000> : vector<32xf32>
    %34 = vector.multi_reduction <maximumf>, %33, %cst_15 [1] : vector<32x8xf32> to vector<32xf32>
    %35 = vector.shape_cast %34 : vector<32xf32> to vector<32x1xf32>
    %36 = vector.broadcast %35 : vector<32x1xf32> to vector<32x8xf32>
    %37 = arith.subf %33, %36 : vector<32x8xf32>
    %38 = math.exp %37 : vector<32x8xf32>
    %cst_16 = arith.constant dense<0.000000e+00> : vector<32xf32>
    %39 = vector.multi_reduction <add>, %38, %cst_16 [1] : vector<32x8xf32> to vector<32xf32>
    %40 = vector.shape_cast %39 : vector<32xf32> to vector<32x1xf32>
    %41 = vector.broadcast %40 : vector<32x1xf32> to vector<32x8xf32>
    %42 = arith.divf %38, %41 : vector<32x8xf32>
    %43 = arith.mulf %32, %42 : vector<32x8xf32>
    %c0_17 = arith.constant 0 : index
    %c0_18 = arith.constant 0 : index
    %44 = vector.load %arg6[%c0_17, %c0_18] : memref<8x256xf32, #tpu.memory_space<vmem>>, vector<8x256xf32>
    %cst_19 = arith.constant dense<0.000000e+00> : vector<32x256xf32>
    %45 = tpu.matmul %43, %44, %cst_19 {dimension_numbers = #tpu.dot_dimension_numbers<[1], [0], [0], [1], [0, 0, 1, 1], [], []>} : vector<32x8xf32>, vector<8x256xf32>, vector<32x256xf32> -> vector<32x256xf32>
    %46 = arith.mulf %7, %45 : vector<32x256xf32>
    %c0_20 = arith.constant 0 : index
    %c0_21 = arith.constant 0 : index
    %47 = vector.load %arg7[%c0_20, %c0_21] : memref<256x1024xf32, #tpu.memory_space<vmem>>, vector<256x1024xf32>
    %cst_22 = arith.constant dense<0.000000e+00> : vector<32x1024xf32>
    %48 = tpu.matmul %46, %47, %cst_22 {dimension_numbers = #tpu.dot_dimension_numbers<[1], [0], [0], [1], [0, 0, 1, 1], [], []>} : vector<32x256xf32>, vector<256x1024xf32>, vector<32x1024xf32> -> vector<32x1024xf32>
    %c0_23 = arith.constant 0 : index
    %c0_24 = arith.constant 0 : index
    %49 = vector.load %arg8[%c0_23, %c0_24] : memref<32x96xf32, #tpu.memory_space<vmem>>, vector<32x96xf32>
    %c0_25 = arith.constant 0 : index
    %c0_26 = arith.constant 0 : index
    %50 = vector.load %arg9[%c0_25, %c0_26] : memref<4x32xf32, #tpu.memory_space<vmem>>, vector<4x32xf32>
    %51 = vector.extract_strided_slice %50 {offsets = [0, 0], sizes = [1, 32], strides = [1, 1]} : vector<4x32xf32> to vector<1x32xf32>
    %52 = vector.extract_strided_slice %50 {offsets = [1, 0], sizes = [1, 32], strides = [1, 1]} : vector<4x32xf32> to vector<1x32xf32>
    %53 = vector.extract_strided_slice %50 {offsets = [2, 0], sizes = [1, 32], strides = [1, 1]} : vector<4x32xf32> to vector<1x32xf32>
    %54 = vector.extract_strided_slice %50 {offsets = [3, 0], sizes = [1, 32], strides = [1, 1]} : vector<4x32xf32> to vector<1x32xf32>
    %55 = vector.extract_strided_slice %48 {offsets = [0, 0], sizes = [32, 128], strides = [1, 1]} : vector<32x1024xf32> to vector<32x128xf32>
    %56 = vector.extract_strided_slice %55 {offsets = [0, 0], sizes = [32, 32], strides = [1, 1]} : vector<32x128xf32> to vector<32x32xf32>
    %57 = vector.broadcast %51 : vector<1x32xf32> to vector<32x32xf32>
    %58 = arith.addf %56, %57 : vector<32x32xf32>
    %59 = arith.negf %58 : vector<32x32xf32>
    %60 = math.exp %59 : vector<32x32xf32>
    %cst_27 = arith.constant 1.000000e+00 : f32
    %61 = vector.broadcast %cst_27 : f32 to vector<32x32xf32>
    %62 = arith.addf %61, %60 : vector<32x32xf32>
    %63 = arith.divf %61, %62 : vector<32x32xf32>
    %64 = vector.extract_strided_slice %55 {offsets = [0, 32], sizes = [32, 32], strides = [1, 1]} : vector<32x128xf32> to vector<32x32xf32>
    %65 = vector.broadcast %52 : vector<1x32xf32> to vector<32x32xf32>
    %66 = arith.addf %64, %65 : vector<32x32xf32>
    %67 = arith.negf %66 : vector<32x32xf32>
    %68 = math.exp %67 : vector<32x32xf32>
    %cst_28 = arith.constant 1.000000e+00 : f32
    %69 = vector.broadcast %cst_28 : f32 to vector<32x32xf32>
    %70 = arith.addf %69, %68 : vector<32x32xf32>
    %71 = arith.divf %69, %70 : vector<32x32xf32>
    %72 = vector.extract_strided_slice %55 {offsets = [0, 64], sizes = [32, 32], strides = [1, 1]} : vector<32x128xf32> to vector<32x32xf32>
    %73 = vector.broadcast %53 : vector<1x32xf32> to vector<32x32xf32>
    %74 = arith.addf %72, %73 : vector<32x32xf32>
    %75 = vector.broadcast %54 : vector<1x32xf32> to vector<32x32xf32>
    %76 = arith.mulf %63, %75 : vector<32x32xf32>
    %77 = arith.addf %74, %76 : vector<32x32xf32>
    %78 = math.tanh %77 : vector<32x32xf32>
    %cst_29 = arith.constant 1.000000e+00 : f32
    %79 = vector.broadcast %cst_29 : f32 to vector<32x32xf32>
    %80 = arith.subf %79, %71 : vector<32x32xf32>
    %81 = arith.mulf %80, %78 : vector<32x32xf32>
    %82 = vector.extract_strided_slice %48 {offsets = [0, 128], sizes = [32, 128], strides = [1, 1]} : vector<32x1024xf32> to vector<32x128xf32>
    %cst_30 = arith.constant dense<0.000000e+00> : vector<32x96xf32>
    %83 = tpu.matmul %81, %49, %cst_30 {dimension_numbers = #tpu.dot_dimension_numbers<[1], [0], [0], [1], [0, 0, 1, 1], [], []>} : vector<32x32xf32>, vector<32x96xf32>, vector<32x96xf32> -> vector<32x96xf32>
    %84 = vector.extract_strided_slice %82 {offsets = [0, 0], sizes = [32, 32], strides = [1, 1]} : vector<32x128xf32> to vector<32x32xf32>
    %85 = vector.extract_strided_slice %83 {offsets = [0, 0], sizes = [32, 32], strides = [1, 1]} : vector<32x96xf32> to vector<32x32xf32>
    %86 = arith.addf %84, %85 : vector<32x32xf32>
    %87 = vector.broadcast %51 : vector<1x32xf32> to vector<32x32xf32>
    %88 = arith.addf %86, %87 : vector<32x32xf32>
    %89 = arith.negf %88 : vector<32x32xf32>
    %90 = math.exp %89 : vector<32x32xf32>
    %cst_31 = arith.constant 1.000000e+00 : f32
    %91 = vector.broadcast %cst_31 : f32 to vector<32x32xf32>
    %92 = arith.addf %91, %90 : vector<32x32xf32>
    %93 = arith.divf %91, %92 : vector<32x32xf32>
    %94 = vector.extract_strided_slice %82 {offsets = [0, 32], sizes = [32, 32], strides = [1, 1]} : vector<32x128xf32> to vector<32x32xf32>
    %95 = vector.extract_strided_slice %83 {offsets = [0, 32], sizes = [32, 32], strides = [1, 1]} : vector<32x96xf32> to vector<32x32xf32>
    %96 = arith.addf %94, %95 : vector<32x32xf32>
    %97 = vector.broadcast %52 : vector<1x32xf32> to vector<32x32xf32>
    %98 = arith.addf %96, %97 : vector<32x32xf32>
    %99 = arith.negf %98 : vector<32x32xf32>
    %100 = math.exp %99 : vector<32x32xf32>
    %cst_32 = arith.constant 1.000000e+00 : f32
    %101 = vector.broadcast %cst_32 : f32 to vector<32x32xf32>
    %102 = arith.addf %101, %100 : vector<32x32xf32>
    %103 = arith.divf %101, %102 : vector<32x32xf32>
    %104 = vector.extract_strided_slice %82 {offsets = [0, 64], sizes = [32, 32], strides = [1, 1]} : vector<32x128xf32> to vector<32x32xf32>
    %105 = vector.broadcast %53 : vector<1x32xf32> to vector<32x32xf32>
    %106 = arith.addf %104, %105 : vector<32x32xf32>
    %107 = vector.extract_strided_slice %83 {offsets = [0, 64], sizes = [32, 32], strides = [1, 1]} : vector<32x96xf32> to vector<32x32xf32>
    %108 = vector.broadcast %54 : vector<1x32xf32> to vector<32x32xf32>
    %109 = arith.addf %107, %108 : vector<32x32xf32>
    %110 = arith.mulf %93, %109 : vector<32x32xf32>
    %111 = arith.addf %106, %110 : vector<32x32xf32>
    %112 = math.tanh %111 : vector<32x32xf32>
    %cst_33 = arith.constant 1.000000e+00 : f32
    %113 = vector.broadcast %cst_33 : f32 to vector<32x32xf32>
    %114 = arith.subf %113, %103 : vector<32x32xf32>
    %115 = arith.mulf %114, %112 : vector<32x32xf32>
    %116 = arith.mulf %103, %81 : vector<32x32xf32>
    %117 = arith.addf %115, %116 : vector<32x32xf32>
    %118 = vector.extract_strided_slice %48 {offsets = [0, 256], sizes = [32, 128], strides = [1, 1]} : vector<32x1024xf32> to vector<32x128xf32>
    %cst_34 = arith.constant dense<0.000000e+00> : vector<32x96xf32>
    %119 = tpu.matmul %117, %49, %cst_34 {dimension_numbers = #tpu.dot_dimension_numbers<[1], [0], [0], [1], [0, 0, 1, 1], [], []>} : vector<32x32xf32>, vector<32x96xf32>, vector<32x96xf32> -> vector<32x96xf32>
    %120 = vector.extract_strided_slice %118 {offsets = [0, 0], sizes = [32, 32], strides = [1, 1]} : vector<32x128xf32> to vector<32x32xf32>
    %121 = vector.extract_strided_slice %119 {offsets = [0, 0], sizes = [32, 32], strides = [1, 1]} : vector<32x96xf32> to vector<32x32xf32>
    %122 = arith.addf %120, %121 : vector<32x32xf32>
    %123 = vector.broadcast %51 : vector<1x32xf32> to vector<32x32xf32>
    %124 = arith.addf %122, %123 : vector<32x32xf32>
    %125 = arith.negf %124 : vector<32x32xf32>
    %126 = math.exp %125 : vector<32x32xf32>
    %cst_35 = arith.constant 1.000000e+00 : f32
    %127 = vector.broadcast %cst_35 : f32 to vector<32x32xf32>
    %128 = arith.addf %127, %126 : vector<32x32xf32>
    %129 = arith.divf %127, %128 : vector<32x32xf32>
    %130 = vector.extract_strided_slice %118 {offsets = [0, 32], sizes = [32, 32], strides = [1, 1]} : vector<32x128xf32> to vector<32x32xf32>
    %131 = vector.extract_strided_slice %119 {offsets = [0, 32], sizes = [32, 32], strides = [1, 1]} : vector<32x96xf32> to vector<32x32xf32>
    %132 = arith.addf %130, %131 : vector<32x32xf32>
    %133 = vector.broadcast %52 : vector<1x32xf32> to vector<32x32xf32>
    %134 = arith.addf %132, %133 : vector<32x32xf32>
    %135 = arith.negf %134 : vector<32x32xf32>
    %136 = math.exp %135 : vector<32x32xf32>
    %cst_36 = arith.constant 1.000000e+00 : f32
    %137 = vector.broadcast %cst_36 : f32 to vector<32x32xf32>
    %138 = arith.addf %137, %136 : vector<32x32xf32>
    %139 = arith.divf %137, %138 : vector<32x32xf32>
    %140 = vector.extract_strided_slice %118 {offsets = [0, 64], sizes = [32, 32], strides = [1, 1]} : vector<32x128xf32> to vector<32x32xf32>
    %141 = vector.broadcast %53 : vector<1x32xf32> to vector<32x32xf32>
    %142 = arith.addf %140, %141 : vector<32x32xf32>
    %143 = vector.extract_strided_slice %119 {offsets = [0, 64], sizes = [32, 32], strides = [1, 1]} : vector<32x96xf32> to vector<32x32xf32>
    %144 = vector.broadcast %54 : vector<1x32xf32> to vector<32x32xf32>
    %145 = arith.addf %143, %144 : vector<32x32xf32>
    %146 = arith.mulf %129, %145 : vector<32x32xf32>
    %147 = arith.addf %142, %146 : vector<32x32xf32>
    %148 = math.tanh %147 : vector<32x32xf32>
    %cst_37 = arith.constant 1.000000e+00 : f32
    %149 = vector.broadcast %cst_37 : f32 to vector<32x32xf32>
    %150 = arith.subf %149, %139 : vector<32x32xf32>
    %151 = arith.mulf %150, %148 : vector<32x32xf32>
    %152 = arith.mulf %139, %117 : vector<32x32xf32>
    %153 = arith.addf %151, %152 : vector<32x32xf32>
    %154 = vector.extract_strided_slice %48 {offsets = [0, 384], sizes = [32, 128], strides = [1, 1]} : vector<32x1024xf32> to vector<32x128xf32>
    %cst_38 = arith.constant dense<0.000000e+00> : vector<32x96xf32>
    %155 = tpu.matmul %153, %49, %cst_38 {dimension_numbers = #tpu.dot_dimension_numbers<[1], [0], [0], [1], [0, 0, 1, 1], [], []>} : vector<32x32xf32>, vector<32x96xf32>, vector<32x96xf32> -> vector<32x96xf32>
    %156 = vector.extract_strided_slice %154 {offsets = [0, 0], sizes = [32, 32], strides = [1, 1]} : vector<32x128xf32> to vector<32x32xf32>
    %157 = vector.extract_strided_slice %155 {offsets = [0, 0], sizes = [32, 32], strides = [1, 1]} : vector<32x96xf32> to vector<32x32xf32>
    %158 = arith.addf %156, %157 : vector<32x32xf32>
    %159 = vector.broadcast %51 : vector<1x32xf32> to vector<32x32xf32>
    %160 = arith.addf %158, %159 : vector<32x32xf32>
    %161 = arith.negf %160 : vector<32x32xf32>
    %162 = math.exp %161 : vector<32x32xf32>
    %cst_39 = arith.constant 1.000000e+00 : f32
    %163 = vector.broadcast %cst_39 : f32 to vector<32x32xf32>
    %164 = arith.addf %163, %162 : vector<32x32xf32>
    %165 = arith.divf %163, %164 : vector<32x32xf32>
    %166 = vector.extract_strided_slice %154 {offsets = [0, 32], sizes = [32, 32], strides = [1, 1]} : vector<32x128xf32> to vector<32x32xf32>
    %167 = vector.extract_strided_slice %155 {offsets = [0, 32], sizes = [32, 32], strides = [1, 1]} : vector<32x96xf32> to vector<32x32xf32>
    %168 = arith.addf %166, %167 : vector<32x32xf32>
    %169 = vector.broadcast %52 : vector<1x32xf32> to vector<32x32xf32>
    %170 = arith.addf %168, %169 : vector<32x32xf32>
    %171 = arith.negf %170 : vector<32x32xf32>
    %172 = math.exp %171 : vector<32x32xf32>
    %cst_40 = arith.constant 1.000000e+00 : f32
    %173 = vector.broadcast %cst_40 : f32 to vector<32x32xf32>
    %174 = arith.addf %173, %172 : vector<32x32xf32>
    %175 = arith.divf %173, %174 : vector<32x32xf32>
    %176 = vector.extract_strided_slice %154 {offsets = [0, 64], sizes = [32, 32], strides = [1, 1]} : vector<32x128xf32> to vector<32x32xf32>
    %177 = vector.broadcast %53 : vector<1x32xf32> to vector<32x32xf32>
    %178 = arith.addf %176, %177 : vector<32x32xf32>
    %179 = vector.extract_strided_slice %155 {offsets = [0, 64], sizes = [32, 32], strides = [1, 1]} : vector<32x96xf32> to vector<32x32xf32>
    %180 = vector.broadcast %54 : vector<1x32xf32> to vector<32x32xf32>
    %181 = arith.addf %179, %180 : vector<32x32xf32>
    %182 = arith.mulf %165, %181 : vector<32x32xf32>
    %183 = arith.addf %178, %182 : vector<32x32xf32>
    %184 = math.tanh %183 : vector<32x32xf32>
    %cst_41 = arith.constant 1.000000e+00 : f32
    %185 = vector.broadcast %cst_41 : f32 to vector<32x32xf32>
    %186 = arith.subf %185, %175 : vector<32x32xf32>
    %187 = arith.mulf %186, %184 : vector<32x32xf32>
    %188 = arith.mulf %175, %153 : vector<32x32xf32>
    %189 = arith.addf %187, %188 : vector<32x32xf32>
    %190 = vector.extract_strided_slice %48 {offsets = [0, 512], sizes = [32, 128], strides = [1, 1]} : vector<32x1024xf32> to vector<32x128xf32>
    %cst_42 = arith.constant dense<0.000000e+00> : vector<32x96xf32>
    %191 = tpu.matmul %189, %49, %cst_42 {dimension_numbers = #tpu.dot_dimension_numbers<[1], [0], [0], [1], [0, 0, 1, 1], [], []>} : vector<32x32xf32>, vector<32x96xf32>, vector<32x96xf32> -> vector<32x96xf32>
    %192 = vector.extract_strided_slice %190 {offsets = [0, 0], sizes = [32, 32], strides = [1, 1]} : vector<32x128xf32> to vector<32x32xf32>
    %193 = vector.extract_strided_slice %191 {offsets = [0, 0], sizes = [32, 32], strides = [1, 1]} : vector<32x96xf32> to vector<32x32xf32>
    %194 = arith.addf %192, %193 : vector<32x32xf32>
    %195 = vector.broadcast %51 : vector<1x32xf32> to vector<32x32xf32>
    %196 = arith.addf %194, %195 : vector<32x32xf32>
    %197 = arith.negf %196 : vector<32x32xf32>
    %198 = math.exp %197 : vector<32x32xf32>
    %cst_43 = arith.constant 1.000000e+00 : f32
    %199 = vector.broadcast %cst_43 : f32 to vector<32x32xf32>
    %200 = arith.addf %199, %198 : vector<32x32xf32>
    %201 = arith.divf %199, %200 : vector<32x32xf32>
    %202 = vector.extract_strided_slice %190 {offsets = [0, 32], sizes = [32, 32], strides = [1, 1]} : vector<32x128xf32> to vector<32x32xf32>
    %203 = vector.extract_strided_slice %191 {offsets = [0, 32], sizes = [32, 32], strides = [1, 1]} : vector<32x96xf32> to vector<32x32xf32>
    %204 = arith.addf %202, %203 : vector<32x32xf32>
    %205 = vector.broadcast %52 : vector<1x32xf32> to vector<32x32xf32>
    %206 = arith.addf %204, %205 : vector<32x32xf32>
    %207 = arith.negf %206 : vector<32x32xf32>
    %208 = math.exp %207 : vector<32x32xf32>
    %cst_44 = arith.constant 1.000000e+00 : f32
    %209 = vector.broadcast %cst_44 : f32 to vector<32x32xf32>
    %210 = arith.addf %209, %208 : vector<32x32xf32>
    %211 = arith.divf %209, %210 : vector<32x32xf32>
    %212 = vector.extract_strided_slice %190 {offsets = [0, 64], sizes = [32, 32], strides = [1, 1]} : vector<32x128xf32> to vector<32x32xf32>
    %213 = vector.broadcast %53 : vector<1x32xf32> to vector<32x32xf32>
    %214 = arith.addf %212, %213 : vector<32x32xf32>
    %215 = vector.extract_strided_slice %191 {offsets = [0, 64], sizes = [32, 32], strides = [1, 1]} : vector<32x96xf32> to vector<32x32xf32>
    %216 = vector.broadcast %54 : vector<1x32xf32> to vector<32x32xf32>
    %217 = arith.addf %215, %216 : vector<32x32xf32>
    %218 = arith.mulf %201, %217 : vector<32x32xf32>
    %219 = arith.addf %214, %218 : vector<32x32xf32>
    %220 = math.tanh %219 : vector<32x32xf32>
    %cst_45 = arith.constant 1.000000e+00 : f32
    %221 = vector.broadcast %cst_45 : f32 to vector<32x32xf32>
    %222 = arith.subf %221, %211 : vector<32x32xf32>
    %223 = arith.mulf %222, %220 : vector<32x32xf32>
    %224 = arith.mulf %211, %189 : vector<32x32xf32>
    %225 = arith.addf %223, %224 : vector<32x32xf32>
    %226 = vector.extract_strided_slice %48 {offsets = [0, 640], sizes = [32, 128], strides = [1, 1]} : vector<32x1024xf32> to vector<32x128xf32>
    %cst_46 = arith.constant dense<0.000000e+00> : vector<32x96xf32>
    %227 = tpu.matmul %225, %49, %cst_46 {dimension_numbers = #tpu.dot_dimension_numbers<[1], [0], [0], [1], [0, 0, 1, 1], [], []>} : vector<32x32xf32>, vector<32x96xf32>, vector<32x96xf32> -> vector<32x96xf32>
    %228 = vector.extract_strided_slice %226 {offsets = [0, 0], sizes = [32, 32], strides = [1, 1]} : vector<32x128xf32> to vector<32x32xf32>
    %229 = vector.extract_strided_slice %227 {offsets = [0, 0], sizes = [32, 32], strides = [1, 1]} : vector<32x96xf32> to vector<32x32xf32>
    %230 = arith.addf %228, %229 : vector<32x32xf32>
    %231 = vector.broadcast %51 : vector<1x32xf32> to vector<32x32xf32>
    %232 = arith.addf %230, %231 : vector<32x32xf32>
    %233 = arith.negf %232 : vector<32x32xf32>
    %234 = math.exp %233 : vector<32x32xf32>
    %cst_47 = arith.constant 1.000000e+00 : f32
    %235 = vector.broadcast %cst_47 : f32 to vector<32x32xf32>
    %236 = arith.addf %235, %234 : vector<32x32xf32>
    %237 = arith.divf %235, %236 : vector<32x32xf32>
    %238 = vector.extract_strided_slice %226 {offsets = [0, 32], sizes = [32, 32], strides = [1, 1]} : vector<32x128xf32> to vector<32x32xf32>
    %239 = vector.extract_strided_slice %227 {offsets = [0, 32], sizes = [32, 32], strides = [1, 1]} : vector<32x96xf32> to vector<32x32xf32>
    %240 = arith.addf %238, %239 : vector<32x32xf32>
    %241 = vector.broadcast %52 : vector<1x32xf32> to vector<32x32xf32>
    %242 = arith.addf %240, %241 : vector<32x32xf32>
    %243 = arith.negf %242 : vector<32x32xf32>
    %244 = math.exp %243 : vector<32x32xf32>
    %cst_48 = arith.constant 1.000000e+00 : f32
    %245 = vector.broadcast %cst_48 : f32 to vector<32x32xf32>
    %246 = arith.addf %245, %244 : vector<32x32xf32>
    %247 = arith.divf %245, %246 : vector<32x32xf32>
    %248 = vector.extract_strided_slice %226 {offsets = [0, 64], sizes = [32, 32], strides = [1, 1]} : vector<32x128xf32> to vector<32x32xf32>
    %249 = vector.broadcast %53 : vector<1x32xf32> to vector<32x32xf32>
    %250 = arith.addf %248, %249 : vector<32x32xf32>
    %251 = vector.extract_strided_slice %227 {offsets = [0, 64], sizes = [32, 32], strides = [1, 1]} : vector<32x96xf32> to vector<32x32xf32>
    %252 = vector.broadcast %54 : vector<1x32xf32> to vector<32x32xf32>
    %253 = arith.addf %251, %252 : vector<32x32xf32>
    %254 = arith.mulf %237, %253 : vector<32x32xf32>
    %255 = arith.addf %250, %254 : vector<32x32xf32>
    %256 = math.tanh %255 : vector<32x32xf32>
    %cst_49 = arith.constant 1.000000e+00 : f32
    %257 = vector.broadcast %cst_49 : f32 to vector<32x32xf32>
    %258 = arith.subf %257, %247 : vector<32x32xf32>
    %259 = arith.mulf %258, %256 : vector<32x32xf32>
    %260 = arith.mulf %247, %225 : vector<32x32xf32>
    %261 = arith.addf %259, %260 : vector<32x32xf32>
    %262 = vector.extract_strided_slice %48 {offsets = [0, 768], sizes = [32, 128], strides = [1, 1]} : vector<32x1024xf32> to vector<32x128xf32>
    %cst_50 = arith.constant dense<0.000000e+00> : vector<32x96xf32>
    %263 = tpu.matmul %261, %49, %cst_50 {dimension_numbers = #tpu.dot_dimension_numbers<[1], [0], [0], [1], [0, 0, 1, 1], [], []>} : vector<32x32xf32>, vector<32x96xf32>, vector<32x96xf32> -> vector<32x96xf32>
    %264 = vector.extract_strided_slice %262 {offsets = [0, 0], sizes = [32, 32], strides = [1, 1]} : vector<32x128xf32> to vector<32x32xf32>
    %265 = vector.extract_strided_slice %263 {offsets = [0, 0], sizes = [32, 32], strides = [1, 1]} : vector<32x96xf32> to vector<32x32xf32>
    %266 = arith.addf %264, %265 : vector<32x32xf32>
    %267 = vector.broadcast %51 : vector<1x32xf32> to vector<32x32xf32>
    %268 = arith.addf %266, %267 : vector<32x32xf32>
    %269 = arith.negf %268 : vector<32x32xf32>
    %270 = math.exp %269 : vector<32x32xf32>
    %cst_51 = arith.constant 1.000000e+00 : f32
    %271 = vector.broadcast %cst_51 : f32 to vector<32x32xf32>
    %272 = arith.addf %271, %270 : vector<32x32xf32>
    %273 = arith.divf %271, %272 : vector<32x32xf32>
    %274 = vector.extract_strided_slice %262 {offsets = [0, 32], sizes = [32, 32], strides = [1, 1]} : vector<32x128xf32> to vector<32x32xf32>
    %275 = vector.extract_strided_slice %263 {offsets = [0, 32], sizes = [32, 32], strides = [1, 1]} : vector<32x96xf32> to vector<32x32xf32>
    %276 = arith.addf %274, %275 : vector<32x32xf32>
    %277 = vector.broadcast %52 : vector<1x32xf32> to vector<32x32xf32>
    %278 = arith.addf %276, %277 : vector<32x32xf32>
    %279 = arith.negf %278 : vector<32x32xf32>
    %280 = math.exp %279 : vector<32x32xf32>
    %cst_52 = arith.constant 1.000000e+00 : f32
    %281 = vector.broadcast %cst_52 : f32 to vector<32x32xf32>
    %282 = arith.addf %281, %280 : vector<32x32xf32>
    %283 = arith.divf %281, %282 : vector<32x32xf32>
    %284 = vector.extract_strided_slice %262 {offsets = [0, 64], sizes = [32, 32], strides = [1, 1]} : vector<32x128xf32> to vector<32x32xf32>
    %285 = vector.broadcast %53 : vector<1x32xf32> to vector<32x32xf32>
    %286 = arith.addf %284, %285 : vector<32x32xf32>
    %287 = vector.extract_strided_slice %263 {offsets = [0, 64], sizes = [32, 32], strides = [1, 1]} : vector<32x96xf32> to vector<32x32xf32>
    %288 = vector.broadcast %54 : vector<1x32xf32> to vector<32x32xf32>
    %289 = arith.addf %287, %288 : vector<32x32xf32>
    %290 = arith.mulf %273, %289 : vector<32x32xf32>
    %291 = arith.addf %286, %290 : vector<32x32xf32>
    %292 = math.tanh %291 : vector<32x32xf32>
    %cst_53 = arith.constant 1.000000e+00 : f32
    %293 = vector.broadcast %cst_53 : f32 to vector<32x32xf32>
    %294 = arith.subf %293, %283 : vector<32x32xf32>
    %295 = arith.mulf %294, %292 : vector<32x32xf32>
    %296 = arith.mulf %283, %261 : vector<32x32xf32>
    %297 = arith.addf %295, %296 : vector<32x32xf32>
    %298 = vector.extract_strided_slice %48 {offsets = [0, 896], sizes = [32, 128], strides = [1, 1]} : vector<32x1024xf32> to vector<32x128xf32>
    %cst_54 = arith.constant dense<0.000000e+00> : vector<32x96xf32>
    %299 = tpu.matmul %297, %49, %cst_54 {dimension_numbers = #tpu.dot_dimension_numbers<[1], [0], [0], [1], [0, 0, 1, 1], [], []>} : vector<32x32xf32>, vector<32x96xf32>, vector<32x96xf32> -> vector<32x96xf32>
    %300 = vector.extract_strided_slice %298 {offsets = [0, 0], sizes = [32, 32], strides = [1, 1]} : vector<32x128xf32> to vector<32x32xf32>
    %301 = vector.extract_strided_slice %299 {offsets = [0, 0], sizes = [32, 32], strides = [1, 1]} : vector<32x96xf32> to vector<32x32xf32>
    %302 = arith.addf %300, %301 : vector<32x32xf32>
    %303 = vector.broadcast %51 : vector<1x32xf32> to vector<32x32xf32>
    %304 = arith.addf %302, %303 : vector<32x32xf32>
    %305 = arith.negf %304 : vector<32x32xf32>
    %306 = math.exp %305 : vector<32x32xf32>
    %cst_55 = arith.constant 1.000000e+00 : f32
    %307 = vector.broadcast %cst_55 : f32 to vector<32x32xf32>
    %308 = arith.addf %307, %306 : vector<32x32xf32>
    %309 = arith.divf %307, %308 : vector<32x32xf32>
    %310 = vector.extract_strided_slice %298 {offsets = [0, 32], sizes = [32, 32], strides = [1, 1]} : vector<32x128xf32> to vector<32x32xf32>
    %311 = vector.extract_strided_slice %299 {offsets = [0, 32], sizes = [32, 32], strides = [1, 1]} : vector<32x96xf32> to vector<32x32xf32>
    %312 = arith.addf %310, %311 : vector<32x32xf32>
    %313 = vector.broadcast %52 : vector<1x32xf32> to vector<32x32xf32>
    %314 = arith.addf %312, %313 : vector<32x32xf32>
    %315 = arith.negf %314 : vector<32x32xf32>
    %316 = math.exp %315 : vector<32x32xf32>
    %cst_56 = arith.constant 1.000000e+00 : f32
    %317 = vector.broadcast %cst_56 : f32 to vector<32x32xf32>
    %318 = arith.addf %317, %316 : vector<32x32xf32>
    %319 = arith.divf %317, %318 : vector<32x32xf32>
    %320 = vector.extract_strided_slice %298 {offsets = [0, 64], sizes = [32, 32], strides = [1, 1]} : vector<32x128xf32> to vector<32x32xf32>
    %321 = vector.broadcast %53 : vector<1x32xf32> to vector<32x32xf32>
    %322 = arith.addf %320, %321 : vector<32x32xf32>
    %323 = vector.extract_strided_slice %299 {offsets = [0, 64], sizes = [32, 32], strides = [1, 1]} : vector<32x96xf32> to vector<32x32xf32>
    %324 = vector.broadcast %54 : vector<1x32xf32> to vector<32x32xf32>
    %325 = arith.addf %323, %324 : vector<32x32xf32>
    %326 = arith.mulf %309, %325 : vector<32x32xf32>
    %327 = arith.addf %322, %326 : vector<32x32xf32>
    %328 = math.tanh %327 : vector<32x32xf32>
    %cst_57 = arith.constant 1.000000e+00 : f32
    %329 = vector.broadcast %cst_57 : f32 to vector<32x32xf32>
    %330 = arith.subf %329, %319 : vector<32x32xf32>
    %331 = arith.mulf %330, %328 : vector<32x32xf32>
    %332 = arith.mulf %319, %297 : vector<32x32xf32>
    %333 = arith.addf %331, %332 : vector<32x32xf32>
    %c0_58 = arith.constant 0 : index
    %c0_59 = arith.constant 0 : index
    %334 = vector.load %arg10[%c0_58, %c0_59] : memref<32x4xf32, #tpu.memory_space<vmem>>, vector<32x4xf32>
    %cst_60 = arith.constant dense<0.000000e+00> : vector<32x4xf32>
    %335 = tpu.matmul %333, %334, %cst_60 {dimension_numbers = #tpu.dot_dimension_numbers<[1], [0], [0], [1], [0, 0, 1, 1], [], []>} : vector<32x32xf32>, vector<32x4xf32>, vector<32x4xf32> -> vector<32x4xf32>
    %c0_61 = arith.constant 0 : index
    %c0_62 = arith.constant 0 : index
    %336 = vector.load %arg11[%c0_61, %c0_62] : memref<1x4xf32, #tpu.memory_space<vmem>>, vector<1x4xf32>
    %337 = vector.broadcast %336 : vector<1x4xf32> to vector<32x4xf32>
    %338 = arith.addf %335, %337 : vector<32x4xf32>
    %c0_63 = arith.constant 0 : index
    %c0_64 = arith.constant 0 : index
    %339 = vector.load %arg12[%c0_63, %c0_64] : memref<32x4xf32, #tpu.memory_space<vmem>>, vector<32x4xf32>
    tpu.vector_store %arg12[%c0_63, %c0_64], %338 {strides = array<i32>} : memref<32x4xf32, #tpu.memory_space<vmem>>, vector<32x4xf32>,
    return
  }
  func.func @transform_0(%arg0: i32) -> (i32, i32) {
    %c0_i32 = arith.constant 0 : i32
    %c0_i32_0 = arith.constant 0 : i32
    return %arg0, %c0_i32 : i32, i32
  }
  func.func @transform_1(%arg0: i32) -> (i32, i32) {
    %c0_i32 = arith.constant 0 : i32
    %c0_i32_0 = arith.constant 0 : i32
    %c0_i32_1 = arith.constant 0 : i32
    return %c0_i32, %c0_i32_0 : i32, i32
  }
  func.func @transform_2(%arg0: i32) -> (i32, i32) {
    %c0_i32 = arith.constant 0 : i32
    %c0_i32_0 = arith.constant 0 : i32
    %c0_i32_1 = arith.constant 0 : i32
    return %c0_i32, %c0_i32_0 : i32, i32
  }
  func.func @transform_3(%arg0: i32) -> (i32, i32) {
    %c0_i32 = arith.constant 0 : i32
    %c0_i32_0 = arith.constant 0 : i32
    %c0_i32_1 = arith.constant 0 : i32
    return %c0_i32, %c0_i32_0 : i32, i32
  }
  func.func @transform_4(%arg0: i32) -> (i32, i32) {
    %c0_i32 = arith.constant 0 : i32
    %c0_i32_0 = arith.constant 0 : i32
    %c0_i32_1 = arith.constant 0 : i32
    return %c0_i32, %c0_i32_0 : i32, i32
  }
  func.func @transform_5(%arg0: i32) -> (i32, i32) {
    %c0_i32 = arith.constant 0 : i32
    %c0_i32_0 = arith.constant 0 : i32
    %c0_i32_1 = arith.constant 0 : i32
    return %c0_i32, %c0_i32_0 : i32, i32
  }
  func.func @transform_6(%arg0: i32) -> (i32, i32) {
    %c0_i32 = arith.constant 0 : i32
    %c0_i32_0 = arith.constant 0 : i32
    %c0_i32_1 = arith.constant 0 : i32
    return %c0_i32, %c0_i32_0 : i32, i32
  }
  func.func @transform_7(%arg0: i32) -> (i32, i32) {
    %c0_i32 = arith.constant 0 : i32
    %c0_i32_0 = arith.constant 0 : i32
    %c0_i32_1 = arith.constant 0 : i32
    return %c0_i32, %c0_i32_0 : i32, i32
  }
  func.func @transform_8(%arg0: i32) -> (i32, i32) {
    %c0_i32 = arith.constant 0 : i32
    %c0_i32_0 = arith.constant 0 : i32
    %c0_i32_1 = arith.constant 0 : i32
    return %c0_i32, %c0_i32_0 : i32, i32
  }
  func.func @transform_9(%arg0: i32) -> (i32, i32) {
    %c0_i32 = arith.constant 0 : i32
    %c0_i32_0 = arith.constant 0 : i32
    %c0_i32_1 = arith.constant 0 : i32
    return %c0_i32, %c0_i32_0 : i32, i32
  }
  func.func @transform_10(%arg0: i32) -> (i32, i32) {
    %c0_i32 = arith.constant 0 : i32
    %c0_i32_0 = arith.constant 0 : i32
    %c0_i32_1 = arith.constant 0 : i32
    return %c0_i32, %c0_i32_0 : i32, i32
  }
  func.func @transform_11(%arg0: i32) -> (i32, i32) {
    %c0_i32 = arith.constant 0 : i32
    %c0_i32_0 = arith.constant 0 : i32
    return %arg0, %c0_i32 : i32, i32
  }
}

</mosaic_0001>

<llo_original>
// kernel: tpu_custom_call.1
$region0: #{tpu_custom_call.1}
  #allocation0 [shape = 'u32[]', space=smem, size = 0x4, offset = 0x4, fixed_abs, tag = 'smem constant byte address 0x4 - core index']
  #allocation1 [shape = 'u32[144,128]{1,0:T(1,128)}', space=vmem, size = 0x12000, scoped, tag = 'internal scratch']
  %s0 = inlined_call_operand.vmem [shape: f32[32,8], index: 0, kind: input, shape index: {}]
  %s1 = inlined_call_operand.vmem [shape: f32[32,32], index: 1, kind: input, shape index: {}]
  %s2 = inlined_call_operand.vmem [shape: f32[8,256], index: 2, kind: input, shape index: {}]
  %s3 = inlined_call_operand.vmem [shape: f32[1,256], index: 3, kind: input, shape index: {}]
  %s4 = inlined_call_operand.vmem [shape: f32[256,16], index: 4, kind: input, shape index: {}]
  %s5 = inlined_call_operand.vmem [shape: f32[8,256], index: 5, kind: input, shape index: {}]
  %s6 = inlined_call_operand.hbm [shape: f32[256,1024], index: 6, kind: input, shape index: {}]
  %s7 = inlined_call_operand.vmem [shape: f32[32,96], index: 7, kind: input, shape index: {}]
  %s8 = inlined_call_operand.vmem [shape: f32[4,32], index: 8, kind: input, shape index: {}]
  %s9 = inlined_call_operand.vmem [shape: f32[32,4], index: 9, kind: input, shape index: {}]
  %s10 = inlined_call_operand.vmem [shape: f32[1,4], index: 10, kind: input, shape index: {}]
  %s11 = inlined_call_operand.vmem [shape: f32[32,4], index: 11, kind: output, shape index: {}]
  %s12 = sld [smem:[#allocation0]]
  $region58: #{tpu_custom_call.1} parent=0
    _
  %s14 = ssub.s32 1, %s12
  %s15 = scalar_select 0, %s14, %s12
  $region1: #{tpu_custom_call.1} parent=0
    #allocation2 [shape = 'u8[1048576]{0}', space=vmem, size = 0x100000, scoped, tag = 'input window, operand 6, single buffered']
    #allocation3 [shape = 's32[1]{0}', space=sflag, size = 0x4, scoped, tag = 'scoped memory for tpu_custom_call.1']
    %16 = vsyncpa [#allocation3], 0
    // Predicated region
    $region2: #{tpu_custom_call.1} parent=1 // pred_check
      _
    $region3: #{tpu_custom_call.1} parent=1 // pred_check_branch
      %18 = sbr.rel (0) target = $region5
    $region4: #{tpu_custom_call.1} parent=1 // pred_region
      _
    $region5: #{tpu_custom_call.1} parent=1 // pred_fallthru
      _
    // Predicated region
    $region6: #{tpu_custom_call.1} parent=1 // pred_check
      _
    $region7: #{tpu_custom_call.1} parent=1 // pred_check_branch
      %20 = sbr.rel (0) target = $region9
    $region8: #{tpu_custom_call.1} parent=1 // pred_region
      _
    $region9: #{tpu_custom_call.1} parent=1 // pred_fallthru
      _
    // Predicated region
    $region10: #{tpu_custom_call.1} parent=1 // pred_check
      _
    $region11: #{tpu_custom_call.1} parent=1 // pred_check_branch
      %22 = sbr.rel (0) target = $region13
    $region12: #{tpu_custom_call.1} parent=1 // pred_region
      _
    $region13: #{tpu_custom_call.1} parent=1 // pred_fallthru
      _
    // Predicated region
    $region14: #{tpu_custom_call.1} parent=1 // pred_check
      _
    $region15: #{tpu_custom_call.1} parent=1 // pred_check_branch
      %24 = sbr.rel (0) target = $region17
    $region16: #{tpu_custom_call.1} parent=1 // pred_region
      _
    $region17: #{tpu_custom_call.1} parent=1 // pred_fallthru
      _
    // Predicated region
    $region18: #{tpu_custom_call.1} parent=1 // pred_check
      _
    $region19: #{tpu_custom_call.1} parent=1 // pred_check_branch
      %26 = sbr.rel (0) target = $region21
    $region20: #{tpu_custom_call.1} parent=1 // pred_region
      _
    $region21: #{tpu_custom_call.1} parent=1 // pred_fallthru
      _
    // Predicated region
    $region22: #{tpu_custom_call.1} parent=1 // pred_check
      _
    $region23: #{tpu_custom_call.1} parent=1 // pred_check_branch
      %28 = sbr.rel (0) target = $region25
    $region24: #{tpu_custom_call.1} parent=1 // pred_region
      _
    $region25: #{tpu_custom_call.1} parent=1 // pred_fallthru
      _
    // Predicated region
    $region26: #{tpu_custom_call.1} parent=1 // pred_check
      _
    $region27: #{tpu_custom_call.1} parent=1 // pred_check_branch
      %30 = sbr.rel (0) target = $region29
    $region28: #{tpu_custom_call.1} parent=1 // pred_region
      %s32 = ssub.s32 32768, 32768
      %33 = vsyncadd [#allocation3], %s32
      %s34 = sshll.u32 [#allocation2], 4
      %s35 = int_to_ptr.vmem [resolvable:$true] %s34
      %40 = dma.hbm_to_vmem [thread:$0]  %s6, 32768, %s35, [#allocation3], 1024, 1024, 64
    $region29: #{tpu_custom_call.1} parent=1 // pred_fallthru
      _
    // Predicated region
    $region30: #{tpu_custom_call.1} parent=1 // pred_check
      _
    $region31: #{tpu_custom_call.1} parent=1 // pred_check_branch
      %42 = sbr.rel (0) target = $region33
    $region32: #{tpu_custom_call.1} parent=1 // pred_region
      _
    $region33: #{tpu_custom_call.1} parent=1 // pred_fallthru
      _
    // Predicated region
    $region34: #{tpu_custom_call.1} parent=1 // pred_check
      _
    $region35: #{tpu_custom_call.1} parent=1 // pred_check_branch
      %44 = sbr.rel (0) target = $region37
    $region36: #{tpu_custom_call.1} parent=1 // pred_region
      _
    $region37: #{tpu_custom_call.1} parent=1 // pred_fallthru
      _
    // Predicated region
    $region38: #{tpu_custom_call.1} parent=1 // pred_check
      _
    $region39: #{tpu_custom_call.1} parent=1 // pred_check_branch
      %46 = sbr.rel (0) target = $region41
    $region40: #{tpu_custom_call.1} parent=1 // pred_region
      _
    $region41: #{tpu_custom_call.1} parent=1 // pred_fallthru
      _
    // Predicated region
    $region42: #{tpu_custom_call.1} parent=1 // pred_check
      _
    $region43: #{tpu_custom_call.1} parent=1 // pred_check_branch
      %48 = sbr.rel (0) target = $region45
    $region44: #{tpu_custom_call.1} parent=1 // pred_region
      _
    $region45: #{tpu_custom_call.1} parent=1 // pred_fallthru
      _
    // Predicated region
    $region46: #{tpu_custom_call.1} parent=1 // pred_check
      _
    $region47: #{tpu_custom_call.1} parent=1 // pred_check_branch
      %50 = sbr.rel (0) target = $region49
    $region48: #{tpu_custom_call.1} parent=1 // pred_region
      %51 = dma.done [#allocation3], 32768
    $region49: #{tpu_custom_call.1} parent=1 // pred_fallthru
      _
    %v52 = vld [vmem:[%s0] sm:$0xff]
    %v53 = vld [vmem:[%s0 + $0x8] sm:$0xff]
    %v54 = vld [vmem:[%s0 + $0x10] sm:$0xff]
    %v55 = vld [vmem:[%s0 + $0x18] sm:$0xff]
    %v56 = vld [vmem:[%s2] sm:$0xff]
    %v57 = vld [vmem:[%s2 + $0x8] sm:$0xff]
    %vm58 = vcmask 64512
    %v60 = vsel %vm58, %v52, 0
    %v63 = vsel %vm58, %v53, 0
    %v66 = vsel %vm58, %v54, 0
    %v69 = vsel %vm58, %v55, 0
    %71 = vmatprep.subr.mxu0 0.0
    %72 = vmatpush1.msra.mxu0 0.0
    %73 = vmatprep.subr.mxu0 0.0
    %74 = vmatpush1.msra.mxu0 0.0
    %75 = vmatprep.subr.mxu0 0.0
    %76 = vmatpush1.msra.mxu0 0.0
    %77 = vmatprep.subr.mxu0 0.0
    %78 = vmatpush1.msra.mxu0 0.0
    %79 = vmatprep.subr.mxu0 0.0
    %80 = vmatpush1.msra.mxu0 0.0
    %81 = vmatprep.subr.mxu0 0.0
    %82 = vmatpush1.msra.mxu0 0.0
    %83 = vmatprep.subr.mxu0 0.0
    %84 = vmatpush1.msra.mxu0 0.0
    %85 = vmatprep.subr.mxu0 0.0
    %86 = vmatpush1.msra.mxu0 0.0
    %87 = vmatprep.subr.mxu0 0.0
    %88 = vmatpush1.msra.mxu0 0.0
    %89 = vmatprep.subr.mxu0 0.0
    %90 = vmatpush1.msra.mxu0 0.0
    %91 = vmatprep.subr.mxu0 0.0
    %92 = vmatpush1.msra.mxu0 0.0
    %93 = vmatprep.subr.mxu0 0.0
    %94 = vmatpush1.msra.mxu0 0.0
    %95 = vmatprep.subr.mxu0 0.0
    %96 = vmatpush1.msra.mxu0 0.0
    %97 = vmatprep.subr.mxu0 0.0
    %98 = vmatpush1.msra.mxu0 0.0
    %99 = vmatprep.subr.mxu0 0.0
    %100 = vmatpush1.msra.mxu0 0.0
    %101 = vmatprep.subr.mxu0 %v57
    %102 = vmatpush1.msra.mxu0 %v56
    %103 = vmatprep.subr.mxu0 0.0
    %104 = vmatpush2.msra.mxu0 0.0
    %105 = vmatprep.subr.mxu0 0.0
    %106 = vmatpush2.msra.mxu0 0.0
    %107 = vmatprep.subr.mxu0 0.0
    %108 = vmatpush2.msra.mxu0 0.0
    %109 = vmatprep.subr.mxu0 0.0
    %110 = vmatpush2.msra.mxu0 0.0
    %111 = vmatprep.subr.mxu0 0.0
    %112 = vmatpush2.msra.mxu0 0.0
    %113 = vmatprep.subr.mxu0 0.0
    %114 = vmatpush2.msra.mxu0 0.0
    %115 = vmatprep.subr.mxu0 0.0
    %116 = vmatpush2.msra.mxu0 0.0
    %117 = vmatprep.subr.mxu0 0.0
    %118 = vmatpush2.msra.mxu0 0.0
    %119 = vmatprep.subr.mxu0 0.0
    %120 = vmatpush2.msra.mxu0 0.0
    %121 = vmatprep.subr.mxu0 0.0
    %122 = vmatpush2.msra.mxu0 0.0
    %123 = vmatprep.subr.mxu0 0.0
    %124 = vmatpush2.msra.mxu0 0.0
    %125 = vmatprep.subr.mxu0 0.0
    %126 = vmatpush2.msra.mxu0 0.0
    %127 = vmatprep.subr.mxu0 0.0
    %128 = vmatpush2.msra.mxu0 0.0
    %129 = vmatprep.subr.mxu0 0.0
    %130 = vmatpush2.msra.mxu0 0.0
    %131 = vmatprep.subr.mxu0 0.0
    %132 = vmatpush2.msra.mxu0 0.0
    %133 = vmatprep.subr.mxu0 0.0
    %134 = vmatpush2.msra.mxu0 0.0
    %135 = vmatprep.mubr.f32.mxu0 0.0
    %136 = vmatmul.mubr.f32.gmra.mxu0 %v60
    %v137 = vpop.f32.mrf.mxu0
    %v138 = vadd.f32 0.0, %v137
    %v139 = vpop.f32.mrf.mxu0
    %v140 = vadd.f32 0.0, %v139
    %141 = vmatprep.mubr.f32.mxu0 0.0
    %142 = vmatmul.mubr.f32.gmra.mxu0 %v63
    %v143 = vpop.f32.mrf.mxu0
    %v144 = vadd.f32 0.0, %v143
    %v145 = vpop.f32.mrf.mxu0
    %v146 = vadd.f32 0.0, %v145
    %147 = vmatprep.mubr.f32.mxu0 0.0
    %148 = vmatmul.mubr.f32.gmra.mxu0 %v66
    %v149 = vpop.f32.mrf.mxu0
    %v150 = vadd.f32 0.0, %v149
    %v151 = vpop.f32.mrf.mxu0
    %v152 = vadd.f32 0.0, %v151
    %153 = vmatprep.mubr.f32.mxu0 0.0
    %154 = vmatmul.mubr.f32.gmra.mxu0 %v69
    %v155 = vpop.f32.mrf.mxu0
    %v156 = vadd.f32 0.0, %v155
    %v157 = vpop.f32.mrf.mxu0
    %v158 = vadd.f32 0.0, %v157
    %159 = vdwg.mxu0
    %v160 = vld [vmem:[%s1] sm:$0xff]
    %v161 = vld [vmem:[%s1 + $0x8] sm:$0xff]
    %v162 = vld [vmem:[%s1 + $0x10] sm:$0xff]
    %v163 = vld [vmem:[%s1 + $0x18] sm:$0xff]
    %v164 = vld [vmem:[%s3] sm:$0x3]
    %v166 = vlaneseq
    %v167 = vshrl.u32 %v166, 7
    %v168 = vsub.s32 0, %v167
    %v169 = vrot.slane %v164, %v168
    %v170 = vlaneseq
    %v171 = vshrl.u32 %v170, 7
    %v172 = vsub.s32 1, %v171
    %v173 = vrot.slane %v164, %v172
    %vm176 = vcmask 261120
    %v178 = vsel %vm176, %v160, 0
    %v181 = vsel %vm176, %v161, 0
    %v184 = vsel %vm176, %v162, 0
    %v187 = vsel %vm176, %v163, 0
    %189 = vmatprep.subr.mxu0 0.0
    %190 = vmatpush1.msra.mxu0 0.0
    %191 = vmatprep.subr.mxu0 0.0
    %192 = vmatpush1.msra.mxu0 0.0
    %193 = vmatprep.subr.mxu0 0.0
    %194 = vmatpush1.msra.mxu0 0.0
    %195 = vmatprep.subr.mxu0 0.0
    %196 = vmatpush1.msra.mxu0 0.0
    %197 = vmatprep.subr.mxu0 0.0
    %198 = vmatpush1.msra.mxu0 0.0
    %199 = vmatprep.subr.mxu0 0.0
    %200 = vmatpush1.msra.mxu0 0.0
    %201 = vmatprep.subr.mxu0 0.0
    %202 = vmatpush1.msra.mxu0 0.0
    %203 = vmatprep.subr.mxu0 0.0
    %204 = vmatpush1.msra.mxu0 0.0
    %205 = vmatprep.subr.mxu0 0.0
    %206 = vmatpush1.msra.mxu0 0.0
    %207 = vmatprep.subr.mxu0 0.0
    %208 = vmatpush1.msra.mxu0 0.0
    %209 = vmatprep.subr.mxu0 0.0
    %210 = vmatpush1.msra.mxu0 0.0
    %211 = vmatprep.subr.mxu0 0.0
    %212 = vmatpush1.msra.mxu0 0.0
    %213 = vmatprep.subr.mxu0 %v158
    %214 = vmatpush1.msra.mxu0 %v156
    %215 = vmatprep.subr.mxu0 %v152
    %216 = vmatpush1.msra.mxu0 %v150
    %217 = vmatprep.subr.mxu0 %v146
    %218 = vmatpush1.msra.mxu0 %v144
    %219 = vmatprep.subr.mxu0 %v140
    %220 = vmatpush1.msra.mxu0 %v138
    %221 = vmatprep.subr.mxu0 0.0
    %222 = vmatpush2.msra.mxu0 0.0
    %223 = vmatprep.subr.mxu0 0.0
    %224 = vmatpush2.msra.mxu0 0.0
    %225 = vmatprep.subr.mxu0 0.0
    %226 = vmatpush2.msra.mxu0 0.0
    %227 = vmatprep.subr.mxu0 0.0
    %228 = vmatpush2.msra.mxu0 0.0
    %229 = vmatprep.subr.mxu0 0.0
    %230 = vmatpush2.msra.mxu0 0.0
    %231 = vmatprep.subr.mxu0 0.0
    %232 = vmatpush2.msra.mxu0 0.0
    %233 = vmatprep.subr.mxu0 0.0
    %234 = vmatpush2.msra.mxu0 0.0
    %235 = vmatprep.subr.mxu0 0.0
    %236 = vmatpush2.msra.mxu0 0.0
    %237 = vmatprep.subr.mxu0 0.0
    %238 = vmatpush2.msra.mxu0 0.0
    %239 = vmatprep.subr.mxu0 0.0
    %240 = vmatpush2.msra.mxu0 0.0
    %241 = vmatprep.subr.mxu0 0.0
    %242 = vmatpush2.msra.mxu0 0.0
    %243 = vmatprep.subr.mxu0 0.0
    %244 = vmatpush2.msra.mxu0 0.0
    %245 = vmatprep.subr.mxu0 0.0
    %246 = vmatpush2.msra.mxu0 0.0
    %247 = vmatprep.subr.mxu0 0.0
    %248 = vmatpush2.msra.mxu0 0.0
    %249 = vmatprep.subr.mxu0 0.0
    %250 = vmatpush2.msra.mxu0 0.0
    %251 = vmatprep.subr.mxu0 0.0
    %252 = vmatpush2.msra.mxu0 0.0
    %253 = vmatprep.mubr.f32.mxu0 0.0
    %254 = vmatmul.mubr.f32.gmra.mxu0 %v178
    %v255 = vpop.f32.mrf.mxu0
    %v256 = vadd.f32 %v169, %v255
    %v257 = vpop.f32.mrf.mxu0
    %v258 = vadd.f32 %v173, %v257
    %259 = vmatprep.mubr.f32.mxu0 0.0
    %260 = vmatmul.mubr.f32.gmra.mxu0 %v181
    %v261 = vpop.f32.mrf.mxu0
    %v262 = vadd.f32 %v169, %v261
    %v263 = vpop.f32.mrf.mxu0
    %v264 = vadd.f32 %v173, %v263
    %265 = vmatprep.mubr.f32.mxu0 0.0
    %266 = vmatmul.mubr.f32.gmra.mxu0 %v184
    %v267 = vpop.f32.mrf.mxu0
    %v268 = vadd.f32 %v169, %v267
    %v269 = vpop.f32.mrf.mxu0
    %v270 = vadd.f32 %v173, %v269
    %271 = vmatprep.mubr.f32.mxu0 0.0
    %272 = vmatmul.mubr.f32.gmra.mxu0 %v187
    %v273 = vpop.f32.mrf.mxu0
    %v274 = vadd.f32 %v169, %v273
    %v275 = vpop.f32.mrf.mxu0
    %v276 = vadd.f32 %v173, %v275
    %277 = vdwg.mxu0
    %v278 = vld [vmem:[%s4] sm:$0xff]
    %v279 = vld [vmem:[%s4 + $0x8] sm:$0xff]
    %v280 = vld [vmem:[%s4 + $0x10] sm:$0xff]
    %v281 = vld [vmem:[%s4 + $0x18] sm:$0xff]
    %v282 = vld [vmem:[%s4 + $0x20] sm:$0xff]
    %v283 = vld [vmem:[%s4 + $0x28] sm:$0xff]
    %v284 = vld [vmem:[%s4 + $0x30] sm:$0xff]
    %v285 = vld [vmem:[%s4 + $0x38] sm:$0xff]
    %v286 = vld [vmem:[%s4 + $0x40] sm:$0xff]
    %v287 = vld [vmem:[%s4 + $0x48] sm:$0xff]
    %v288 = vld [vmem:[%s4 + $0x50] sm:$0xff]
    %v289 = vld [vmem:[%s4 + $0x58] sm:$0xff]
    %v290 = vld [vmem:[%s4 + $0x60] sm:$0xff]
    %v291 = vld [vmem:[%s4 + $0x68] sm:$0xff]
    %v292 = vld [vmem:[%s4 + $0x70] sm:$0xff]
    %v293 = vld [vmem:[%s4 + $0x78] sm:$0xff]
    %v294 = vld [vmem:[%s4 + $0x80] sm:$0xff]
    %v295 = vld [vmem:[%s4 + $0x88] sm:$0xff]
    %v296 = vld [vmem:[%s4 + $0x90] sm:$0xff]
    %v297 = vld [vmem:[%s4 + $0x98] sm:$0xff]
    %v298 = vld [vmem:[%s4 + $0xa0] sm:$0xff]
    %v299 = vld [vmem:[%s4 + $0xa8] sm:$0xff]
    %v300 = vld [vmem:[%s4 + $0xb0] sm:$0xff]
    %v301 = vld [vmem:[%s4 + $0xb8] sm:$0xff]
    %v302 = vld [vmem:[%s4 + $0xc0] sm:$0xff]
    %v303 = vld [vmem:[%s4 + $0xc8] sm:$0xff]
    %v304 = vld [vmem:[%s4 + $0xd0] sm:$0xff]
    %v305 = vld [vmem:[%s4 + $0xd8] sm:$0xff]
    %v306 = vld [vmem:[%s4 + $0xe0] sm:$0xff]
    %v307 = vld [vmem:[%s4 + $0xe8] sm:$0xff]
    %v308 = vld [vmem:[%s4 + $0xf0] sm:$0xff]
    %v309 = vld [vmem:[%s4 + $0xf8] sm:$0xff]
    %310 = vmatprep.subr.mxu0 0.0
    %311 = vmatpush1.msra.mxu0 %v293
    %312 = vmatprep.subr.mxu0 0.0
    %313 = vmatpush1.msra.mxu0 %v292
    %314 = vmatprep.subr.mxu0 0.0
    %315 = vmatpush1.msra.mxu0 %v291
    %316 = vmatprep.subr.mxu0 0.0
    %317 = vmatpush1.msra.mxu0 %v290
    %318 = vmatprep.subr.mxu0 0.0
    %319 = vmatpush1.msra.mxu0 %v289
    %320 = vmatprep.subr.mxu0 0.0
    %321 = vmatpush1.msra.mxu0 %v288
    %322 = vmatprep.subr.mxu0 0.0
    %323 = vmatpush1.msra.mxu0 %v287
    %324 = vmatprep.subr.mxu0 0.0
    %325 = vmatpush1.msra.mxu0 %v286
    %326 = vmatprep.subr.mxu0 0.0
    %327 = vmatpush1.msra.mxu0 %v285
    %328 = vmatprep.subr.mxu0 0.0
    %329 = vmatpush1.msra.mxu0 %v284
    %330 = vmatprep.subr.mxu0 0.0
    %331 = vmatpush1.msra.mxu0 %v283
    %332 = vmatprep.subr.mxu0 0.0
    %333 = vmatpush1.msra.mxu0 %v282
    %334 = vmatprep.subr.mxu0 0.0
    %335 = vmatpush1.msra.mxu0 %v281
    %336 = vmatprep.subr.mxu0 0.0
    %337 = vmatpush1.msra.mxu0 %v280
    %338 = vmatprep.subr.mxu0 0.0
    %339 = vmatpush1.msra.mxu0 %v279
    %340 = vmatprep.subr.mxu0 0.0
    %341 = vmatpush1.msra.mxu0 %v278
    %342 = vmatprep.subr.mxu0 0.0
    %343 = vmatpush2.msra.mxu0 %v309
    %344 = vmatprep.subr.mxu0 0.0
    %345 = vmatpush2.msra.mxu0 %v308
    %346 = vmatprep.subr.mxu0 0.0
    %347 = vmatpush2.msra.mxu0 %v307
    %348 = vmatprep.subr.mxu0 0.0
    %349 = vmatpush2.msra.mxu0 %v306
    %350 = vmatprep.subr.mxu0 0.0
    %351 = vmatpush2.msra.mxu0 %v305
    %352 = vmatprep.subr.mxu0 0.0
    %353 = vmatpush2.msra.mxu0 %v304
    %354 = vmatprep.subr.mxu0 0.0
    %355 = vmatpush2.msra.mxu0 %v303
    %356 = vmatprep.subr.mxu0 0.0
    %357 = vmatpush2.msra.mxu0 %v302
    %358 = vmatprep.subr.mxu0 0.0
    %359 = vmatpush2.msra.mxu0 %v301
    %360 = vmatprep.subr.mxu0 0.0
    %361 = vmatpush2.msra.mxu0 %v300
    %362 = vmatprep.subr.mxu0 0.0
    %363 = vmatpush2.msra.mxu0 %v299
    %364 = vmatprep.subr.mxu0 0.0
    %365 = vmatpush2.msra.mxu0 %v298
    %366 = vmatprep.subr.mxu0 0.0
    %367 = vmatpush2.msra.mxu0 %v297
    %368 = vmatprep.subr.mxu0 0.0
    %369 = vmatpush2.msra.mxu0 %v296
    %370 = vmatprep.subr.mxu0 0.0
    %371 = vmatpush2.msra.mxu0 %v295
    %372 = vmatprep.subr.mxu0 0.0
    %373 = vmatpush2.msra.mxu0 %v294
    %374 = vmatprep.mubr.f32.mxu0 %v258
    %375 = vmatmul.mubr.f32.gmra.mxu0 %v256
    %v376 = vpop.f32.mrf.mxu0
    %v377 = vadd.f32 0.0, %v376
    %v378 = vpop.f32.mrf.mxu0
    %379 = vmatprep.mubr.f32.mxu0 %v264
    %380 = vmatmul.mubr.f32.gmra.mxu0 %v262
    %v381 = vpop.f32.mrf.mxu0
    %v382 = vadd.f32 0.0, %v381
    %v383 = vpop.f32.mrf.mxu0
    %384 = vmatprep.mubr.f32.mxu0 %v270
    %385 = vmatmul.mubr.f32.gmra.mxu0 %v268
    %v386 = vpop.f32.mrf.mxu0
    %v387 = vadd.f32 0.0, %v386
    %v388 = vpop.f32.mrf.mxu0
    %389 = vmatprep.mubr.f32.mxu0 %v276
    %390 = vmatmul.mubr.f32.gmra.mxu0 %v274
    %v391 = vpop.f32.mrf.mxu0
    %v392 = vadd.f32 0.0, %v391
    %v393 = vpop.f32.mrf.mxu0
    %394 = vdwg.mxu0
    %v395 = vsel %vm58, %v377, -inf
    %v396 = vsel %vm58, %v382, -inf
    %v397 = vmax.f32 %v395, %v396
    %v398 = vrot.slane %v397, 4
    %v399 = vmax.f32 %v397, %v398
    %v400 = vrot.slane %v399, 2
    %v401 = vmax.f32 %v399, %v400
    %v402 = vrot.slane %v401, 1
    %v403 = vmax.f32 %v401, %v402
    %v404 = vsub.f32 %v377, %v403
    %v405 = vsub.f32 %v382, %v403
    %v406 = vmul.f32 %v404, 1.442695
    %v407 = vpow.pop %v406
    %v408 = vmul.f32 %v405, 1.442695
    %v409 = vpow.pop %v408
    %v410 = vsel %vm58, %v407, 0.0
    %v411 = vsel %vm58, %v409, 0.0
    %v412 = vadd.f32 %v410, %v411
    %v413 = vrot.slane %v412, 4
    %v414 = vadd.f32 %v412, %v413
    %v415 = vrot.slane %v414, 2
    %v416 = vadd.f32 %v414, %v415
    %v417 = vrot.slane %v416, 1
    %v418 = vadd.f32 %v416, %v417
    %v419 = vrcp.pop %v418
    %v420 = vmul.f32 %v407, %v419
    %v421 = vmul.f32 %v409, %v419
    %v422 = vsel %vm58, %v387, -inf
    %v423 = vsel %vm58, %v392, -inf
    %v424 = vmax.f32 %v422, %v423
    %v425 = vrot.slane %v424, 4
    %v426 = vmax.f32 %v424, %v425
    %v427 = vrot.slane %v426, 2
    %v428 = vmax.f32 %v426, %v427
    %v429 = vrot.slane %v428, 1
    %v430 = vmax.f32 %v428, %v429
    %v431 = vsub.f32 %v387, %v430
    %v432 = vsub.f32 %v392, %v430
    %v433 = vmul.f32 %v431, 1.442695
    %v434 = vpow.pop %v433
    %v435 = vmul.f32 %v432, 1.442695
    %v436 = vpow.pop %v435
    %v437 = vsel %vm58, %v434, 0.0
    %v438 = vsel %vm58, %v436, 0.0
    %v439 = vadd.f32 %v437, %v438
    %v440 = vrot.slane %v439, 4
    %v441 = vadd.f32 %v439, %v440
    %v442 = vrot.slane %v441, 2
    %v443 = vadd.f32 %v441, %v442
    %v444 = vrot.slane %v443, 1
    %v445 = vadd.f32 %v443, %v444
    %v446 = vrcp.pop %v445
    %v447 = vmul.f32 %v434, %v446
    %v448 = vmul.f32 %v436, %v446
    %453 = vrot.lane.b32.xlu0 %v377, 120
    %v454 = vpop.permute.xlu0 %453
    %455 = vrot.lane.b32.xlu0 %v382, 120
    %v456 = vpop.permute.xlu0 %455
    %457 = vrot.lane.b32.xlu0 %v387, 120
    %v458 = vpop.permute.xlu0 %457
    %459 = vrot.lane.b32.xlu0 %v392, 120
    %v460 = vpop.permute.xlu0 %459
    %v465 = vmul.f32 %v420, %v454
    %v466 = vmul.f32 %v421, %v456
    %v467 = vmul.f32 %v447, %v458
    %v468 = vmul.f32 %v448, %v460
    %v469 = vsel %vm58, %v465, -inf
    %470 = vmax.xlane.f32.xlu0 %v469
    %v471 = vpop.xlane.xlu0 %470
    %v472 = vsel %vm58, %v466, -inf
    %473 = vmax.xlane.f32.xlu0 %v472
    %v474 = vpop.xlane.xlu0 %473
    %v475 = vsel %vm58, %v467, -inf
    %476 = vmax.xlane.f32.xlu0 %v475
    %v477 = vpop.xlane.xlu0 %476
    %v478 = vsel %vm58, %v468, -inf
    %479 = vmax.xlane.f32.xlu0 %v478
    %v480 = vpop.xlane.xlu0 %479
    %v481 = vsub.f32 %v465, %v471
    %v482 = vsub.f32 %v466, %v474
    %v483 = vsub.f32 %v467, %v477
    %v484 = vsub.f32 %v468, %v480
    %v485 = vmul.f32 %v481, 1.442695
    %v486 = vpow.pop %v485
    %v487 = vmul.f32 %v482, 1.442695
    %v488 = vpow.pop %v487
    %v489 = vmul.f32 %v483, 1.442695
    %v490 = vpow.pop %v489
    %v491 = vmul.f32 %v484, 1.442695
    %v492 = vpow.pop %v491
    %v493 = vsel %vm58, %v486, 0.0
    %494 = vadd.xlane.f32.xlu0 %v493
    %v495 = vpop.xlane.xlu0 %494
    %v496 = vsel %vm58, %v488, 0.0
    %497 = vadd.xlane.f32.xlu0 %v496
    %v498 = vpop.xlane.xlu0 %497
    %v499 = vsel %vm58, %v490, 0.0
    %500 = vadd.xlane.f32.xlu0 %v499
    %v501 = vpop.xlane.xlu0 %500
    %v502 = vsel %vm58, %v492, 0.0
    %503 = vadd.xlane.f32.xlu0 %v502
    %v504 = vpop.xlane.xlu0 %503
    %v505 = vrcp.pop %v495
    %v506 = vmul.f32 %v486, %v505
    %v507 = vrcp.pop %v498
    %v508 = vmul.f32 %v488, %v507
    %v509 = vrcp.pop %v501
    %v510 = vmul.f32 %v490, %v509
    %v511 = vrcp.pop %v504
    %v512 = vmul.f32 %v492, %v511
    %v513 = vmul.f32 %v420, %v506
    %v514 = vmul.f32 %v421, %v508
    %v515 = vmul.f32 %v447, %v510
    %v516 = vmul.f32 %v448, %v512
    %v517 = vld [vmem:[%s5] sm:$0xff]
    %v518 = vld [vmem:[%s5 + $0x8] sm:$0xff]
    %v520 = vsel %vm58, %v513, 0
    %v523 = vsel %vm58, %v514, 0
    %v526 = vsel %vm58, %v515, 0
    %v529 = vsel %vm58, %v516, 0
    %531 = vmatprep.subr.mxu0 0.0
    %532 = vmatpush1.msra.mxu0 0.0
    %533 = vmatprep.subr.mxu0 0.0
    %534 = vmatpush1.msra.mxu0 0.0
    %535 = vmatprep.subr.mxu0 0.0
    %536 = vmatpush1.msra.mxu0 0.0
    %537 = vmatprep.subr.mxu0 0.0
    %538 = vmatpush1.msra.mxu0 0.0
    %539 = vmatprep.subr.mxu0 0.0
    %540 = vmatpush1.msra.mxu0 0.0
    %541 = vmatprep.subr.mxu0 0.0
    %542 = vmatpush1.msra.mxu0 0.0
    %543 = vmatprep.subr.mxu0 0.0
    %544 = vmatpush1.msra.mxu0 0.0
    %545 = vmatprep.subr.mxu0 0.0
    %546 = vmatpush1.msra.mxu0 0.0
    %547 = vmatprep.subr.mxu0 0.0
    %548 = vmatpush1.msra.mxu0 0.0
    %549 = vmatprep.subr.mxu0 0.0
    %550 = vmatpush1.msra.mxu0 0.0
    %551 = vmatprep.subr.mxu0 0.0
    %552 = vmatpush1.msra.mxu0 0.0
    %553 = vmatprep.subr.mxu0 0.0
    %554 = vmatpush1.msra.mxu0 0.0
    %555 = vmatprep.subr.mxu0 0.0
    %556 = vmatpush1.msra.mxu0 0.0
    %557 = vmatprep.subr.mxu0 0.0
    %558 = vmatpush1.msra.mxu0 0.0
    %559 = vmatprep.subr.mxu0 0.0
    %560 = vmatpush1.msra.mxu0 0.0
    %561 = vmatprep.subr.mxu0 %v518
    %562 = vmatpush1.msra.mxu0 %v517
    %563 = vmatprep.subr.mxu0 0.0
    %564 = vmatpush2.msra.mxu0 0.0
    %565 = vmatprep.subr.mxu0 0.0
    %566 = vmatpush2.msra.mxu0 0.0
    %567 = vmatprep.subr.mxu0 0.0
    %568 = vmatpush2.msra.mxu0 0.0
    %569 = vmatprep.subr.mxu0 0.0
    %570 = vmatpush2.msra.mxu0 0.0
    %571 = vmatprep.subr.mxu0 0.0
    %572 = vmatpush2.msra.mxu0 0.0
    %573 = vmatprep.subr.mxu0 0.0
    %574 = vmatpush2.msra.mxu0 0.0
    %575 = vmatprep.subr.mxu0 0.0
    %576 = vmatpush2.msra.mxu0 0.0
    %577 = vmatprep.subr.mxu0 0.0
    %578 = vmatpush2.msra.mxu0 0.0
    %579 = vmatprep.subr.mxu0 0.0
    %580 = vmatpush2.msra.mxu0 0.0
    %581 = vmatprep.subr.mxu0 0.0
    %582 = vmatpush2.msra.mxu0 0.0
    %583 = vmatprep.subr.mxu0 0.0
    %584 = vmatpush2.msra.mxu0 0.0
    %585 = vmatprep.subr.mxu0 0.0
    %586 = vmatpush2.msra.mxu0 0.0
    %587 = vmatprep.subr.mxu0 0.0
    %588 = vmatpush2.msra.mxu0 0.0
    %589 = vmatprep.subr.mxu0 0.0
    %590 = vmatpush2.msra.mxu0 0.0
    %591 = vmatprep.subr.mxu0 0.0
    %592 = vmatpush2.msra.mxu0 0.0
    %593 = vmatprep.subr.mxu0 0.0
    %594 = vmatpush2.msra.mxu0 0.0
    %595 = vmatprep.mubr.f32.mxu0 0.0
    %596 = vmatmul.mubr.f32.gmra.mxu0 %v520
    %v597 = vpop.f32.mrf.mxu0
    %v598 = vadd.f32 0.0, %v597
    %v599 = vpop.f32.mrf.mxu0
    %v600 = vadd.f32 0.0, %v599
    %601 = vmatprep.mubr.f32.mxu0 0.0
    %602 = vmatmul.mubr.f32.gmra.mxu0 %v523
    %v603 = vpop.f32.mrf.mxu0
    %v604 = vadd.f32 0.0, %v603
    %v605 = vpop.f32.mrf.mxu0
    %v606 = vadd.f32 0.0, %v605
    %607 = vmatprep.mubr.f32.mxu0 0.0
    %608 = vmatmul.mubr.f32.gmra.mxu0 %v526
    %v609 = vpop.f32.mrf.mxu0
    %v610 = vadd.f32 0.0, %v609
    %v611 = vpop.f32.mrf.mxu0
    %v612 = vadd.f32 0.0, %v611
    %613 = vmatprep.mubr.f32.mxu0 0.0
    %614 = vmatmul.mubr.f32.gmra.mxu0 %v529
    %v615 = vpop.f32.mrf.mxu0
    %v616 = vadd.f32 0.0, %v615
    %v617 = vpop.f32.mrf.mxu0
    %v618 = vadd.f32 0.0, %v617
    %619 = vdwg.mxu0
    %v620 = vmul.f32 %v256, %v598
    %v621 = vmul.f32 %v258, %v600
    %v622 = vmul.f32 %v262, %v604
    %v623 = vmul.f32 %v264, %v606
    %v624 = vmul.f32 %v268, %v610
    %v625 = vmul.f32 %v270, %v612
    %v626 = vmul.f32 %v274, %v616
    %v627 = vmul.f32 %v276, %v618
    %v628 = vld [vmem:[#allocation2] sm:$0xff]
    %v629 = vld [vmem:[#allocation2 + $0x8] sm:$0xff]
    %v630 = vld [vmem:[#allocation2 + $0x10] sm:$0xff]
    %v631 = vld [vmem:[#allocation2 + $0x18] sm:$0xff]
    %v632 = vld [vmem:[#allocation2 + $0x20] sm:$0xff]
    %v633 = vld [vmem:[#allocation2 + $0x28] sm:$0xff]
    %v634 = vld [vmem:[#allocation2 + $0x30] sm:$0xff]
    %v635 = vld [vmem:[#allocation2 + $0x38] sm:$0xff]
    %v636 = vld [vmem:[#allocation2 + $0x40] sm:$0xff]
    %v637 = vld [vmem:[#allocation2 + $0x48] sm:$0xff]
    %v638 = vld [vmem:[#allocation2 + $0x50] sm:$0xff]
    %v639 = vld [vmem:[#allocation2 + $0x58] sm:$0xff]
    %v640 = vld [vmem:[#allocation2 + $0x60] sm:$0xff]
    %v641 = vld [vmem:[#allocation2 + $0x68] sm:$0xff]
    %v642 = vld [vmem:[#allocation2 + $0x70] sm:$0xff]
    %v643 = vld [vmem:[#allocation2 + $0x78] sm:$0xff]
    %v644 = vld [vmem:[#allocation2 + $0x80] sm:$0xff]
    %v645 = vld [vmem:[#allocation2 + $0x88] sm:$0xff]
    %v646 = vld [vmem:[#allocation2 + $0x90] sm:$0xff]
    %v647 = vld [vmem:[#allocation2 + $0x98] sm:$0xff]
    %v648 = vld [vmem:[#allocation2 + $0xa0] sm:$0xff]
    %v649 = vld [vmem:[#allocation2 + $0xa8] sm:$0xff]
    %v650 = vld [vmem:[#allocation2 + $0xb0] sm:$0xff]
    %v651 = vld [vmem:[#allocation2 + $0xb8] sm:$0xff]
    %v652 = vld [vmem:[#allocation2 + $0xc0] sm:$0xff]
    %v653 = vld [vmem:[#allocation2 + $0xc8] sm:$0xff]
    %v654 = vld [vmem:[#allocation2 + $0xd0] sm:$0xff]
    %v655 = vld [vmem:[#allocation2 + $0xd8] sm:$0xff]
    %v656 = vld [vmem:[#allocation2 + $0xe0] sm:$0xff]
    %v657 = vld [vmem:[#allocation2 + $0xe8] sm:$0xff]
    %v658 = vld [vmem:[#allocation2 + $0xf0] sm:$0xff]
    %v659 = vld [vmem:[#allocation2 + $0xf8] sm:$0xff]
    %v660 = vld [vmem:[#allocation2 + $0x100] sm:$0xff]
    %v661 = vld [vmem:[#allocation2 + $0x108] sm:$0xff]
    %v662 = vld [vmem:[#allocation2 + $0x110] sm:$0xff]
    %v663 = vld [vmem:[#allocation2 + $0x118] sm:$0xff]
    %v664 = vld [vmem:[#allocation2 + $0x120] sm:$0xff]
    %v665 = vld [vmem:[#allocation2 + $0x128] sm:$0xff]
    %v666 = vld [vmem:[#allocation2 + $0x130] sm:$0xff]
    %v667 = vld [vmem:[#allocation2 + $0x138] sm:$0xff]
    %v668 = vld [vmem:[#allocation2 + $0x140] sm:$0xff]
    %v669 = vld [vmem:[#allocation2 + $0x148] sm:$0xff]
    %v670 = vld [vmem:[#allocation2 + $0x150] sm:$0xff]
    %v671 = vld [vmem:[#allocation2 + $0x158] sm:$0xff]
    %v672 = vld [vmem:[#allocation2 + $0x160] sm:$0xff]
    %v673 = vld [vmem:[#allocation2 + $0x168] sm:$0xff]
    %v674 = vld [vmem:[#allocation2 + $0x170] sm:$0xff]
    %v675 = vld [vmem:[#allocation2 + $0x178] sm:$0xff]
    %v676 = vld [vmem:[#allocation2 + $0x180] sm:$0xff]
    %v677 = vld [vmem:[#allocation2 + $0x188] sm:$0xff]
    %v678 = vld [vmem:[#allocation2 + $0x190] sm:$0xff]
    %v679 = vld [vmem:[#allocation2 + $0x198] sm:$0xff]
    %v680 = vld [vmem:[#allocation2 + $0x1a0] sm:$0xff]
    %v681 = vld [vmem:[#allocation2 + $0x1a8] sm:$0xff]
    %v682 = vld [vmem:[#allocation2 + $0x1b0] sm:$0xff]
    %v683 = vld [vmem:[#allocation2 + $0x1b8] sm:$0xff]
    %v684 = vld [vmem:[#allocation2 + $0x1c0] sm:$0xff]
    %v685 = vld [vmem:[#allocation2 + $0x1c8] sm:$0xff]
    %v686 = vld [vmem:[#allocation2 + $0x1d0] sm:$0xff]
    %v687 = vld [vmem:[#allocation2 + $0x1d8] sm:$0xff]
    %v688 = vld [vmem:[#allocation2 + $0x1e0] sm:$0xff]
    %v689 = vld [vmem:[#allocation2 + $0x1e8] sm:$0xff]
    %v690 = vld [vmem:[#allocation2 + $0x1f0] sm:$0xff]
    %v691 = vld [vmem:[#allocation2 + $0x1f8] sm:$0xff]
    %v692 = vld [vmem:[#allocation2 + $0x200] sm:$0xff]
    %v693 = vld [vmem:[#allocation2 + $0x208] sm:$0xff]
    %v694 = vld [vmem:[#allocation2 + $0x210] sm:$0xff]
    %v695 = vld [vmem:[#allocation2 + $0x218] sm:$0xff]
    %v696 = vld [vmem:[#allocation2 + $0x220] sm:$0xff]
    %v697 = vld [vmem:[#allocation2 + $0x228] sm:$0xff]
    %v698 = vld [vmem:[#allocation2 + $0x230] sm:$0xff]
    %v699 = vld [vmem:[#allocation2 + $0x238] sm:$0xff]
    %v700 = vld [vmem:[#allocation2 + $0x240] sm:$0xff]
    %v701 = vld [vmem:[#allocation2 + $0x248] sm:$0xff]
    %v702 = vld [vmem:[#allocation2 + $0x250] sm:$0xff]
    %v703 = vld [vmem:[#allocation2 + $0x258] sm:$0xff]
    %v704 = vld [vmem:[#allocation2 + $0x260] sm:$0xff]
    %v705 = vld [vmem:[#allocation2 + $0x268] sm:$0xff]
    %v706 = vld [vmem:[#allocation2 + $0x270] sm:$0xff]
    %v707 = vld [vmem:[#allocation2 + $0x278] sm:$0xff]
    %v708 = vld [vmem:[#allocation2 + $0x280] sm:$0xff]
    %v709 = vld [vmem:[#allocation2 + $0x288] sm:$0xff]
    %v710 = vld [vmem:[#allocation2 + $0x290] sm:$0xff]
    %v711 = vld [vmem:[#allocation2 + $0x298] sm:$0xff]
    %v712 = vld [vmem:[#allocation2 + $0x2a0] sm:$0xff]
    %v713 = vld [vmem:[#allocation2 + $0x2a8] sm:$0xff]
    %v714 = vld [vmem:[#allocation2 + $0x2b0] sm:$0xff]
    %v715 = vld [vmem:[#allocation2 + $0x2b8] sm:$0xff]
    %v716 = vld [vmem:[#allocation2 + $0x2c0] sm:$0xff]
    %v717 = vld [vmem:[#allocation2 + $0x2c8] sm:$0xff]
    %v718 = vld [vmem:[#allocation2 + $0x2d0] sm:$0xff]
    %v719 = vld [vmem:[#allocation2 + $0x2d8] sm:$0xff]
    %v720 = vld [vmem:[#allocation2 + $0x2e0] sm:$0xff]
    %v721 = vld [vmem:[#allocation2 + $0x2e8] sm:$0xff]
    %v722 = vld [vmem:[#allocation2 + $0x2f0] sm:$0xff]
    %v723 = vld [vmem:[#allocation2 + $0x2f8] sm:$0xff]
    %v724 = vld [vmem:[#allocation2 + $0x300] sm:$0xff]
    %v725 = vld [vmem:[#allocation2 + $0x308] sm:$0xff]
    %v726 = vld [vmem:[#allocation2 + $0x310] sm:$0xff]
    %v727 = vld [vmem:[#allocation2 + $0x318] sm:$0xff]
    %v728 = vld [vmem:[#allocation2 + $0x320] sm:$0xff]
    %v729 = vld [vmem:[#allocation2 + $0x328] sm:$0xff]
    %v730 = vld [vmem:[#allocation2 + $0x330] sm:$0xff]
    %v731 = vld [vmem:[#allocation2 + $0x338] sm:$0xff]
    %v732 = vld [vmem:[#allocation2 + $0x340] sm:$0xff]
    %v733 = vld [vmem:[#allocation2 + $0x348] sm:$0xff]
    %v734 = vld [vmem:[#allocation2 + $0x350] sm:$0xff]
    %v735 = vld [vmem:[#allocation2 + $0x358] sm:$0xff]
    %v736 = vld [vmem:[#allocation2 + $0x360] sm:$0xff]
    %v737 = vld [vmem:[#allocation2 + $0x368] sm:$0xff]
    %v738 = vld [vmem:[#allocation2 + $0x370] sm:$0xff]
    %v739 = vld [vmem:[#allocation2 + $0x378] sm:$0xff]
    %v740 = vld [vmem:[#allocation2 + $0x380] sm:$0xff]
    %v741 = vld [vmem:[#allocation2 + $0x388] sm:$0xff]
    %v742 = vld [vmem:[#allocation2 + $0x390] sm:$0xff]
    %v743 = vld [vmem:[#allocation2 + $0x398] sm:$0xff]
    %v744 = vld [vmem:[#allocation2 + $0x3a0] sm:$0xff]
    %v745 = vld [vmem:[#allocation2 + $0x3a8] sm:$0xff]
    %v746 = vld [vmem:[#allocation2 + $0x3b0] sm:$0xff]
    %v747 = vld [vmem:[#allocation2 + $0x3b8] sm:$0xff]
    %v748 = vld [vmem:[#allocation2 + $0x3c0] sm:$0xff]
    %v749 = vld [vmem:[#allocation2 + $0x3c8] sm:$0xff]
    %v750 = vld [vmem:[#allocation2 + $0x3d0] sm:$0xff]
    %v751 = vld [vmem:[#allocation2 + $0x3d8] sm:$0xff]
    %v752 = vld [vmem:[#allocation2 + $0x3e0] sm:$0xff]
    %v753 = vld [vmem:[#allocation2 + $0x3e8] sm:$0xff]
    %v754 = vld [vmem:[#allocation2 + $0x3f0] sm:$0xff]
    %v755 = vld [vmem:[#allocation2 + $0x3f8] sm:$0xff]
    %v756 = vld [vmem:[#allocation2 + $0x400] sm:$0xff]
    %v757 = vld [vmem:[#allocation2 + $0x408] sm:$0xff]
    %v758 = vld [vmem:[#allocation2 + $0x410] sm:$0xff]
    %v759 = vld [vmem:[#allocation2 + $0x418] sm:$0xff]
    %v760 = vld [vmem:[#allocation2 + $0x420] sm:$0xff]
    %v761 = vld [vmem:[#allocation2 + $0x428] sm:$0xff]
    %v762 = vld [vmem:[#allocation2 + $0x430] sm:$0xff]
    %v763 = vld [vmem:[#allocation2 + $0x438] sm:$0xff]
    %v764 = vld [vmem:[#allocation2 + $0x440] sm:$0xff]
    %v765 = vld [vmem:[#allocation2 + $0x448] sm:$0xff]
    %v766 = vld [vmem:[#allocation2 + $0x450] sm:$0xff]
    %v767 = vld [vmem:[#allocation2 + $0x458] sm:$0xff]
    %v768 = vld [vmem:[#allocation2 + $0x460] sm:$0xff]
    %v769 = vld [vmem:[#allocation2 + $0x468] sm:$0xff]
    %v770 = vld [vmem:[#allocation2 + $0x470] sm:$0xff]
    %v771 = vld [vmem:[#allocation2 + $0x478] sm:$0xff]
    %v772 = vld [vmem:[#allocation2 + $0x480] sm:$0xff]
    %v773 = vld [vmem:[#allocation2 + $0x488] sm:$0xff]
    %v774 = vld [vmem:[#allocation2 + $0x490] sm:$0xff]
    %v775 = vld [vmem:[#allocation2 + $0x498] sm:$0xff]
    %v776 = vld [vmem:[#allocation2 + $0x4a0] sm:$0xff]
    %v777 = vld [vmem:[#allocation2 + $0x4a8] sm:$0xff]
    %v778 = vld [vmem:[#allocation2 + $0x4b0] sm:$0xff]
    %v779 = vld [vmem:[#allocation2 + $0x4b8] sm:$0xff]
    %v780 = vld [vmem:[#allocation2 + $0x4c0] sm:$0xff]
    %v781 = vld [vmem:[#allocation2 + $0x4c8] sm:$0xff]
    %v782 = vld [vmem:[#allocation2 + $0x4d0] sm:$0xff]
    %v783 = vld [vmem:[#allocation2 + $0x4d8] sm:$0xff]
    %v784 = vld [vmem:[#allocation2 + $0x4e0] sm:$0xff]
    %v785 = vld [vmem:[#allocation2 + $0x4e8] sm:$0xff]
    %v786 = vld [vmem:[#allocation2 + $0x4f0] sm:$0xff]
    %v787 = vld [vmem:[#allocation2 + $0x4f8] sm:$0xff]
    %v788 = vld [vmem:[#allocation2 + $0x500] sm:$0xff]
    %v789 = vld [vmem:[#allocation2 + $0x508] sm:$0xff]
    %v790 = vld [vmem:[#allocation2 + $0x510] sm:$0xff]
    %v791 = vld [vmem:[#allocation2 + $0x518] sm:$0xff]
    %v792 = vld [vmem:[#allocation2 + $0x520] sm:$0xff]
    %v793 = vld [vmem:[#allocation2 + $0x528] sm:$0xff]
    %v794 = vld [vmem:[#allocation2 + $0x530] sm:$0xff]
    %v795 = vld [vmem:[#allocation2 + $0x538] sm:$0xff]
    %v796 = vld [vmem:[#allocation2 + $0x540] sm:$0xff]
    %v797 = vld [vmem:[#allocation2 + $0x548] sm:$0xff]
    %v798 = vld [vmem:[#allocation2 + $0x550] sm:$0xff]
    %v799 = vld [vmem:[#allocation2 + $0x558] sm:$0xff]
    %v800 = vld [vmem:[#allocation2 + $0x560] sm:$0xff]
    %v801 = vld [vmem:[#allocation2 + $0x568] sm:$0xff]
    %v802 = vld [vmem:[#allocation2 + $0x570] sm:$0xff]
    %v803 = vld [vmem:[#allocation2 + $0x578] sm:$0xff]
    %v804 = vld [vmem:[#allocation2 + $0x580] sm:$0xff]
    %v805 = vld [vmem:[#allocation2 + $0x588] sm:$0xff]
    %v806 = vld [vmem:[#allocation2 + $0x590] sm:$0xff]
    %v807 = vld [vmem:[#allocation2 + $0x598] sm:$0xff]
    %v808 = vld [vmem:[#allocation2 + $0x5a0] sm:$0xff]
    %v809 = vld [vmem:[#allocation2 + $0x5a8] sm:$0xff]
    %v810 = vld [vmem:[#allocation2 + $0x5b0] sm:$0xff]
    %v811 = vld [vmem:[#allocation2 + $0x5b8] sm:$0xff]
    %v812 = vld [vmem:[#allocation2 + $0x5c0] sm:$0xff]
    %v813 = vld [vmem:[#allocation2 + $0x5c8] sm:$0xff]
    %v814 = vld [vmem:[#allocation2 + $0x5d0] sm:$0xff]
    %v815 = vld [vmem:[#allocation2 + $0x5d8] sm:$0xff]
    %v816 = vld [vmem:[#allocation2 + $0x5e0] sm:$0xff]
    %v817 = vld [vmem:[#allocation2 + $0x5e8] sm:$0xff]
    %v818 = vld [vmem:[#allocation2 + $0x5f0] sm:$0xff]
    %v819 = vld [vmem:[#allocation2 + $0x5f8] sm:$0xff]
    %v820 = vld [vmem:[#allocation2 + $0x600] sm:$0xff]
    %v821 = vld [vmem:[#allocation2 + $0x608] sm:$0xff]
    %v822 = vld [vmem:[#allocation2 + $0x610] sm:$0xff]
    %v823 = vld [vmem:[#allocation2 + $0x618] sm:$0xff]
    %v824 = vld [vmem:[#allocation2 + $0x620] sm:$0xff]
    %v825 = vld [vmem:[#allocation2 + $0x628] sm:$0xff]
    %v826 = vld [vmem:[#allocation2 + $0x630] sm:$0xff]
    %v827 = vld [vmem:[#allocation2 + $0x638] sm:$0xff]
    %v828 = vld [vmem:[#allocation2 + $0x640] sm:$0xff]
    %v829 = vld [vmem:[#allocation2 + $0x648] sm:$0xff]
    %v830 = vld [vmem:[#allocation2 + $0x650] sm:$0xff]
    %v831 = vld [vmem:[#allocation2 + $0x658] sm:$0xff]
    %v832 = vld [vmem:[#allocation2 + $0x660] sm:$0xff]
    %v833 = vld [vmem:[#allocation2 + $0x668] sm:$0xff]
    %v834 = vld [vmem:[#allocation2 + $0x670] sm:$0xff]
    %v835 = vld [vmem:[#allocation2 + $0x678] sm:$0xff]
    %v836 = vld [vmem:[#allocation2 + $0x680] sm:$0xff]
    %v837 = vld [vmem:[#allocation2 + $0x688] sm:$0xff]
    %v838 = vld [vmem:[#allocation2 + $0x690] sm:$0xff]
    %v839 = vld [vmem:[#allocation2 + $0x698] sm:$0xff]
    %v840 = vld [vmem:[#allocation2 + $0x6a0] sm:$0xff]
    %v841 = vld [vmem:[#allocation2 + $0x6a8] sm:$0xff]
    %v842 = vld [vmem:[#allocation2 + $0x6b0] sm:$0xff]
    %v843 = vld [vmem:[#allocation2 + $0x6b8] sm:$0xff]
    %v844 = vld [vmem:[#allocation2 + $0x6c0] sm:$0xff]
    %v845 = vld [vmem:[#allocation2 + $0x6c8] sm:$0xff]
    %v846 = vld [vmem:[#allocation2 + $0x6d0] sm:$0xff]
    %v847 = vld [vmem:[#allocation2 + $0x6d8] sm:$0xff]
    %v848 = vld [vmem:[#allocation2 + $0x6e0] sm:$0xff]
    %v849 = vld [vmem:[#allocation2 + $0x6e8] sm:$0xff]
    %v850 = vld [vmem:[#allocation2 + $0x6f0] sm:$0xff]
    %v851 = vld [vmem:[#allocation2 + $0x6f8] sm:$0xff]
    %v852 = vld [vmem:[#allocation2 + $0x700] sm:$0xff]
    %v853 = vld [vmem:[#allocation2 + $0x708] sm:$0xff]
    %v854 = vld [vmem:[#allocation2 + $0x710] sm:$0xff]
    %v855 = vld [vmem:[#allocation2 + $0x718] sm:$0xff]
    %v856 = vld [vmem:[#allocation2 + $0x720] sm:$0xff]
    %v857 = vld [vmem:[#allocation2 + $0x728] sm:$0xff]
    %v858 = vld [vmem:[#allocation2 + $0x730] sm:$0xff]
    %v859 = vld [vmem:[#allocation2 + $0x738] sm:$0xff]
    %v860 = vld [vmem:[#allocation2 + $0x740] sm:$0xff]
    %v861 = vld [vmem:[#allocation2 + $0x748] sm:$0xff]
    %v862 = vld [vmem:[#allocation2 + $0x750] sm:$0xff]
    %v863 = vld [vmem:[#allocation2 + $0x758] sm:$0xff]
    %v864 = vld [vmem:[#allocation2 + $0x760] sm:$0xff]
    %v865 = vld [vmem:[#allocation2 + $0x768] sm:$0xff]
    %v866 = vld [vmem:[#allocation2 + $0x770] sm:$0xff]
    %v867 = vld [vmem:[#allocation2 + $0x778] sm:$0xff]
    %v868 = vld [vmem:[#allocation2 + $0x780] sm:$0xff]
    %v869 = vld [vmem:[#allocation2 + $0x788] sm:$0xff]
    %v870 = vld [vmem:[#allocation2 + $0x790] sm:$0xff]
    %v871 = vld [vmem:[#allocation2 + $0x798] sm:$0xff]
    %v872 = vld [vmem:[#allocation2 + $0x7a0] sm:$0xff]
    %v873 = vld [vmem:[#allocation2 + $0x7a8] sm:$0xff]
    %v874 = vld [vmem:[#allocation2 + $0x7b0] sm:$0xff]
    %v875 = vld [vmem:[#allocation2 + $0x7b8] sm:$0xff]
    %v876 = vld [vmem:[#allocation2 + $0x7c0] sm:$0xff]
    %v877 = vld [vmem:[#allocation2 + $0x7c8] sm:$0xff]
    %v878 = vld [vmem:[#allocation2 + $0x7d0] sm:$0xff]
    %v879 = vld [vmem:[#allocation2 + $0x7d8] sm:$0xff]
    %v880 = vld [vmem:[#allocation2 + $0x7e0] sm:$0xff]
    %v881 = vld [vmem:[#allocation2 + $0x7e8] sm:$0xff]
    %v882 = vld [vmem:[#allocation2 + $0x7f0] sm:$0xff]
    %v883 = vld [vmem:[#allocation2 + $0x7f8] sm:$0xff]
    %884 = vmatprep.subr.mxu0 %v749
    %885 = vmatpush1.msra.mxu0 %v748
    %886 = vmatprep.subr.mxu0 %v741
    %887 = vmatpush1.msra.mxu0 %v740
    %888 = vmatprep.subr.mxu0 %v733
    %889 = vmatpush1.msra.mxu0 %v732
    %890 = vmatprep.subr.mxu0 %v725
    %891 = vmatpush1.msra.mxu0 %v724
    %892 = vmatprep.subr.mxu0 %v717
    %893 = vmatpush1.msra.mxu0 %v716
    %894 = vmatprep.subr.mxu0 %v709
    %895 = vmatpush1.msra.mxu0 %v708
    %896 = vmatprep.subr.mxu0 %v701
    %897 = vmatpush1.msra.mxu0 %v700
    %898 = vmatprep.subr.mxu0 %v693
    %899 = vmatpush1.msra.mxu0 %v692
    %900 = vmatprep.subr.mxu0 %v685
    %901 = vmatpush1.msra.mxu0 %v684
    %902 = vmatprep.subr.mxu0 %v677
    %903 = vmatpush1.msra.mxu0 %v676
    %904 = vmatprep.subr.mxu0 %v669
    %905 = vmatpush1.msra.mxu0 %v668
    %906 = vmatprep.subr.mxu0 %v661
    %907 = vmatpush1.msra.mxu0 %v660
    %908 = vmatprep.subr.mxu0 %v653
    %909 = vmatpush1.msra.mxu0 %v652
    %910 = vmatprep.subr.mxu0 %v645
    %911 = vmatpush1.msra.mxu0 %v644
    %912 = vmatprep.subr.mxu0 %v637
    %913 = vmatpush1.msra.mxu0 %v636
    %914 = vmatprep.subr.mxu0 %v629
    %915 = vmatpush1.msra.mxu0 %v628
    %916 = vmatprep.subr.mxu0 %v877
    %917 = vmatpush2.msra.mxu0 %v876
    %918 = vmatprep.subr.mxu0 %v869
    %919 = vmatpush2.msra.mxu0 %v868
    %920 = vmatprep.subr.mxu0 %v861
    %921 = vmatpush2.msra.mxu0 %v860
    %922 = vmatprep.subr.mxu0 %v853
    %923 = vmatpush2.msra.mxu0 %v852
    %924 = vmatprep.subr.mxu0 %v845
    %925 = vmatpush2.msra.mxu0 %v844
    %926 = vmatprep.subr.mxu0 %v837
    %927 = vmatpush2.msra.mxu0 %v836
    %928 = vmatprep.subr.mxu0 %v829
    %929 = vmatpush2.msra.mxu0 %v828
    %930 = vmatprep.subr.mxu0 %v821
    %931 = vmatpush2.msra.mxu0 %v820
    %932 = vmatprep.subr.mxu0 %v813
    %933 = vmatpush2.msra.mxu0 %v812
    %934 = vmatprep.subr.mxu0 %v805
    %935 = vmatpush2.msra.mxu0 %v804
    %936 = vmatprep.subr.mxu0 %v797
    %937 = vmatpush2.msra.mxu0 %v796
    %938 = vmatprep.subr.mxu0 %v789
    %939 = vmatpush2.msra.mxu0 %v788
    %940 = vmatprep.subr.mxu0 %v781
    %941 = vmatpush2.msra.mxu0 %v780
    %942 = vmatprep.subr.mxu0 %v773
    %943 = vmatpush2.msra.mxu0 %v772
    %944 = vmatprep.subr.mxu0 %v765
    %945 = vmatpush2.msra.mxu0 %v764
    %946 = vmatprep.subr.mxu0 %v757
    %947 = vmatpush2.msra.mxu0 %v756
    %948 = vmatprep.mubr.f32.mxu0 %v621
    %949 = vmatmul.mubr.f32.gmra.mxu0 %v620
    %v950 = vpop.f32.mrf.mxu0
    %v951 = vadd.f32 0.0, %v950
    %v952 = vpop.f32.mrf.mxu0
    %v953 = vadd.f32 0.0, %v952
    %954 = vmatprep.mubr.f32.mxu0 %v623
    %955 = vmatmul.mubr.f32.gmra.mxu0 %v622
    %v956 = vpop.f32.mrf.mxu0
    %v957 = vadd.f32 0.0, %v956
    %v958 = vpop.f32.mrf.mxu0
    %v959 = vadd.f32 0.0, %v958
    %960 = vmatprep.mubr.f32.mxu0 %v625
    %961 = vmatmul.mubr.f32.gmra.mxu0 %v624
    %v962 = vpop.f32.mrf.mxu0
    %v963 = vadd.f32 0.0, %v962
    %v964 = vpop.f32.mrf.mxu0
    %v965 = vadd.f32 0.0, %v964
    %966 = vmatprep.mubr.f32.mxu0 %v627
    %967 = vmatmul.mubr.f32.gmra.mxu0 %v626
    %v968 = vpop.f32.mrf.mxu0
    %v969 = vadd.f32 0.0, %v968
    %v970 = vpop.f32.mrf.mxu0
    %v971 = vadd.f32 0.0, %v970
    %972 = vdwg.mxu0
    %973 = vmatprep.subr.mxu0 %v751
    %974 = vmatpush1.msra.mxu0 %v750
    %975 = vmatprep.subr.mxu0 %v743
    %976 = vmatpush1.msra.mxu0 %v742
    %977 = vmatprep.subr.mxu0 %v735
    %978 = vmatpush1.msra.mxu0 %v734
    %979 = vmatprep.subr.mxu0 %v727
    %980 = vmatpush1.msra.mxu0 %v726
    %981 = vmatprep.subr.mxu0 %v719
    %982 = vmatpush1.msra.mxu0 %v718
    %983 = vmatprep.subr.mxu0 %v711
    %984 = vmatpush1.msra.mxu0 %v710
    %985 = vmatprep.subr.mxu0 %v703
    %986 = vmatpush1.msra.mxu0 %v702
    %987 = vmatprep.subr.mxu0 %v695
    %988 = vmatpush1.msra.mxu0 %v694
    %989 = vmatprep.subr.mxu0 %v687
    %990 = vmatpush1.msra.mxu0 %v686
    %991 = vmatprep.subr.mxu0 %v679
    %992 = vmatpush1.msra.mxu0 %v678
    %993 = vmatprep.subr.mxu0 %v671
    %994 = vmatpush1.msra.mxu0 %v670
    %995 = vmatprep.subr.mxu0 %v663
    %996 = vmatpush1.msra.mxu0 %v662
    %997 = vmatprep.subr.mxu0 %v655
    %998 = vmatpush1.msra.mxu0 %v654
    %999 = vmatprep.subr.mxu0 %v647
    %1000 = vmatpush1.msra.mxu0 %v646
    %1001 = vmatprep.subr.mxu0 %v639
    %1002 = vmatpush1.msra.mxu0 %v638
    %1003 = vmatprep.subr.mxu0 %v631
    %1004 = vmatpush1.msra.mxu0 %v630
    %1005 = vmatprep.subr.mxu0 %v879
    %1006 = vmatpush2.msra.mxu0 %v878
    %1007 = vmatprep.subr.mxu0 %v871
    %1008 = vmatpush2.msra.mxu0 %v870
    %1009 = vmatprep.subr.mxu0 %v863
    %1010 = vmatpush2.msra.mxu0 %v862
    %1011 = vmatprep.subr.mxu0 %v855
    %1012 = vmatpush2.msra.mxu0 %v854
    %1013 = vmatprep.subr.mxu0 %v847
    %1014 = vmatpush2.msra.mxu0 %v846
    %1015 = vmatprep.subr.mxu0 %v839
    %1016 = vmatpush2.msra.mxu0 %v838
    %1017 = vmatprep.subr.mxu0 %v831
    %1018 = vmatpush2.msra.mxu0 %v830
    %1019 = vmatprep.subr.mxu0 %v823
    %1020 = vmatpush2.msra.mxu0 %v822
    %1021 = vmatprep.subr.mxu0 %v815
    %1022 = vmatpush2.msra.mxu0 %v814
    %1023 = vmatprep.subr.mxu0 %v807
    %1024 = vmatpush2.msra.mxu0 %v806
    %1025 = vmatprep.subr.mxu0 %v799
    %1026 = vmatpush2.msra.mxu0 %v798
    %1027 = vmatprep.subr.mxu0 %v791
    %1028 = vmatpush2.msra.mxu0 %v790
    %1029 = vmatprep.subr.mxu0 %v783
    %1030 = vmatpush2.msra.mxu0 %v782
    %1031 = vmatprep.subr.mxu0 %v775
    %1032 = vmatpush2.msra.mxu0 %v774
    %1033 = vmatprep.subr.mxu0 %v767
    %1034 = vmatpush2.msra.mxu0 %v766
    %1035 = vmatprep.subr.mxu0 %v759
    %1036 = vmatpush2.msra.mxu0 %v758
    %1037 = vmatprep.mubr.f32.mxu0 %v621
    %1038 = vmatmul.mubr.f32.gmra.mxu0 %v620
    %v1039 = vpop.f32.mrf.mxu0
    %v1040 = vadd.f32 0.0, %v1039
    %v1041 = vpop.f32.mrf.mxu0
    %v1042 = vadd.f32 0.0, %v1041
    %1043 = vmatprep.mubr.f32.mxu0 %v623
    %1044 = vmatmul.mubr.f32.gmra.mxu0 %v622
    %v1045 = vpop.f32.mrf.mxu0
    %v1046 = vadd.f32 0.0, %v1045
    %v1047 = vpop.f32.mrf.mxu0
    %v1048 = vadd.f32 0.0, %v1047
    %1049 = vmatprep.mubr.f32.mxu0 %v625
    %1050 = vmatmul.mubr.f32.gmra.mxu0 %v624
    %v1051 = vpop.f32.mrf.mxu0
    %v1052 = vadd.f32 0.0, %v1051
    %v1053 = vpop.f32.mrf.mxu0
    %v1054 = vadd.f32 0.0, %v1053
    %1055 = vmatprep.mubr.f32.mxu0 %v627
    %1056 = vmatmul.mubr.f32.gmra.mxu0 %v626
    %v1057 = vpop.f32.mrf.mxu0
    %v1058 = vadd.f32 0.0, %v1057
    %v1059 = vpop.f32.mrf.mxu0
    %v1060 = vadd.f32 0.0, %v1059
    %1061 = vdwg.mxu0
    %1062 = vmatprep.subr.mxu0 %v753
    %1063 = vmatpush1.msra.mxu0 %v752
    %1064 = vmatprep.subr.mxu0 %v745
    %1065 = vmatpush1.msra.mxu0 %v744
    %1066 = vmatprep.subr.mxu0 %v737
    %1067 = vmatpush1.msra.mxu0 %v736
    %1068 = vmatprep.subr.mxu0 %v729
    %1069 = vmatpush1.msra.mxu0 %v728
    %1070 = vmatprep.subr.mxu0 %v721
    %1071 = vmatpush1.msra.mxu0 %v720
    %1072 = vmatprep.subr.mxu0 %v713
    %1073 = vmatpush1.msra.mxu0 %v712
    %1074 = vmatprep.subr.mxu0 %v705
    %1075 = vmatpush1.msra.mxu0 %v704
    %1076 = vmatprep.subr.mxu0 %v697
    %1077 = vmatpush1.msra.mxu0 %v696
    %1078 = vmatprep.subr.mxu0 %v689
    %1079 = vmatpush1.msra.mxu0 %v688
    %1080 = vmatprep.subr.mxu0 %v681
    %1081 = vmatpush1.msra.mxu0 %v680
    %1082 = vmatprep.subr.mxu0 %v673
    %1083 = vmatpush1.msra.mxu0 %v672
    %1084 = vmatprep.subr.mxu0 %v665
    %1085 = vmatpush1.msra.mxu0 %v664
    %1086 = vmatprep.subr.mxu0 %v657
    %1087 = vmatpush1.msra.mxu0 %v656
    %1088 = vmatprep.subr.mxu0 %v649
    %1089 = vmatpush1.msra.mxu0 %v648
    %1090 = vmatprep.subr.mxu0 %v641
    %1091 = vmatpush1.msra.mxu0 %v640
    %1092 = vmatprep.subr.mxu0 %v633
    %1093 = vmatpush1.msra.mxu0 %v632
    %1094 = vmatprep.subr.mxu0 %v881
    %1095 = vmatpush2.msra.mxu0 %v880
    %1096 = vmatprep.subr.mxu0 %v873
    %1097 = vmatpush2.msra.mxu0 %v872
    %1098 = vmatprep.subr.mxu0 %v865
    %1099 = vmatpush2.msra.mxu0 %v864
    %1100 = vmatprep.subr.mxu0 %v857
    %1101 = vmatpush2.msra.mxu0 %v856
    %1102 = vmatprep.subr.mxu0 %v849
    %1103 = vmatpush2.msra.mxu0 %v848
    %1104 = vmatprep.subr.mxu0 %v841
    %1105 = vmatpush2.msra.mxu0 %v840
    %1106 = vmatprep.subr.mxu0 %v833
    %1107 = vmatpush2.msra.mxu0 %v832
    %1108 = vmatprep.subr.mxu0 %v825
    %1109 = vmatpush2.msra.mxu0 %v824
    %1110 = vmatprep.subr.mxu0 %v817
    %1111 = vmatpush2.msra.mxu0 %v816
    %1112 = vmatprep.subr.mxu0 %v809
    %1113 = vmatpush2.msra.mxu0 %v808
    %1114 = vmatprep.subr.mxu0 %v801
    %1115 = vmatpush2.msra.mxu0 %v800
    %1116 = vmatprep.subr.mxu0 %v793
    %1117 = vmatpush2.msra.mxu0 %v792
    %1118 = vmatprep.subr.mxu0 %v785
    %1119 = vmatpush2.msra.mxu0 %v784
    %1120 = vmatprep.subr.mxu0 %v777
    %1121 = vmatpush2.msra.mxu0 %v776
    %1122 = vmatprep.subr.mxu0 %v769
    %1123 = vmatpush2.msra.mxu0 %v768
    %1124 = vmatprep.subr.mxu0 %v761
    %1125 = vmatpush2.msra.mxu0 %v760
    %1126 = vmatprep.mubr.f32.mxu0 %v621
    %1127 = vmatmul.mubr.f32.gmra.mxu0 %v620
    %v1128 = vpop.f32.mrf.mxu0
    %v1129 = vadd.f32 0.0, %v1128
    %v1130 = vpop.f32.mrf.mxu0
    %v1131 = vadd.f32 0.0, %v1130
    %1132 = vmatprep.mubr.f32.mxu0 %v623
    %1133 = vmatmul.mubr.f32.gmra.mxu0 %v622
    %v1134 = vpop.f32.mrf.mxu0
    %v1135 = vadd.f32 0.0, %v1134
    %v1136 = vpop.f32.mrf.mxu0
    %v1137 = vadd.f32 0.0, %v1136
    %1138 = vmatprep.mubr.f32.mxu0 %v625
    %1139 = vmatmul.mubr.f32.gmra.mxu0 %v624
    %v1140 = vpop.f32.mrf.mxu0
    %v1141 = vadd.f32 0.0, %v1140
    %v1142 = vpop.f32.mrf.mxu0
    %v1143 = vadd.f32 0.0, %v1142
    %1144 = vmatprep.mubr.f32.mxu0 %v627
    %1145 = vmatmul.mubr.f32.gmra.mxu0 %v626
    %v1146 = vpop.f32.mrf.mxu0
    %v1147 = vadd.f32 0.0, %v1146
    %v1148 = vpop.f32.mrf.mxu0
    %v1149 = vadd.f32 0.0, %v1148
    %1150 = vdwg.mxu0
    %1151 = vmatprep.subr.mxu0 %v755
    %1152 = vmatpush1.msra.mxu0 %v754
    %1153 = vmatprep.subr.mxu0 %v747
    %1154 = vmatpush1.msra.mxu0 %v746
    %1155 = vmatprep.subr.mxu0 %v739
    %1156 = vmatpush1.msra.mxu0 %v738
    %1157 = vmatprep.subr.mxu0 %v731
    %1158 = vmatpush1.msra.mxu0 %v730
    %1159 = vmatprep.subr.mxu0 %v723
    %1160 = vmatpush1.msra.mxu0 %v722
    %1161 = vmatprep.subr.mxu0 %v715
    %1162 = vmatpush1.msra.mxu0 %v714
    %1163 = vmatprep.subr.mxu0 %v707
    %1164 = vmatpush1.msra.mxu0 %v706
    %1165 = vmatprep.subr.mxu0 %v699
    %1166 = vmatpush1.msra.mxu0 %v698
    %1167 = vmatprep.subr.mxu0 %v691
    %1168 = vmatpush1.msra.mxu0 %v690
    %1169 = vmatprep.subr.mxu0 %v683
    %1170 = vmatpush1.msra.mxu0 %v682
    %1171 = vmatprep.subr.mxu0 %v675
    %1172 = vmatpush1.msra.mxu0 %v674
    %1173 = vmatprep.subr.mxu0 %v667
    %1174 = vmatpush1.msra.mxu0 %v666
    %1175 = vmatprep.subr.mxu0 %v659
    %1176 = vmatpush1.msra.mxu0 %v658
    %1177 = vmatprep.subr.mxu0 %v651
    %1178 = vmatpush1.msra.mxu0 %v650
    %1179 = vmatprep.subr.mxu0 %v643
    %1180 = vmatpush1.msra.mxu0 %v642
    %1181 = vmatprep.subr.mxu0 %v635
    %1182 = vmatpush1.msra.mxu0 %v634
    %1183 = vmatprep.subr.mxu0 %v883
    %1184 = vmatpush2.msra.mxu0 %v882
    %1185 = vmatprep.subr.mxu0 %v875
    %1186 = vmatpush2.msra.mxu0 %v874
    %1187 = vmatprep.subr.mxu0 %v867
    %1188 = vmatpush2.msra.mxu0 %v866
    %1189 = vmatprep.subr.mxu0 %v859
    %1190 = vmatpush2.msra.mxu0 %v858
    %1191 = vmatprep.subr.mxu0 %v851
    %1192 = vmatpush2.msra.mxu0 %v850
    %1193 = vmatprep.subr.mxu0 %v843
    %1194 = vmatpush2.msra.mxu0 %v842
    %1195 = vmatprep.subr.mxu0 %v835
    %1196 = vmatpush2.msra.mxu0 %v834
    %1197 = vmatprep.subr.mxu0 %v827
    %1198 = vmatpush2.msra.mxu0 %v826
    %1199 = vmatprep.subr.mxu0 %v819
    %1200 = vmatpush2.msra.mxu0 %v818
    %1201 = vmatprep.subr.mxu0 %v811
    %1202 = vmatpush2.msra.mxu0 %v810
    %1203 = vmatprep.subr.mxu0 %v803
    %1204 = vmatpush2.msra.mxu0 %v802
    %1205 = vmatprep.subr.mxu0 %v795
    %1206 = vmatpush2.msra.mxu0 %v794
    %1207 = vmatprep.subr.mxu0 %v787
    %1208 = vmatpush2.msra.mxu0 %v786
    %1209 = vmatprep.subr.mxu0 %v779
    %1210 = vmatpush2.msra.mxu0 %v778
    %1211 = vmatprep.subr.mxu0 %v771
    %1212 = vmatpush2.msra.mxu0 %v770
    %1213 = vmatprep.subr.mxu0 %v763
    %1214 = vmatpush2.msra.mxu0 %v762
    %1215 = vmatprep.mubr.f32.mxu0 %v621
    %1216 = vmatmul.mubr.f32.gmra.mxu0 %v620
    %v1217 = vpop.f32.mrf.mxu0
    %v1218 = vadd.f32 0.0, %v1217
    %v1219 = vpop.f32.mrf.mxu0
    %v1220 = vadd.f32 0.0, %v1219
    %1221 = vmatprep.mubr.f32.mxu0 %v623
    %1222 = vmatmul.mubr.f32.gmra.mxu0 %v622
    %v1223 = vpop.f32.mrf.mxu0
    %v1224 = vadd.f32 0.0, %v1223
    %v1225 = vpop.f32.mrf.mxu0
    %v1226 = vadd.f32 0.0, %v1225
    %1227 = vmatprep.mubr.f32.mxu0 %v625
    %1228 = vmatmul.mubr.f32.gmra.mxu0 %v624
    %v1229 = vpop.f32.mrf.mxu0
    %v1230 = vadd.f32 0.0, %v1229
    %v1231 = vpop.f32.mrf.mxu0
    %v1232 = vadd.f32 0.0, %v1231
    %1233 = vmatprep.mubr.f32.mxu0 %v627
    %1234 = vmatmul.mubr.f32.gmra.mxu0 %v626
    %v1235 = vpop.f32.mrf.mxu0
    %v1236 = vadd.f32 0.0, %v1235
    %v1237 = vpop.f32.mrf.mxu0
    %v1238 = vadd.f32 0.0, %v1237
    %1239 = vdwg.mxu0
    %v1240 = vld [vmem:[%s7] sm:$0xff]
    %v1241 = vld [vmem:[%s7 + $0x8] sm:$0xff]
    %v1242 = vld [vmem:[%s7 + $0x10] sm:$0xff]
    %v1243 = vld [vmem:[%s7 + $0x18] sm:$0xff]
    %v1244 = vld [vmem:[%s8] sm:$0xf]
    %v1245 = vlaneseq
    %v1246 = vshrl.u32 %v1245, 7
    %v1247 = vsub.s32 0, %v1246
    %v1248 = vrot.slane %v1244, %v1247
    %v1249 = vadd.f32 %v951, %v1248
    %v1250 = vadd.f32 %v957, %v1248
    %v1251 = vadd.f32 %v963, %v1248
    %v1252 = vadd.f32 %v969, %v1248
    %v1253 = vxor.u32 %v1249, 2147483648
    %v1254 = vxor.u32 %v1250, 2147483648
    %v1255 = vxor.u32 %v1251, 2147483648
    %v1256 = vxor.u32 %v1252, 2147483648
    %v1257 = vmul.f32 %v1253, 1.442695
    %v1258 = vpow.pop %v1257
    %v1259 = vmul.f32 %v1254, 1.442695
    %v1260 = vpow.pop %v1259
    %v1261 = vmul.f32 %v1255, 1.442695
    %v1262 = vpow.pop %v1261
    %v1263 = vmul.f32 %v1256, 1.442695
    %v1264 = vpow.pop %v1263
    %v1265 = vadd.f32 %v1258, 1.0
    %v1266 = vadd.f32 %v1260, 1.0
    %v1267 = vadd.f32 %v1262, 1.0
    %v1268 = vadd.f32 %v1264, 1.0
    %v1269 = vrcp.pop %v1265
    %v1270 = vmul.f32 1.0, %v1269
    %v1271 = vrcp.pop %v1266
    %v1272 = vmul.f32 1.0, %v1271
    %v1273 = vrcp.pop %v1267
    %v1274 = vmul.f32 1.0, %v1273
    %v1275 = vrcp.pop %v1268
    %v1276 = vmul.f32 1.0, %v1275
    %v1277 = vlaneseq
    %v1278 = vshrl.u32 %v1277, 7
    %v1279 = vsub.s32 1, %v1278
    %v1280 = vrot.slane %v1244, %v1279
    %1282 = vrot.lane.b32.xlu0 %v1280, 32
    %v1283 = vpop.permute.xlu0 %1282
    %v1285 = vadd.f32 %v951, %v1283
    %v1286 = vadd.f32 %v957, %v1283
    %v1287 = vadd.f32 %v963, %v1283
    %v1288 = vadd.f32 %v969, %v1283
    %v1289 = vxor.u32 %v1285, 2147483648
    %v1290 = vxor.u32 %v1286, 2147483648
    %v1291 = vxor.u32 %v1287, 2147483648
    %v1292 = vxor.u32 %v1288, 2147483648
    %v1293 = vmul.f32 %v1289, 1.442695
    %v1294 = vpow.pop %v1293
    %v1295 = vmul.f32 %v1290, 1.442695
    %v1296 = vpow.pop %v1295
    %v1297 = vmul.f32 %v1291, 1.442695
    %v1298 = vpow.pop %v1297
    %v1299 = vmul.f32 %v1292, 1.442695
    %v1300 = vpow.pop %v1299
    %v1301 = vadd.f32 %v1294, 1.0
    %v1302 = vadd.f32 %v1296, 1.0
    %v1303 = vadd.f32 %v1298, 1.0
    %v1304 = vadd.f32 %v1300, 1.0
    %v1305 = vrcp.pop %v1301
    %v1306 = vmul.f32 1.0, %v1305
    %v1307 = vrcp.pop %v1302
    %v1308 = vmul.f32 1.0, %v1307
    %v1309 = vrcp.pop %v1303
    %v1310 = vmul.f32 1.0, %v1309
    %v1311 = vrcp.pop %v1304
    %v1312 = vmul.f32 1.0, %v1311
    %v1313 = vlaneseq
    %v1314 = vshrl.u32 %v1313, 7
    %v1315 = vsub.s32 2, %v1314
    %v1316 = vrot.slane %v1244, %v1315
    %1318 = vrot.lane.b32.xlu0 %v1316, 64
    %v1319 = vpop.permute.xlu0 %1318
    %v1321 = vadd.f32 %v951, %v1319
    %v1322 = vadd.f32 %v957, %v1319
    %v1323 = vadd.f32 %v963, %v1319
    %v1324 = vadd.f32 %v969, %v1319
    %v1325 = vlaneseq
    %v1326 = vshrl.u32 %v1325, 7
    %v1327 = vsub.s32 3, %v1326
    %v1328 = vrot.slane %v1244, %v1327
    %v1329 = vmul.f32 %v1270, %v1328
    %v1330 = vmul.f32 %v1272, %v1328
    %v1331 = vmul.f32 %v1274, %v1328
    %v1332 = vmul.f32 %v1276, %v1328
    %1337 = vrot.lane.b32.xlu0 %v1329, 64
    %v1338 = vpop.permute.xlu0 %1337
    %1339 = vrot.lane.b32.xlu0 %v1330, 64
    %v1340 = vpop.permute.xlu0 %1339
    %1341 = vrot.lane.b32.xlu0 %v1331, 64
    %v1342 = vpop.permute.xlu0 %1341
    %1343 = vrot.lane.b32.xlu0 %v1332, 64
    %v1344 = vpop.permute.xlu0 %1343
    %v1349 = vadd.f32 %v1321, %v1338
    %v1350 = vadd.f32 %v1322, %v1340
    %v1351 = vadd.f32 %v1323, %v1342
    %v1352 = vadd.f32 %v1324, %v1344
    %v1353 = vtanh.pop %v1349
    %v1354 = vtanh.pop %v1350
    %v1355 = vtanh.pop %v1351
    %v1356 = vtanh.pop %v1352
    %v1357 = vsub.f32 1.0, %v1306
    %v1358 = vsub.f32 1.0, %v1308
    %v1359 = vsub.f32 1.0, %v1310
    %v1360 = vsub.f32 1.0, %v1312
    %1365 = vrot.lane.b32.xlu0 %v1353, 96
    %v1366 = vpop.permute.xlu0 %1365
    %1367 = vrot.lane.b32.xlu0 %v1354, 96
    %v1368 = vpop.permute.xlu0 %1367
    %1369 = vrot.lane.b32.xlu0 %v1355, 96
    %v1370 = vpop.permute.xlu0 %1369
    %1371 = vrot.lane.b32.xlu0 %v1356, 96
    %v1372 = vpop.permute.xlu0 %1371
    %v1377 = vmul.f32 %v1357, %v1366
    %v1378 = vmul.f32 %v1358, %v1368
    %v1379 = vmul.f32 %v1359, %v1370
    %v1380 = vmul.f32 %v1360, %v1372
    %1385 = vrot.lane.b32.xlu0 %v1377, 96
    %v1386 = vpop.permute.xlu0 %1385
    %1387 = vrot.lane.b32.xlu0 %v1378, 96
    %v1388 = vpop.permute.xlu0 %1387
    %1389 = vrot.lane.b32.xlu0 %v1379, 96
    %v1390 = vpop.permute.xlu0 %1389
    %1391 = vrot.lane.b32.xlu0 %v1380, 96
    %v1392 = vpop.permute.xlu0 %1391
    %v1393 = vsel %vm176, %v1386, 0
    %v1395 = vsel %vm176, %v1388, 0
    %v1397 = vsel %vm176, %v1390, 0
    %v1399 = vsel %vm176, %v1392, 0
    %1401 = vmatprep.subr.mxu0 0.0
    %1402 = vmatpush1.msra.mxu0 0.0
    %1403 = vmatprep.subr.mxu0 0.0
    %1404 = vmatpush1.msra.mxu0 0.0
    %1405 = vmatprep.subr.mxu0 0.0
    %1406 = vmatpush1.msra.mxu0 0.0
    %1407 = vmatprep.subr.mxu0 0.0
    %1408 = vmatpush1.msra.mxu0 0.0
    %1409 = vmatprep.subr.mxu0 0.0
    %1410 = vmatpush1.msra.mxu0 0.0
    %1411 = vmatprep.subr.mxu0 0.0
    %1412 = vmatpush1.msra.mxu0 0.0
    %1413 = vmatprep.subr.mxu0 0.0
    %1414 = vmatpush1.msra.mxu0 0.0
    %1415 = vmatprep.subr.mxu0 0.0
    %1416 = vmatpush1.msra.mxu0 0.0
    %1417 = vmatprep.subr.mxu0 0.0
    %1418 = vmatpush1.msra.mxu0 0.0
    %1419 = vmatprep.subr.mxu0 0.0
    %1420 = vmatpush1.msra.mxu0 0.0
    %1421 = vmatprep.subr.mxu0 0.0
    %1422 = vmatpush1.msra.mxu0 0.0
    %1423 = vmatprep.subr.mxu0 0.0
    %1424 = vmatpush1.msra.mxu0 0.0
    %1425 = vmatprep.subr.mxu0 0.0
    %1426 = vmatpush1.msra.mxu0 %v1243
    %1427 = vmatprep.subr.mxu0 0.0
    %1428 = vmatpush1.msra.mxu0 %v1242
    %1429 = vmatprep.subr.mxu0 0.0
    %1430 = vmatpush1.msra.mxu0 %v1241
    %1431 = vmatprep.subr.mxu0 0.0
    %1432 = vmatpush1.msra.mxu0 %v1240
    %1433 = vmatprep.subr.mxu0 0.0
    %1434 = vmatpush2.msra.mxu0 0.0
    %1435 = vmatprep.subr.mxu0 0.0
    %1436 = vmatpush2.msra.mxu0 0.0
    %1437 = vmatprep.subr.mxu0 0.0
    %1438 = vmatpush2.msra.mxu0 0.0
    %1439 = vmatprep.subr.mxu0 0.0
    %1440 = vmatpush2.msra.mxu0 0.0
    %1441 = vmatprep.subr.mxu0 0.0
    %1442 = vmatpush2.msra.mxu0 0.0
    %1443 = vmatprep.subr.mxu0 0.0
    %1444 = vmatpush2.msra.mxu0 0.0
    %1445 = vmatprep.subr.mxu0 0.0
    %1446 = vmatpush2.msra.mxu0 0.0
    %1447 = vmatprep.subr.mxu0 0.0
    %1448 = vmatpush2.msra.mxu0 0.0
    %1449 = vmatprep.subr.mxu0 0.0
    %1450 = vmatpush2.msra.mxu0 0.0
    %1451 = vmatprep.subr.mxu0 0.0
    %1452 = vmatpush2.msra.mxu0 0.0
    %1453 = vmatprep.subr.mxu0 0.0
    %1454 = vmatpush2.msra.mxu0 0.0
    %1455 = vmatprep.subr.mxu0 0.0
    %1456 = vmatpush2.msra.mxu0 0.0
    %1457 = vmatprep.subr.mxu0 0.0
    %1458 = vmatpush2.msra.mxu0 0.0
    %1459 = vmatprep.subr.mxu0 0.0
    %1460 = vmatpush2.msra.mxu0 0.0
    %1461 = vmatprep.subr.mxu0 0.0
    %1462 = vmatpush2.msra.mxu0 0.0
    %1463 = vmatprep.subr.mxu0 0.0
    %1464 = vmatpush2.msra.mxu0 0.0
    %1465 = vmatprep.mubr.f32.mxu0 0.0
    %1466 = vmatmul.mubr.f32.gmra.mxu0 %v1393
    %v1467 = vpop.f32.mrf.mxu0
    %v1468 = vadd.f32 0.0, %v1467
    %v1469 = vpop.f32.mrf.mxu0
    %1470 = vmatprep.mubr.f32.mxu0 0.0
    %1471 = vmatmul.mubr.f32.gmra.mxu0 %v1395
    %v1472 = vpop.f32.mrf.mxu0
    %v1473 = vadd.f32 0.0, %v1472
    %v1474 = vpop.f32.mrf.mxu0
    %1475 = vmatprep.mubr.f32.mxu0 0.0
    %1476 = vmatmul.mubr.f32.gmra.mxu0 %v1397
    %v1477 = vpop.f32.mrf.mxu0
    %v1478 = vadd.f32 0.0, %v1477
    %v1479 = vpop.f32.mrf.mxu0
    %1480 = vmatprep.mubr.f32.mxu0 0.0
    %1481 = vmatmul.mubr.f32.gmra.mxu0 %v1399
    %v1482 = vpop.f32.mrf.mxu0
    %v1483 = vadd.f32 0.0, %v1482
    %v1484 = vpop.f32.mrf.mxu0
    %1485 = vdwg.mxu0
    %v1486 = vadd.f32 %v953, %v1468
    %v1487 = vadd.f32 %v959, %v1473
    %v1488 = vadd.f32 %v965, %v1478
    %v1489 = vadd.f32 %v971, %v1483
    %v1490 = vadd.f32 %v1486, %v1248
    %v1491 = vadd.f32 %v1487, %v1248
    %v1492 = vadd.f32 %v1488, %v1248
    %v1493 = vadd.f32 %v1489, %v1248
    %v1494 = vxor.u32 %v1490, 2147483648
    %v1495 = vxor.u32 %v1491, 2147483648
    %v1496 = vxor.u32 %v1492, 2147483648
    %v1497 = vxor.u32 %v1493, 2147483648
    %v1498 = vmul.f32 %v1494, 1.442695
    %v1499 = vpow.pop %v1498
    %v1500 = vmul.f32 %v1495, 1.442695
    %v1501 = vpow.pop %v1500
    %v1502 = vmul.f32 %v1496, 1.442695
    %v1503 = vpow.pop %v1502
    %v1504 = vmul.f32 %v1497, 1.442695
    %v1505 = vpow.pop %v1504
    %v1506 = vadd.f32 %v1499, 1.0
    %v1507 = vadd.f32 %v1501, 1.0
    %v1508 = vadd.f32 %v1503, 1.0
    %v1509 = vadd.f32 %v1505, 1.0
    %v1510 = vrcp.pop %v1506
    %v1511 = vmul.f32 1.0, %v1510
    %v1512 = vrcp.pop %v1507
    %v1513 = vmul.f32 1.0, %v1512
    %v1514 = vrcp.pop %v1508
    %v1515 = vmul.f32 1.0, %v1514
    %v1516 = vrcp.pop %v1509
    %v1517 = vmul.f32 1.0, %v1516
    %v1518 = vadd.f32 %v1486, %v1283
    %v1519 = vadd.f32 %v1487, %v1283
    %v1520 = vadd.f32 %v1488, %v1283
    %v1521 = vadd.f32 %v1489, %v1283
    %v1522 = vxor.u32 %v1518, 2147483648
    %v1523 = vxor.u32 %v1519, 2147483648
    %v1524 = vxor.u32 %v1520, 2147483648
    %v1525 = vxor.u32 %v1521, 2147483648
    %v1526 = vmul.f32 %v1522, 1.442695
    %v1527 = vpow.pop %v1526
    %v1528 = vmul.f32 %v1523, 1.442695
    %v1529 = vpow.pop %v1528
    %v1530 = vmul.f32 %v1524, 1.442695
    %v1531 = vpow.pop %v1530
    %v1532 = vmul.f32 %v1525, 1.442695
    %v1533 = vpow.pop %v1532
    %v1534 = vadd.f32 %v1527, 1.0
    %v1535 = vadd.f32 %v1529, 1.0
    %v1536 = vadd.f32 %v1531, 1.0
    %v1537 = vadd.f32 %v1533, 1.0
    %v1538 = vrcp.pop %v1534
    %v1539 = vmul.f32 1.0, %v1538
    %v1540 = vrcp.pop %v1535
    %v1541 = vmul.f32 1.0, %v1540
    %v1542 = vrcp.pop %v1536
    %v1543 = vmul.f32 1.0, %v1542
    %v1544 = vrcp.pop %v1537
    %v1545 = vmul.f32 1.0, %v1544
    %v1546 = vadd.f32 %v953, %v1319
    %v1547 = vadd.f32 %v959, %v1319
    %v1548 = vadd.f32 %v965, %v1319
    %v1549 = vadd.f32 %v971, %v1319
    %1551 = vrot.lane.b32.xlu0 %v1328, 64
    %v1552 = vpop.permute.xlu0 %1551
    %v1554 = vadd.f32 %v1468, %v1552
    %v1555 = vadd.f32 %v1473, %v1552
    %v1556 = vadd.f32 %v1478, %v1552
    %v1557 = vadd.f32 %v1483, %v1552
    %1562 = vrot.lane.b32.xlu0 %v1554, 64
    %v1563 = vpop.permute.xlu0 %1562
    %1564 = vrot.lane.b32.xlu0 %v1555, 64
    %v1565 = vpop.permute.xlu0 %1564
    %1566 = vrot.lane.b32.xlu0 %v1556, 64
    %v1567 = vpop.permute.xlu0 %1566
    %1568 = vrot.lane.b32.xlu0 %v1557, 64
    %v1569 = vpop.permute.xlu0 %1568
    %v1574 = vmul.f32 %v1511, %v1563
    %v1575 = vmul.f32 %v1513, %v1565
    %v1576 = vmul.f32 %v1515, %v1567
    %v1577 = vmul.f32 %v1517, %v1569
    %1582 = vrot.lane.b32.xlu0 %v1574, 64
    %v1583 = vpop.permute.xlu0 %1582
    %1584 = vrot.lane.b32.xlu0 %v1575, 64
    %v1585 = vpop.permute.xlu0 %1584
    %1586 = vrot.lane.b32.xlu0 %v1576, 64
    %v1587 = vpop.permute.xlu0 %1586
    %1588 = vrot.lane.b32.xlu0 %v1577, 64
    %v1589 = vpop.permute.xlu0 %1588
    %v1594 = vadd.f32 %v1546, %v1583
    %v1595 = vadd.f32 %v1547, %v1585
    %v1596 = vadd.f32 %v1548, %v1587
    %v1597 = vadd.f32 %v1549, %v1589
    %v1598 = vtanh.pop %v1594
    %v1599 = vtanh.pop %v1595
    %v1600 = vtanh.pop %v1596
    %v1601 = vtanh.pop %v1597
    %v1602 = vsub.f32 1.0, %v1539
    %v1603 = vsub.f32 1.0, %v1541
    %v1604 = vsub.f32 1.0, %v1543
    %v1605 = vsub.f32 1.0, %v1545
    %1610 = vrot.lane.b32.xlu0 %v1598, 96
    %v1611 = vpop.permute.xlu0 %1610
    %1612 = vrot.lane.b32.xlu0 %v1599, 96
    %v1613 = vpop.permute.xlu0 %1612
    %1614 = vrot.lane.b32.xlu0 %v1600, 96
    %v1615 = vpop.permute.xlu0 %1614
    %1616 = vrot.lane.b32.xlu0 %v1601, 96
    %v1617 = vpop.permute.xlu0 %1616
    %v1622 = vmul.f32 %v1602, %v1611
    %v1623 = vmul.f32 %v1603, %v1613
    %v1624 = vmul.f32 %v1604, %v1615
    %v1625 = vmul.f32 %v1605, %v1617
    %v1626 = vmul.f32 %v1539, %v1377
    %v1627 = vmul.f32 %v1541, %v1378
    %v1628 = vmul.f32 %v1543, %v1379
    %v1629 = vmul.f32 %v1545, %v1380
    %v1630 = vadd.f32 %v1622, %v1626
    %v1631 = vadd.f32 %v1623, %v1627
    %v1632 = vadd.f32 %v1624, %v1628
    %v1633 = vadd.f32 %v1625, %v1629
    %1638 = vrot.lane.b32.xlu0 %v1630, 96
    %v1639 = vpop.permute.xlu0 %1638
    %1640 = vrot.lane.b32.xlu0 %v1631, 96
    %v1641 = vpop.permute.xlu0 %1640
    %1642 = vrot.lane.b32.xlu0 %v1632, 96
    %v1643 = vpop.permute.xlu0 %1642
    %1644 = vrot.lane.b32.xlu0 %v1633, 96
    %v1645 = vpop.permute.xlu0 %1644
    %v1646 = vsel %vm176, %v1639, 0
    %v1648 = vsel %vm176, %v1641, 0
    %v1650 = vsel %vm176, %v1643, 0
    %v1652 = vsel %vm176, %v1645, 0
    %1654 = vmatprep.subr.mxu0 0.0
    %1655 = vmatpush1.msra.mxu0 0.0
    %1656 = vmatprep.subr.mxu0 0.0
    %1657 = vmatpush1.msra.mxu0 0.0
    %1658 = vmatprep.subr.mxu0 0.0
    %1659 = vmatpush1.msra.mxu0 0.0
    %1660 = vmatprep.subr.mxu0 0.0
    %1661 = vmatpush1.msra.mxu0 0.0
    %1662 = vmatprep.subr.mxu0 0.0
    %1663 = vmatpush1.msra.mxu0 0.0
    %1664 = vmatprep.subr.mxu0 0.0
    %1665 = vmatpush1.msra.mxu0 0.0
    %1666 = vmatprep.subr.mxu0 0.0
    %1667 = vmatpush1.msra.mxu0 0.0
    %1668 = vmatprep.subr.mxu0 0.0
    %1669 = vmatpush1.msra.mxu0 0.0
    %1670 = vmatprep.subr.mxu0 0.0
    %1671 = vmatpush1.msra.mxu0 0.0
    %1672 = vmatprep.subr.mxu0 0.0
    %1673 = vmatpush1.msra.mxu0 0.0
    %1674 = vmatprep.subr.mxu0 0.0
    %1675 = vmatpush1.msra.mxu0 0.0
    %1676 = vmatprep.subr.mxu0 0.0
    %1677 = vmatpush1.msra.mxu0 0.0
    %1678 = vmatprep.subr.mxu0 0.0
    %1679 = vmatpush1.msra.mxu0 %v1243
    %1680 = vmatprep.subr.mxu0 0.0
    %1681 = vmatpush1.msra.mxu0 %v1242
    %1682 = vmatprep.subr.mxu0 0.0
    %1683 = vmatpush1.msra.mxu0 %v1241
    %1684 = vmatprep.subr.mxu0 0.0
    %1685 = vmatpush1.msra.mxu0 %v1240
    %1686 = vmatprep.subr.mxu0 0.0
    %1687 = vmatpush2.msra.mxu0 0.0
    %1688 = vmatprep.subr.mxu0 0.0
    %1689 = vmatpush2.msra.mxu0 0.0
    %1690 = vmatprep.subr.mxu0 0.0
    %1691 = vmatpush2.msra.mxu0 0.0
    %1692 = vmatprep.subr.mxu0 0.0
    %1693 = vmatpush2.msra.mxu0 0.0
    %1694 = vmatprep.subr.mxu0 0.0
    %1695 = vmatpush2.msra.mxu0 0.0
    %1696 = vmatprep.subr.mxu0 0.0
    %1697 = vmatpush2.msra.mxu0 0.0
    %1698 = vmatprep.subr.mxu0 0.0
    %1699 = vmatpush2.msra.mxu0 0.0
    %1700 = vmatprep.subr.mxu0 0.0
    %1701 = vmatpush2.msra.mxu0 0.0
    %1702 = vmatprep.subr.mxu0 0.0
    %1703 = vmatpush2.msra.mxu0 0.0
    %1704 = vmatprep.subr.mxu0 0.0
    %1705 = vmatpush2.msra.mxu0 0.0
    %1706 = vmatprep.subr.mxu0 0.0
    %1707 = vmatpush2.msra.mxu0 0.0
    %1708 = vmatprep.subr.mxu0 0.0
    %1709 = vmatpush2.msra.mxu0 0.0
    %1710 = vmatprep.subr.mxu0 0.0
    %1711 = vmatpush2.msra.mxu0 0.0
    %1712 = vmatprep.subr.mxu0 0.0
    %1713 = vmatpush2.msra.mxu0 0.0
    %1714 = vmatprep.subr.mxu0 0.0
    %1715 = vmatpush2.msra.mxu0 0.0
    %1716 = vmatprep.subr.mxu0 0.0
    %1717 = vmatpush2.msra.mxu0 0.0
    %1718 = vmatprep.mubr.f32.mxu0 0.0
    %1719 = vmatmul.mubr.f32.gmra.mxu0 %v1646
    %v1720 = vpop.f32.mrf.mxu0
    %v1721 = vadd.f32 0.0, %v1720
    %v1722 = vpop.f32.mrf.mxu0
    %1723 = vmatprep.mubr.f32.mxu0 0.0
    %1724 = vmatmul.mubr.f32.gmra.mxu0 %v1648
    %v1725 = vpop.f32.mrf.mxu0
    %v1726 = vadd.f32 0.0, %v1725
    %v1727 = vpop.f32.mrf.mxu0
    %1728 = vmatprep.mubr.f32.mxu0 0.0
    %1729 = vmatmul.mubr.f32.gmra.mxu0 %v1650
    %v1730 = vpop.f32.mrf.mxu0
    %v1731 = vadd.f32 0.0, %v1730
    %v1732 = vpop.f32.mrf.mxu0
    %1733 = vmatprep.mubr.f32.mxu0 0.0
    %1734 = vmatmul.mubr.f32.gmra.mxu0 %v1652
    %v1735 = vpop.f32.mrf.mxu0
    %v1736 = vadd.f32 0.0, %v1735
    %v1737 = vpop.f32.mrf.mxu0
    %1738 = vdwg.mxu0
    %v1739 = vadd.f32 %v1040, %v1721
    %v1740 = vadd.f32 %v1046, %v1726
    %v1741 = vadd.f32 %v1052, %v1731
    %v1742 = vadd.f32 %v1058, %v1736
    %v1743 = vadd.f32 %v1739, %v1248
    %v1744 = vadd.f32 %v1740, %v1248
    %v1745 = vadd.f32 %v1741, %v1248
    %v1746 = vadd.f32 %v1742, %v1248
    %v1747 = vxor.u32 %v1743, 2147483648
    %v1748 = vxor.u32 %v1744, 2147483648
    %v1749 = vxor.u32 %v1745, 2147483648
    %v1750 = vxor.u32 %v1746, 2147483648
    %v1751 = vmul.f32 %v1747, 1.442695
    %v1752 = vpow.pop %v1751
    %v1753 = vmul.f32 %v1748, 1.442695
    %v1754 = vpow.pop %v1753
    %v1755 = vmul.f32 %v1749, 1.442695
    %v1756 = vpow.pop %v1755
    %v1757 = vmul.f32 %v1750, 1.442695
    %v1758 = vpow.pop %v1757
    %v1759 = vadd.f32 %v1752, 1.0
    %v1760 = vadd.f32 %v1754, 1.0
    %v1761 = vadd.f32 %v1756, 1.0
    %v1762 = vadd.f32 %v1758, 1.0
    %v1763 = vrcp.pop %v1759
    %v1764 = vmul.f32 1.0, %v1763
    %v1765 = vrcp.pop %v1760
    %v1766 = vmul.f32 1.0, %v1765
    %v1767 = vrcp.pop %v1761
    %v1768 = vmul.f32 1.0, %v1767
    %v1769 = vrcp.pop %v1762
    %v1770 = vmul.f32 1.0, %v1769
    %v1771 = vadd.f32 %v1739, %v1283
    %v1772 = vadd.f32 %v1740, %v1283
    %v1773 = vadd.f32 %v1741, %v1283
    %v1774 = vadd.f32 %v1742, %v1283
    %v1775 = vxor.u32 %v1771, 2147483648
    %v1776 = vxor.u32 %v1772, 2147483648
    %v1777 = vxor.u32 %v1773, 2147483648
    %v1778 = vxor.u32 %v1774, 2147483648
    %v1779 = vmul.f32 %v1775, 1.442695
    %v1780 = vpow.pop %v1779
    %v1781 = vmul.f32 %v1776, 1.442695
    %v1782 = vpow.pop %v1781
    %v1783 = vmul.f32 %v1777, 1.442695
    %v1784 = vpow.pop %v1783
    %v1785 = vmul.f32 %v1778, 1.442695
    %v1786 = vpow.pop %v1785
    %v1787 = vadd.f32 %v1780, 1.0
    %v1788 = vadd.f32 %v1782, 1.0
    %v1789 = vadd.f32 %v1784, 1.0
    %v1790 = vadd.f32 %v1786, 1.0
    %v1791 = vrcp.pop %v1787
    %v1792 = vmul.f32 1.0, %v1791
    %v1793 = vrcp.pop %v1788
    %v1794 = vmul.f32 1.0, %v1793
    %v1795 = vrcp.pop %v1789
    %v1796 = vmul.f32 1.0, %v1795
    %v1797 = vrcp.pop %v1790
    %v1798 = vmul.f32 1.0, %v1797
    %v1799 = vadd.f32 %v1040, %v1319
    %v1800 = vadd.f32 %v1046, %v1319
    %v1801 = vadd.f32 %v1052, %v1319
    %v1802 = vadd.f32 %v1058, %v1319
    %v1803 = vadd.f32 %v1721, %v1552
    %v1804 = vadd.f32 %v1726, %v1552
    %v1805 = vadd.f32 %v1731, %v1552
    %v1806 = vadd.f32 %v1736, %v1552
    %1811 = vrot.lane.b32.xlu0 %v1803, 64
    %v1812 = vpop.permute.xlu0 %1811
    %1813 = vrot.lane.b32.xlu0 %v1804, 64
    %v1814 = vpop.permute.xlu0 %1813
    %1815 = vrot.lane.b32.xlu0 %v1805, 64
    %v1816 = vpop.permute.xlu0 %1815
    %1817 = vrot.lane.b32.xlu0 %v1806, 64
    %v1818 = vpop.permute.xlu0 %1817
    %v1823 = vmul.f32 %v1764, %v1812
    %v1824 = vmul.f32 %v1766, %v1814
    %v1825 = vmul.f32 %v1768, %v1816
    %v1826 = vmul.f32 %v1770, %v1818
    %1831 = vrot.lane.b32.xlu0 %v1823, 64
    %v1832 = vpop.permute.xlu0 %1831
    %1833 = vrot.lane.b32.xlu0 %v1824, 64
    %v1834 = vpop.permute.xlu0 %1833
    %1835 = vrot.lane.b32.xlu0 %v1825, 64
    %v1836 = vpop.permute.xlu0 %1835
    %1837 = vrot.lane.b32.xlu0 %v1826, 64
    %v1838 = vpop.permute.xlu0 %1837
    %v1843 = vadd.f32 %v1799, %v1832
    %v1844 = vadd.f32 %v1800, %v1834
    %v1845 = vadd.f32 %v1801, %v1836
    %v1846 = vadd.f32 %v1802, %v1838
    %v1847 = vtanh.pop %v1843
    %v1848 = vtanh.pop %v1844
    %v1849 = vtanh.pop %v1845
    %v1850 = vtanh.pop %v1846
    %v1851 = vsub.f32 1.0, %v1792
    %v1852 = vsub.f32 1.0, %v1794
    %v1853 = vsub.f32 1.0, %v1796
    %v1854 = vsub.f32 1.0, %v1798
    %1859 = vrot.lane.b32.xlu0 %v1847, 96
    %v1860 = vpop.permute.xlu0 %1859
    %1861 = vrot.lane.b32.xlu0 %v1848, 96
    %v1862 = vpop.permute.xlu0 %1861
    %1863 = vrot.lane.b32.xlu0 %v1849, 96
    %v1864 = vpop.permute.xlu0 %1863
    %1865 = vrot.lane.b32.xlu0 %v1850, 96
    %v1866 = vpop.permute.xlu0 %1865
    %v1871 = vmul.f32 %v1851, %v1860
    %v1872 = vmul.f32 %v1852, %v1862
    %v1873 = vmul.f32 %v1853, %v1864
    %v1874 = vmul.f32 %v1854, %v1866
    %v1875 = vmul.f32 %v1792, %v1630
    %v1876 = vmul.f32 %v1794, %v1631
    %v1877 = vmul.f32 %v1796, %v1632
    %v1878 = vmul.f32 %v1798, %v1633
    %v1879 = vadd.f32 %v1871, %v1875
    %v1880 = vadd.f32 %v1872, %v1876
    %v1881 = vadd.f32 %v1873, %v1877
    %v1882 = vadd.f32 %v1874, %v1878
    %1887 = vrot.lane.b32.xlu0 %v1879, 96
    %v1888 = vpop.permute.xlu0 %1887
    %1889 = vrot.lane.b32.xlu0 %v1880, 96
    %v1890 = vpop.permute.xlu0 %1889
    %1891 = vrot.lane.b32.xlu0 %v1881, 96
    %v1892 = vpop.permute.xlu0 %1891
    %1893 = vrot.lane.b32.xlu0 %v1882, 96
    %v1894 = vpop.permute.xlu0 %1893
    %v1895 = vsel %vm176, %v1888, 0
    %v1897 = vsel %vm176, %v1890, 0
    %v1899 = vsel %vm176, %v1892, 0
    %v1901 = vsel %vm176, %v1894, 0
    %1903 = vmatprep.subr.mxu0 0.0
    %1904 = vmatpush1.msra.mxu0 0.0
    %1905 = vmatprep.subr.mxu0 0.0
    %1906 = vmatpush1.msra.mxu0 0.0
    %1907 = vmatprep.subr.mxu0 0.0
    %1908 = vmatpush1.msra.mxu0 0.0
    %1909 = vmatprep.subr.mxu0 0.0
    %1910 = vmatpush1.msra.mxu0 0.0
    %1911 = vmatprep.subr.mxu0 0.0
    %1912 = vmatpush1.msra.mxu0 0.0
    %1913 = vmatprep.subr.mxu0 0.0
    %1914 = vmatpush1.msra.mxu0 0.0
    %1915 = vmatprep.subr.mxu0 0.0
    %1916 = vmatpush1.msra.mxu0 0.0
    %1917 = vmatprep.subr.mxu0 0.0
    %1918 = vmatpush1.msra.mxu0 0.0
    %1919 = vmatprep.subr.mxu0 0.0
    %1920 = vmatpush1.msra.mxu0 0.0
    %1921 = vmatprep.subr.mxu0 0.0
    %1922 = vmatpush1.msra.mxu0 0.0
    %1923 = vmatprep.subr.mxu0 0.0
    %1924 = vmatpush1.msra.mxu0 0.0
    %1925 = vmatprep.subr.mxu0 0.0
    %1926 = vmatpush1.msra.mxu0 0.0
    %1927 = vmatprep.subr.mxu0 0.0
    %1928 = vmatpush1.msra.mxu0 %v1243
    %1929 = vmatprep.subr.mxu0 0.0
    %1930 = vmatpush1.msra.mxu0 %v1242
    %1931 = vmatprep.subr.mxu0 0.0
    %1932 = vmatpush1.msra.mxu0 %v1241
    %1933 = vmatprep.subr.mxu0 0.0
    %1934 = vmatpush1.msra.mxu0 %v1240
    %1935 = vmatprep.subr.mxu0 0.0
    %1936 = vmatpush2.msra.mxu0 0.0
    %1937 = vmatprep.subr.mxu0 0.0
    %1938 = vmatpush2.msra.mxu0 0.0
    %1939 = vmatprep.subr.mxu0 0.0
    %1940 = vmatpush2.msra.mxu0 0.0
    %1941 = vmatprep.subr.mxu0 0.0
    %1942 = vmatpush2.msra.mxu0 0.0
    %1943 = vmatprep.subr.mxu0 0.0
    %1944 = vmatpush2.msra.mxu0 0.0
    %1945 = vmatprep.subr.mxu0 0.0
    %1946 = vmatpush2.msra.mxu0 0.0
    %1947 = vmatprep.subr.mxu0 0.0
    %1948 = vmatpush2.msra.mxu0 0.0
    %1949 = vmatprep.subr.mxu0 0.0
    %1950 = vmatpush2.msra.mxu0 0.0
    %1951 = vmatprep.subr.mxu0 0.0
    %1952 = vmatpush2.msra.mxu0 0.0
    %1953 = vmatprep.subr.mxu0 0.0
    %1954 = vmatpush2.msra.mxu0 0.0
    %1955 = vmatprep.subr.mxu0 0.0
    %1956 = vmatpush2.msra.mxu0 0.0
    %1957 = vmatprep.subr.mxu0 0.0
    %1958 = vmatpush2.msra.mxu0 0.0
    %1959 = vmatprep.subr.mxu0 0.0
    %1960 = vmatpush2.msra.mxu0 0.0
    %1961 = vmatprep.subr.mxu0 0.0
    %1962 = vmatpush2.msra.mxu0 0.0
    %1963 = vmatprep.subr.mxu0 0.0
    %1964 = vmatpush2.msra.mxu0 0.0
    %1965 = vmatprep.subr.mxu0 0.0
    %1966 = vmatpush2.msra.mxu0 0.0
    %1967 = vmatprep.mubr.f32.mxu0 0.0
    %1968 = vmatmul.mubr.f32.gmra.mxu0 %v1895
    %v1969 = vpop.f32.mrf.mxu0
    %v1970 = vadd.f32 0.0, %v1969
    %v1971 = vpop.f32.mrf.mxu0
    %1972 = vmatprep.mubr.f32.mxu0 0.0
    %1973 = vmatmul.mubr.f32.gmra.mxu0 %v1897
    %v1974 = vpop.f32.mrf.mxu0
    %v1975 = vadd.f32 0.0, %v1974
    %v1976 = vpop.f32.mrf.mxu0
    %1977 = vmatprep.mubr.f32.mxu0 0.0
    %1978 = vmatmul.mubr.f32.gmra.mxu0 %v1899
    %v1979 = vpop.f32.mrf.mxu0
    %v1980 = vadd.f32 0.0, %v1979
    %v1981 = vpop.f32.mrf.mxu0
    %1982 = vmatprep.mubr.f32.mxu0 0.0
    %1983 = vmatmul.mubr.f32.gmra.mxu0 %v1901
    %v1984 = vpop.f32.mrf.mxu0
    %v1985 = vadd.f32 0.0, %v1984
    %v1986 = vpop.f32.mrf.mxu0
    %1987 = vdwg.mxu0
    %v1988 = vadd.f32 %v1042, %v1970
    %v1989 = vadd.f32 %v1048, %v1975
    %v1990 = vadd.f32 %v1054, %v1980
    %v1991 = vadd.f32 %v1060, %v1985
    %v1992 = vadd.f32 %v1988, %v1248
    %v1993 = vadd.f32 %v1989, %v1248
    %v1994 = vadd.f32 %v1990, %v1248
    %v1995 = vadd.f32 %v1991, %v1248
    %v1996 = vxor.u32 %v1992, 2147483648
    %v1997 = vxor.u32 %v1993, 2147483648
    %v1998 = vxor.u32 %v1994, 2147483648
    %v1999 = vxor.u32 %v1995, 2147483648
    %v2000 = vmul.f32 %v1996, 1.442695
    %v2001 = vpow.pop %v2000
    %v2002 = vmul.f32 %v1997, 1.442695
    %v2003 = vpow.pop %v2002
    %v2004 = vmul.f32 %v1998, 1.442695
    %v2005 = vpow.pop %v2004
    %v2006 = vmul.f32 %v1999, 1.442695
    %v2007 = vpow.pop %v2006
    %v2008 = vadd.f32 %v2001, 1.0
    %v2009 = vadd.f32 %v2003, 1.0
    %v2010 = vadd.f32 %v2005, 1.0
    %v2011 = vadd.f32 %v2007, 1.0
    %v2012 = vrcp.pop %v2008
    %v2013 = vmul.f32 1.0, %v2012
    %v2014 = vrcp.pop %v2009
    %v2015 = vmul.f32 1.0, %v2014
    %v2016 = vrcp.pop %v2010
    %v2017 = vmul.f32 1.0, %v2016
    %v2018 = vrcp.pop %v2011
    %v2019 = vmul.f32 1.0, %v2018
    %v2020 = vadd.f32 %v1988, %v1283
    %v2021 = vadd.f32 %v1989, %v1283
    %v2022 = vadd.f32 %v1990, %v1283
    %v2023 = vadd.f32 %v1991, %v1283
    %v2024 = vxor.u32 %v2020, 2147483648
    %v2025 = vxor.u32 %v2021, 2147483648
    %v2026 = vxor.u32 %v2022, 2147483648
    %v2027 = vxor.u32 %v2023, 2147483648
    %v2028 = vmul.f32 %v2024, 1.442695
    %v2029 = vpow.pop %v2028
    %v2030 = vmul.f32 %v2025, 1.442695
    %v2031 = vpow.pop %v2030
    %v2032 = vmul.f32 %v2026, 1.442695
    %v2033 = vpow.pop %v2032
    %v2034 = vmul.f32 %v2027, 1.442695
    %v2035 = vpow.pop %v2034
    %v2036 = vadd.f32 %v2029, 1.0
    %v2037 = vadd.f32 %v2031, 1.0
    %v2038 = vadd.f32 %v2033, 1.0
    %v2039 = vadd.f32 %v2035, 1.0
    %v2040 = vrcp.pop %v2036
    %v2041 = vmul.f32 1.0, %v2040
    %v2042 = vrcp.pop %v2037
    %v2043 = vmul.f32 1.0, %v2042
    %v2044 = vrcp.pop %v2038
    %v2045 = vmul.f32 1.0, %v2044
    %v2046 = vrcp.pop %v2039
    %v2047 = vmul.f32 1.0, %v2046
    %v2048 = vadd.f32 %v1042, %v1319
    %v2049 = vadd.f32 %v1048, %v1319
    %v2050 = vadd.f32 %v1054, %v1319
    %v2051 = vadd.f32 %v1060, %v1319
    %v2052 = vadd.f32 %v1970, %v1552
    %v2053 = vadd.f32 %v1975, %v1552
    %v2054 = vadd.f32 %v1980, %v1552
    %v2055 = vadd.f32 %v1985, %v1552
    %2060 = vrot.lane.b32.xlu0 %v2052, 64
    %v2061 = vpop.permute.xlu0 %2060
    %2062 = vrot.lane.b32.xlu0 %v2053, 64
    %v2063 = vpop.permute.xlu0 %2062
    %2064 = vrot.lane.b32.xlu0 %v2054, 64
    %v2065 = vpop.permute.xlu0 %2064
    %2066 = vrot.lane.b32.xlu0 %v2055, 64
    %v2067 = vpop.permute.xlu0 %2066
    %v2072 = vmul.f32 %v2013, %v2061
    %v2073 = vmul.f32 %v2015, %v2063
    %v2074 = vmul.f32 %v2017, %v2065
    %v2075 = vmul.f32 %v2019, %v2067
    %2080 = vrot.lane.b32.xlu0 %v2072, 64
    %v2081 = vpop.permute.xlu0 %2080
    %2082 = vrot.lane.b32.xlu0 %v2073, 64
    %v2083 = vpop.permute.xlu0 %2082
    %2084 = vrot.lane.b32.xlu0 %v2074, 64
    %v2085 = vpop.permute.xlu0 %2084
    %2086 = vrot.lane.b32.xlu0 %v2075, 64
    %v2087 = vpop.permute.xlu0 %2086
    %v2092 = vadd.f32 %v2048, %v2081
    %v2093 = vadd.f32 %v2049, %v2083
    %v2094 = vadd.f32 %v2050, %v2085
    %v2095 = vadd.f32 %v2051, %v2087
    %v2096 = vtanh.pop %v2092
    %v2097 = vtanh.pop %v2093
    %v2098 = vtanh.pop %v2094
    %v2099 = vtanh.pop %v2095
    %v2100 = vsub.f32 1.0, %v2041
    %v2101 = vsub.f32 1.0, %v2043
    %v2102 = vsub.f32 1.0, %v2045
    %v2103 = vsub.f32 1.0, %v2047
    %2108 = vrot.lane.b32.xlu0 %v2096, 96
    %v2109 = vpop.permute.xlu0 %2108
    %2110 = vrot.lane.b32.xlu0 %v2097, 96
    %v2111 = vpop.permute.xlu0 %2110
    %2112 = vrot.lane.b32.xlu0 %v2098, 96
    %v2113 = vpop.permute.xlu0 %2112
    %2114 = vrot.lane.b32.xlu0 %v2099, 96
    %v2115 = vpop.permute.xlu0 %2114
    %v2120 = vmul.f32 %v2100, %v2109
    %v2121 = vmul.f32 %v2101, %v2111
    %v2122 = vmul.f32 %v2102, %v2113
    %v2123 = vmul.f32 %v2103, %v2115
    %v2124 = vmul.f32 %v2041, %v1879
    %v2125 = vmul.f32 %v2043, %v1880
    %v2126 = vmul.f32 %v2045, %v1881
    %v2127 = vmul.f32 %v2047, %v1882
    %v2128 = vadd.f32 %v2120, %v2124
    %v2129 = vadd.f32 %v2121, %v2125
    %v2130 = vadd.f32 %v2122, %v2126
    %v2131 = vadd.f32 %v2123, %v2127
    %2136 = vrot.lane.b32.xlu0 %v2128, 96
    %v2137 = vpop.permute.xlu0 %2136
    %2138 = vrot.lane.b32.xlu0 %v2129, 96
    %v2139 = vpop.permute.xlu0 %2138
    %2140 = vrot.lane.b32.xlu0 %v2130, 96
    %v2141 = vpop.permute.xlu0 %2140
    %2142 = vrot.lane.b32.xlu0 %v2131, 96
    %v2143 = vpop.permute.xlu0 %2142
    %v2144 = vsel %vm176, %v2137, 0
    %v2146 = vsel %vm176, %v2139, 0
    %v2148 = vsel %vm176, %v2141, 0
    %v2150 = vsel %vm176, %v2143, 0
    %2152 = vmatprep.subr.mxu0 0.0
    %2153 = vmatpush1.msra.mxu0 0.0
    %2154 = vmatprep.subr.mxu0 0.0
    %2155 = vmatpush1.msra.mxu0 0.0
    %2156 = vmatprep.subr.mxu0 0.0
    %2157 = vmatpush1.msra.mxu0 0.0
    %2158 = vmatprep.subr.mxu0 0.0
    %2159 = vmatpush1.msra.mxu0 0.0
    %2160 = vmatprep.subr.mxu0 0.0
    %2161 = vmatpush1.msra.mxu0 0.0
    %2162 = vmatprep.subr.mxu0 0.0
    %2163 = vmatpush1.msra.mxu0 0.0
    %2164 = vmatprep.subr.mxu0 0.0
    %2165 = vmatpush1.msra.mxu0 0.0
    %2166 = vmatprep.subr.mxu0 0.0
    %2167 = vmatpush1.msra.mxu0 0.0
    %2168 = vmatprep.subr.mxu0 0.0
    %2169 = vmatpush1.msra.mxu0 0.0
    %2170 = vmatprep.subr.mxu0 0.0
    %2171 = vmatpush1.msra.mxu0 0.0
    %2172 = vmatprep.subr.mxu0 0.0
    %2173 = vmatpush1.msra.mxu0 0.0
    %2174 = vmatprep.subr.mxu0 0.0
    %2175 = vmatpush1.msra.mxu0 0.0
    %2176 = vmatprep.subr.mxu0 0.0
    %2177 = vmatpush1.msra.mxu0 %v1243
    %2178 = vmatprep.subr.mxu0 0.0
    %2179 = vmatpush1.msra.mxu0 %v1242
    %2180 = vmatprep.subr.mxu0 0.0
    %2181 = vmatpush1.msra.mxu0 %v1241
    %2182 = vmatprep.subr.mxu0 0.0
    %2183 = vmatpush1.msra.mxu0 %v1240
    %2184 = vmatprep.subr.mxu0 0.0
    %2185 = vmatpush2.msra.mxu0 0.0
    %2186 = vmatprep.subr.mxu0 0.0
    %2187 = vmatpush2.msra.mxu0 0.0
    %2188 = vmatprep.subr.mxu0 0.0
    %2189 = vmatpush2.msra.mxu0 0.0
    %2190 = vmatprep.subr.mxu0 0.0
    %2191 = vmatpush2.msra.mxu0 0.0
    %2192 = vmatprep.subr.mxu0 0.0
    %2193 = vmatpush2.msra.mxu0 0.0
    %2194 = vmatprep.subr.mxu0 0.0
    %2195 = vmatpush2.msra.mxu0 0.0
    %2196 = vmatprep.subr.mxu0 0.0
    %2197 = vmatpush2.msra.mxu0 0.0
    %2198 = vmatprep.subr.mxu0 0.0
    %2199 = vmatpush2.msra.mxu0 0.0
    %2200 = vmatprep.subr.mxu0 0.0
    %2201 = vmatpush2.msra.mxu0 0.0
    %2202 = vmatprep.subr.mxu0 0.0
    %2203 = vmatpush2.msra.mxu0 0.0
    %2204 = vmatprep.subr.mxu0 0.0
    %2205 = vmatpush2.msra.mxu0 0.0
    %2206 = vmatprep.subr.mxu0 0.0
    %2207 = vmatpush2.msra.mxu0 0.0
    %2208 = vmatprep.subr.mxu0 0.0
    %2209 = vmatpush2.msra.mxu0 0.0
    %2210 = vmatprep.subr.mxu0 0.0
    %2211 = vmatpush2.msra.mxu0 0.0
    %2212 = vmatprep.subr.mxu0 0.0
    %2213 = vmatpush2.msra.mxu0 0.0
    %2214 = vmatprep.subr.mxu0 0.0
    %2215 = vmatpush2.msra.mxu0 0.0
    %2216 = vmatprep.mubr.f32.mxu0 0.0
    %2217 = vmatmul.mubr.f32.gmra.mxu0 %v2144
    %v2218 = vpop.f32.mrf.mxu0
    %v2219 = vadd.f32 0.0, %v2218
    %v2220 = vpop.f32.mrf.mxu0
    %2221 = vmatprep.mubr.f32.mxu0 0.0
    %2222 = vmatmul.mubr.f32.gmra.mxu0 %v2146
    %v2223 = vpop.f32.mrf.mxu0
    %v2224 = vadd.f32 0.0, %v2223
    %v2225 = vpop.f32.mrf.mxu0
    %2226 = vmatprep.mubr.f32.mxu0 0.0
    %2227 = vmatmul.mubr.f32.gmra.mxu0 %v2148
    %v2228 = vpop.f32.mrf.mxu0
    %v2229 = vadd.f32 0.0, %v2228
    %v2230 = vpop.f32.mrf.mxu0
    %2231 = vmatprep.mubr.f32.mxu0 0.0
    %2232 = vmatmul.mubr.f32.gmra.mxu0 %v2150
    %v2233 = vpop.f32.mrf.mxu0
    %v2234 = vadd.f32 0.0, %v2233
    %v2235 = vpop.f32.mrf.mxu0
    %2236 = vdwg.mxu0
    %v2237 = vadd.f32 %v1129, %v2219
    %v2238 = vadd.f32 %v1135, %v2224
    %v2239 = vadd.f32 %v1141, %v2229
    %v2240 = vadd.f32 %v1147, %v2234
    %v2241 = vadd.f32 %v2237, %v1248
    %v2242 = vadd.f32 %v2238, %v1248
    %v2243 = vadd.f32 %v2239, %v1248
    %v2244 = vadd.f32 %v2240, %v1248
    %v2245 = vxor.u32 %v2241, 2147483648
    %v2246 = vxor.u32 %v2242, 2147483648
    %v2247 = vxor.u32 %v2243, 2147483648
    %v2248 = vxor.u32 %v2244, 2147483648
    %v2249 = vmul.f32 %v2245, 1.442695
    %v2250 = vpow.pop %v2249
    %v2251 = vmul.f32 %v2246, 1.442695
    %v2252 = vpow.pop %v2251
    %v2253 = vmul.f32 %v2247, 1.442695
    %v2254 = vpow.pop %v2253
    %v2255 = vmul.f32 %v2248, 1.442695
    %v2256 = vpow.pop %v2255
    %v2257 = vadd.f32 %v2250, 1.0
    %v2258 = vadd.f32 %v2252, 1.0
    %v2259 = vadd.f32 %v2254, 1.0
    %v2260 = vadd.f32 %v2256, 1.0
    %v2261 = vrcp.pop %v2257
    %v2262 = vmul.f32 1.0, %v2261
    %v2263 = vrcp.pop %v2258
    %v2264 = vmul.f32 1.0, %v2263
    %v2265 = vrcp.pop %v2259
    %v2266 = vmul.f32 1.0, %v2265
    %v2267 = vrcp.pop %v2260
    %v2268 = vmul.f32 1.0, %v2267
    %v2269 = vadd.f32 %v2237, %v1283
    %v2270 = vadd.f32 %v2238, %v1283
    %v2271 = vadd.f32 %v2239, %v1283
    %v2272 = vadd.f32 %v2240, %v1283
    %v2273 = vxor.u32 %v2269, 2147483648
    %v2274 = vxor.u32 %v2270, 2147483648
    %v2275 = vxor.u32 %v2271, 2147483648
    %v2276 = vxor.u32 %v2272, 2147483648
    %v2277 = vmul.f32 %v2273, 1.442695
    %v2278 = vpow.pop %v2277
    %v2279 = vmul.f32 %v2274, 1.442695
    %v2280 = vpow.pop %v2279
    %v2281 = vmul.f32 %v2275, 1.442695
    %v2282 = vpow.pop %v2281
    %v2283 = vmul.f32 %v2276, 1.442695
    %v2284 = vpow.pop %v2283
    %v2285 = vadd.f32 %v2278, 1.0
    %v2286 = vadd.f32 %v2280, 1.0
    %v2287 = vadd.f32 %v2282, 1.0
    %v2288 = vadd.f32 %v2284, 1.0
    %v2289 = vrcp.pop %v2285
    %v2290 = vmul.f32 1.0, %v2289
    %v2291 = vrcp.pop %v2286
    %v2292 = vmul.f32 1.0, %v2291
    %v2293 = vrcp.pop %v2287
    %v2294 = vmul.f32 1.0, %v2293
    %v2295 = vrcp.pop %v2288
    %v2296 = vmul.f32 1.0, %v2295
    %v2297 = vadd.f32 %v1129, %v1319
    %v2298 = vadd.f32 %v1135, %v1319
    %v2299 = vadd.f32 %v1141, %v1319
    %v2300 = vadd.f32 %v1147, %v1319
    %v2301 = vadd.f32 %v2219, %v1552
    %v2302 = vadd.f32 %v2224, %v1552
    %v2303 = vadd.f32 %v2229, %v1552
    %v2304 = vadd.f32 %v2234, %v1552
    %2309 = vrot.lane.b32.xlu0 %v2301, 64
    %v2310 = vpop.permute.xlu0 %2309
    %2311 = vrot.lane.b32.xlu0 %v2302, 64
    %v2312 = vpop.permute.xlu0 %2311
    %2313 = vrot.lane.b32.xlu0 %v2303, 64
    %v2314 = vpop.permute.xlu0 %2313
    %2315 = vrot.lane.b32.xlu0 %v2304, 64
    %v2316 = vpop.permute.xlu0 %2315
    %v2321 = vmul.f32 %v2262, %v2310
    %v2322 = vmul.f32 %v2264, %v2312
    %v2323 = vmul.f32 %v2266, %v2314
    %v2324 = vmul.f32 %v2268, %v2316
    %2329 = vrot.lane.b32.xlu0 %v2321, 64
    %v2330 = vpop.permute.xlu0 %2329
    %2331 = vrot.lane.b32.xlu0 %v2322, 64
    %v2332 = vpop.permute.xlu0 %2331
    %2333 = vrot.lane.b32.xlu0 %v2323, 64
    %v2334 = vpop.permute.xlu0 %2333
    %2335 = vrot.lane.b32.xlu0 %v2324, 64
    %v2336 = vpop.permute.xlu0 %2335
    %v2341 = vadd.f32 %v2297, %v2330
    %v2342 = vadd.f32 %v2298, %v2332
    %v2343 = vadd.f32 %v2299, %v2334
    %v2344 = vadd.f32 %v2300, %v2336
    %v2345 = vtanh.pop %v2341
    %v2346 = vtanh.pop %v2342
    %v2347 = vtanh.pop %v2343
    %v2348 = vtanh.pop %v2344
    %v2349 = vsub.f32 1.0, %v2290
    %v2350 = vsub.f32 1.0, %v2292
    %v2351 = vsub.f32 1.0, %v2294
    %v2352 = vsub.f32 1.0, %v2296
    %2357 = vrot.lane.b32.xlu0 %v2345, 96
    %v2358 = vpop.permute.xlu0 %2357
    %2359 = vrot.lane.b32.xlu0 %v2346, 96
    %v2360 = vpop.permute.xlu0 %2359
    %2361 = vrot.lane.b32.xlu0 %v2347, 96
    %v2362 = vpop.permute.xlu0 %2361
    %2363 = vrot.lane.b32.xlu0 %v2348, 96
    %v2364 = vpop.permute.xlu0 %2363
    %v2369 = vmul.f32 %v2349, %v2358
    %v2370 = vmul.f32 %v2350, %v2360
    %v2371 = vmul.f32 %v2351, %v2362
    %v2372 = vmul.f32 %v2352, %v2364
    %v2373 = vmul.f32 %v2290, %v2128
    %v2374 = vmul.f32 %v2292, %v2129
    %v2375 = vmul.f32 %v2294, %v2130
    %v2376 = vmul.f32 %v2296, %v2131
    %v2377 = vadd.f32 %v2369, %v2373
    %v2378 = vadd.f32 %v2370, %v2374
    %v2379 = vadd.f32 %v2371, %v2375
    %v2380 = vadd.f32 %v2372, %v2376
    %2385 = vrot.lane.b32.xlu0 %v2377, 96
    %v2386 = vpop.permute.xlu0 %2385
    %2387 = vrot.lane.b32.xlu0 %v2378, 96
    %v2388 = vpop.permute.xlu0 %2387
    %2389 = vrot.lane.b32.xlu0 %v2379, 96
    %v2390 = vpop.permute.xlu0 %2389
    %2391 = vrot.lane.b32.xlu0 %v2380, 96
    %v2392 = vpop.permute.xlu0 %2391
    %v2393 = vsel %vm176, %v2386, 0
    %v2395 = vsel %vm176, %v2388, 0
    %v2397 = vsel %vm176, %v2390, 0
    %v2399 = vsel %vm176, %v2392, 0
    %2401 = vmatprep.subr.mxu0 0.0
    %2402 = vmatpush1.msra.mxu0 0.0
    %2403 = vmatprep.subr.mxu0 0.0
    %2404 = vmatpush1.msra.mxu0 0.0
    %2405 = vmatprep.subr.mxu0 0.0
    %2406 = vmatpush1.msra.mxu0 0.0
    %2407 = vmatprep.subr.mxu0 0.0
    %2408 = vmatpush1.msra.mxu0 0.0
    %2409 = vmatprep.subr.mxu0 0.0
    %2410 = vmatpush1.msra.mxu0 0.0
    %2411 = vmatprep.subr.mxu0 0.0
    %2412 = vmatpush1.msra.mxu0 0.0
    %2413 = vmatprep.subr.mxu0 0.0
    %2414 = vmatpush1.msra.mxu0 0.0
    %2415 = vmatprep.subr.mxu0 0.0
    %2416 = vmatpush1.msra.mxu0 0.0
    %2417 = vmatprep.subr.mxu0 0.0
    %2418 = vmatpush1.msra.mxu0 0.0
    %2419 = vmatprep.subr.mxu0 0.0
    %2420 = vmatpush1.msra.mxu0 0.0
    %2421 = vmatprep.subr.mxu0 0.0
    %2422 = vmatpush1.msra.mxu0 0.0
    %2423 = vmatprep.subr.mxu0 0.0
    %2424 = vmatpush1.msra.mxu0 0.0
    %2425 = vmatprep.subr.mxu0 0.0
    %2426 = vmatpush1.msra.mxu0 %v1243
    %2427 = vmatprep.subr.mxu0 0.0
    %2428 = vmatpush1.msra.mxu0 %v1242
    %2429 = vmatprep.subr.mxu0 0.0
    %2430 = vmatpush1.msra.mxu0 %v1241
    %2431 = vmatprep.subr.mxu0 0.0
    %2432 = vmatpush1.msra.mxu0 %v1240
    %2433 = vmatprep.subr.mxu0 0.0
    %2434 = vmatpush2.msra.mxu0 0.0
    %2435 = vmatprep.subr.mxu0 0.0
    %2436 = vmatpush2.msra.mxu0 0.0
    %2437 = vmatprep.subr.mxu0 0.0
    %2438 = vmatpush2.msra.mxu0 0.0
    %2439 = vmatprep.subr.mxu0 0.0
    %2440 = vmatpush2.msra.mxu0 0.0
    %2441 = vmatprep.subr.mxu0 0.0
    %2442 = vmatpush2.msra.mxu0 0.0
    %2443 = vmatprep.subr.mxu0 0.0
    %2444 = vmatpush2.msra.mxu0 0.0
    %2445 = vmatprep.subr.mxu0 0.0
    %2446 = vmatpush2.msra.mxu0 0.0
    %2447 = vmatprep.subr.mxu0 0.0
    %2448 = vmatpush2.msra.mxu0 0.0
    %2449 = vmatprep.subr.mxu0 0.0
    %2450 = vmatpush2.msra.mxu0 0.0
    %2451 = vmatprep.subr.mxu0 0.0
    %2452 = vmatpush2.msra.mxu0 0.0
    %2453 = vmatprep.subr.mxu0 0.0
    %2454 = vmatpush2.msra.mxu0 0.0
    %2455 = vmatprep.subr.mxu0 0.0
    %2456 = vmatpush2.msra.mxu0 0.0
    %2457 = vmatprep.subr.mxu0 0.0
    %2458 = vmatpush2.msra.mxu0 0.0
    %2459 = vmatprep.subr.mxu0 0.0
    %2460 = vmatpush2.msra.mxu0 0.0
    %2461 = vmatprep.subr.mxu0 0.0
    %2462 = vmatpush2.msra.mxu0 0.0
    %2463 = vmatprep.subr.mxu0 0.0
    %2464 = vmatpush2.msra.mxu0 0.0
    %2465 = vmatprep.mubr.f32.mxu0 0.0
    %2466 = vmatmul.mubr.f32.gmra.mxu0 %v2393
    %v2467 = vpop.f32.mrf.mxu0
    %v2468 = vadd.f32 0.0, %v2467
    %v2469 = vpop.f32.mrf.mxu0
    %2470 = vmatprep.mubr.f32.mxu0 0.0
    %2471 = vmatmul.mubr.f32.gmra.mxu0 %v2395
    %v2472 = vpop.f32.mrf.mxu0
    %v2473 = vadd.f32 0.0, %v2472
    %v2474 = vpop.f32.mrf.mxu0
    %2475 = vmatprep.mubr.f32.mxu0 0.0
    %2476 = vmatmul.mubr.f32.gmra.mxu0 %v2397
    %v2477 = vpop.f32.mrf.mxu0
    %v2478 = vadd.f32 0.0, %v2477
    %v2479 = vpop.f32.mrf.mxu0
    %2480 = vmatprep.mubr.f32.mxu0 0.0
    %2481 = vmatmul.mubr.f32.gmra.mxu0 %v2399
    %v2482 = vpop.f32.mrf.mxu0
    %v2483 = vadd.f32 0.0, %v2482
    %v2484 = vpop.f32.mrf.mxu0
    %2485 = vdwg.mxu0
    %v2486 = vadd.f32 %v1131, %v2468
    %v2487 = vadd.f32 %v1137, %v2473
    %v2488 = vadd.f32 %v1143, %v2478
    %v2489 = vadd.f32 %v1149, %v2483
    %v2490 = vadd.f32 %v2486, %v1248
    %v2491 = vadd.f32 %v2487, %v1248
    %v2492 = vadd.f32 %v2488, %v1248
    %v2493 = vadd.f32 %v2489, %v1248
    %v2494 = vxor.u32 %v2490, 2147483648
    %v2495 = vxor.u32 %v2491, 2147483648
    %v2496 = vxor.u32 %v2492, 2147483648
    %v2497 = vxor.u32 %v2493, 2147483648
    %v2498 = vmul.f32 %v2494, 1.442695
    %v2499 = vpow.pop %v2498
    %v2500 = vmul.f32 %v2495, 1.442695
    %v2501 = vpow.pop %v2500
    %v2502 = vmul.f32 %v2496, 1.442695
    %v2503 = vpow.pop %v2502
    %v2504 = vmul.f32 %v2497, 1.442695
    %v2505 = vpow.pop %v2504
    %v2506 = vadd.f32 %v2499, 1.0
    %v2507 = vadd.f32 %v2501, 1.0
    %v2508 = vadd.f32 %v2503, 1.0
    %v2509 = vadd.f32 %v2505, 1.0
    %v2510 = vrcp.pop %v2506
    %v2511 = vmul.f32 1.0, %v2510
    %v2512 = vrcp.pop %v2507
    %v2513 = vmul.f32 1.0, %v2512
    %v2514 = vrcp.pop %v2508
    %v2515 = vmul.f32 1.0, %v2514
    %v2516 = vrcp.pop %v2509
    %v2517 = vmul.f32 1.0, %v2516
    %v2518 = vadd.f32 %v2486, %v1283
    %v2519 = vadd.f32 %v2487, %v1283
    %v2520 = vadd.f32 %v2488, %v1283
    %v2521 = vadd.f32 %v2489, %v1283
    %v2522 = vxor.u32 %v2518, 2147483648
    %v2523 = vxor.u32 %v2519, 2147483648
    %v2524 = vxor.u32 %v2520, 2147483648
    %v2525 = vxor.u32 %v2521, 2147483648
    %v2526 = vmul.f32 %v2522, 1.442695
    %v2527 = vpow.pop %v2526
    %v2528 = vmul.f32 %v2523, 1.442695
    %v2529 = vpow.pop %v2528
    %v2530 = vmul.f32 %v2524, 1.442695
    %v2531 = vpow.pop %v2530
    %v2532 = vmul.f32 %v2525, 1.442695
    %v2533 = vpow.pop %v2532
    %v2534 = vadd.f32 %v2527, 1.0
    %v2535 = vadd.f32 %v2529, 1.0
    %v2536 = vadd.f32 %v2531, 1.0
    %v2537 = vadd.f32 %v2533, 1.0
    %v2538 = vrcp.pop %v2534
    %v2539 = vmul.f32 1.0, %v2538
    %v2540 = vrcp.pop %v2535
    %v2541 = vmul.f32 1.0, %v2540
    %v2542 = vrcp.pop %v2536
    %v2543 = vmul.f32 1.0, %v2542
    %v2544 = vrcp.pop %v2537
    %v2545 = vmul.f32 1.0, %v2544
    %v2546 = vadd.f32 %v1131, %v1319
    %v2547 = vadd.f32 %v1137, %v1319
    %v2548 = vadd.f32 %v1143, %v1319
    %v2549 = vadd.f32 %v1149, %v1319
    %v2550 = vadd.f32 %v2468, %v1552
    %v2551 = vadd.f32 %v2473, %v1552
    %v2552 = vadd.f32 %v2478, %v1552
    %v2553 = vadd.f32 %v2483, %v1552
    %2558 = vrot.lane.b32.xlu0 %v2550, 64
    %v2559 = vpop.permute.xlu0 %2558
    %2560 = vrot.lane.b32.xlu0 %v2551, 64
    %v2561 = vpop.permute.xlu0 %2560
    %2562 = vrot.lane.b32.xlu0 %v2552, 64
    %v2563 = vpop.permute.xlu0 %2562
    %2564 = vrot.lane.b32.xlu0 %v2553, 64
    %v2565 = vpop.permute.xlu0 %2564
    %v2570 = vmul.f32 %v2511, %v2559
    %v2571 = vmul.f32 %v2513, %v2561
    %v2572 = vmul.f32 %v2515, %v2563
    %v2573 = vmul.f32 %v2517, %v2565
    %2578 = vrot.lane.b32.xlu0 %v2570, 64
    %v2579 = vpop.permute.xlu0 %2578
    %2580 = vrot.lane.b32.xlu0 %v2571, 64
    %v2581 = vpop.permute.xlu0 %2580
    %2582 = vrot.lane.b32.xlu0 %v2572, 64
    %v2583 = vpop.permute.xlu0 %2582
    %2584 = vrot.lane.b32.xlu0 %v2573, 64
    %v2585 = vpop.permute.xlu0 %2584
    %v2590 = vadd.f32 %v2546, %v2579
    %v2591 = vadd.f32 %v2547, %v2581
    %v2592 = vadd.f32 %v2548, %v2583
    %v2593 = vadd.f32 %v2549, %v2585
    %v2594 = vtanh.pop %v2590
    %v2595 = vtanh.pop %v2591
    %v2596 = vtanh.pop %v2592
    %v2597 = vtanh.pop %v2593
    %v2598 = vsub.f32 1.0, %v2539
    %v2599 = vsub.f32 1.0, %v2541
    %v2600 = vsub.f32 1.0, %v2543
    %v2601 = vsub.f32 1.0, %v2545
    %2606 = vrot.lane.b32.xlu0 %v2594, 96
    %v2607 = vpop.permute.xlu0 %2606
    %2608 = vrot.lane.b32.xlu0 %v2595, 96
    %v2609 = vpop.permute.xlu0 %2608
    %2610 = vrot.lane.b32.xlu0 %v2596, 96
    %v2611 = vpop.permute.xlu0 %2610
    %2612 = vrot.lane.b32.xlu0 %v2597, 96
    %v2613 = vpop.permute.xlu0 %2612
    %v2618 = vmul.f32 %v2598, %v2607
    %v2619 = vmul.f32 %v2599, %v2609
    %v2620 = vmul.f32 %v2600, %v2611
    %v2621 = vmul.f32 %v2601, %v2613
    %v2622 = vmul.f32 %v2539, %v2377
    %v2623 = vmul.f32 %v2541, %v2378
    %v2624 = vmul.f32 %v2543, %v2379
    %v2625 = vmul.f32 %v2545, %v2380
    %v2626 = vadd.f32 %v2618, %v2622
    %v2627 = vadd.f32 %v2619, %v2623
    %v2628 = vadd.f32 %v2620, %v2624
    %v2629 = vadd.f32 %v2621, %v2625
    %2634 = vrot.lane.b32.xlu0 %v2626, 96
    %v2635 = vpop.permute.xlu0 %2634
    %2636 = vrot.lane.b32.xlu0 %v2627, 96
    %v2637 = vpop.permute.xlu0 %2636
    %2638 = vrot.lane.b32.xlu0 %v2628, 96
    %v2639 = vpop.permute.xlu0 %2638
    %2640 = vrot.lane.b32.xlu0 %v2629, 96
    %v2641 = vpop.permute.xlu0 %2640
    %v2642 = vsel %vm176, %v2635, 0
    %v2644 = vsel %vm176, %v2637, 0
    %v2646 = vsel %vm176, %v2639, 0
    %v2648 = vsel %vm176, %v2641, 0
    %2650 = vmatprep.subr.mxu0 0.0
    %2651 = vmatpush1.msra.mxu0 0.0
    %2652 = vmatprep.subr.mxu0 0.0
    %2653 = vmatpush1.msra.mxu0 0.0
    %2654 = vmatprep.subr.mxu0 0.0
    %2655 = vmatpush1.msra.mxu0 0.0
    %2656 = vmatprep.subr.mxu0 0.0
    %2657 = vmatpush1.msra.mxu0 0.0
    %2658 = vmatprep.subr.mxu0 0.0
    %2659 = vmatpush1.msra.mxu0 0.0
    %2660 = vmatprep.subr.mxu0 0.0
    %2661 = vmatpush1.msra.mxu0 0.0
    %2662 = vmatprep.subr.mxu0 0.0
    %2663 = vmatpush1.msra.mxu0 0.0
    %2664 = vmatprep.subr.mxu0 0.0
    %2665 = vmatpush1.msra.mxu0 0.0
    %2666 = vmatprep.subr.mxu0 0.0
    %2667 = vmatpush1.msra.mxu0 0.0
    %2668 = vmatprep.subr.mxu0 0.0
    %2669 = vmatpush1.msra.mxu0 0.0
    %2670 = vmatprep.subr.mxu0 0.0
    %2671 = vmatpush1.msra.mxu0 0.0
    %2672 = vmatprep.subr.mxu0 0.0
    %2673 = vmatpush1.msra.mxu0 0.0
    %2674 = vmatprep.subr.mxu0 0.0
    %2675 = vmatpush1.msra.mxu0 %v1243
    %2676 = vmatprep.subr.mxu0 0.0
    %2677 = vmatpush1.msra.mxu0 %v1242
    %2678 = vmatprep.subr.mxu0 0.0
    %2679 = vmatpush1.msra.mxu0 %v1241
    %2680 = vmatprep.subr.mxu0 0.0
    %2681 = vmatpush1.msra.mxu0 %v1240
    %2682 = vmatprep.subr.mxu0 0.0
    %2683 = vmatpush2.msra.mxu0 0.0
    %2684 = vmatprep.subr.mxu0 0.0
    %2685 = vmatpush2.msra.mxu0 0.0
    %2686 = vmatprep.subr.mxu0 0.0
    %2687 = vmatpush2.msra.mxu0 0.0
    %2688 = vmatprep.subr.mxu0 0.0
    %2689 = vmatpush2.msra.mxu0 0.0
    %2690 = vmatprep.subr.mxu0 0.0
    %2691 = vmatpush2.msra.mxu0 0.0
    %2692 = vmatprep.subr.mxu0 0.0
    %2693 = vmatpush2.msra.mxu0 0.0
    %2694 = vmatprep.subr.mxu0 0.0
    %2695 = vmatpush2.msra.mxu0 0.0
    %2696 = vmatprep.subr.mxu0 0.0
    %2697 = vmatpush2.msra.mxu0 0.0
    %2698 = vmatprep.subr.mxu0 0.0
    %2699 = vmatpush2.msra.mxu0 0.0
    %2700 = vmatprep.subr.mxu0 0.0
    %2701 = vmatpush2.msra.mxu0 0.0
    %2702 = vmatprep.subr.mxu0 0.0
    %2703 = vmatpush2.msra.mxu0 0.0
    %2704 = vmatprep.subr.mxu0 0.0
    %2705 = vmatpush2.msra.mxu0 0.0
    %2706 = vmatprep.subr.mxu0 0.0
    %2707 = vmatpush2.msra.mxu0 0.0
    %2708 = vmatprep.subr.mxu0 0.0
    %2709 = vmatpush2.msra.mxu0 0.0
    %2710 = vmatprep.subr.mxu0 0.0
    %2711 = vmatpush2.msra.mxu0 0.0
    %2712 = vmatprep.subr.mxu0 0.0
    %2713 = vmatpush2.msra.mxu0 0.0
    %2714 = vmatprep.mubr.f32.mxu0 0.0
    %2715 = vmatmul.mubr.f32.gmra.mxu0 %v2642
    %v2716 = vpop.f32.mrf.mxu0
    %v2717 = vadd.f32 0.0, %v2716
    %v2718 = vpop.f32.mrf.mxu0
    %2719 = vmatprep.mubr.f32.mxu0 0.0
    %2720 = vmatmul.mubr.f32.gmra.mxu0 %v2644
    %v2721 = vpop.f32.mrf.mxu0
    %v2722 = vadd.f32 0.0, %v2721
    %v2723 = vpop.f32.mrf.mxu0
    %2724 = vmatprep.mubr.f32.mxu0 0.0
    %2725 = vmatmul.mubr.f32.gmra.mxu0 %v2646
    %v2726 = vpop.f32.mrf.mxu0
    %v2727 = vadd.f32 0.0, %v2726
    %v2728 = vpop.f32.mrf.mxu0
    %2729 = vmatprep.mubr.f32.mxu0 0.0
    %2730 = vmatmul.mubr.f32.gmra.mxu0 %v2648
    %v2731 = vpop.f32.mrf.mxu0
    %v2732 = vadd.f32 0.0, %v2731
    %v2733 = vpop.f32.mrf.mxu0
    %2734 = vdwg.mxu0
    %v2735 = vadd.f32 %v1218, %v2717
    %v2736 = vadd.f32 %v1224, %v2722
    %v2737 = vadd.f32 %v1230, %v2727
    %v2738 = vadd.f32 %v1236, %v2732
    %v2739 = vadd.f32 %v2735, %v1248
    %v2740 = vadd.f32 %v2736, %v1248
    %v2741 = vadd.f32 %v2737, %v1248
    %v2742 = vadd.f32 %v2738, %v1248
    %v2743 = vxor.u32 %v2739, 2147483648
    %v2744 = vxor.u32 %v2740, 2147483648
    %v2745 = vxor.u32 %v2741, 2147483648
    %v2746 = vxor.u32 %v2742, 2147483648
    %v2747 = vmul.f32 %v2743, 1.442695
    %v2748 = vpow.pop %v2747
    %v2749 = vmul.f32 %v2744, 1.442695
    %v2750 = vpow.pop %v2749
    %v2751 = vmul.f32 %v2745, 1.442695
    %v2752 = vpow.pop %v2751
    %v2753 = vmul.f32 %v2746, 1.442695
    %v2754 = vpow.pop %v2753
    %v2755 = vadd.f32 %v2748, 1.0
    %v2756 = vadd.f32 %v2750, 1.0
    %v2757 = vadd.f32 %v2752, 1.0
    %v2758 = vadd.f32 %v2754, 1.0
    %v2759 = vrcp.pop %v2755
    %v2760 = vmul.f32 1.0, %v2759
    %v2761 = vrcp.pop %v2756
    %v2762 = vmul.f32 1.0, %v2761
    %v2763 = vrcp.pop %v2757
    %v2764 = vmul.f32 1.0, %v2763
    %v2765 = vrcp.pop %v2758
    %v2766 = vmul.f32 1.0, %v2765
    %v2767 = vadd.f32 %v2735, %v1283
    %v2768 = vadd.f32 %v2736, %v1283
    %v2769 = vadd.f32 %v2737, %v1283
    %v2770 = vadd.f32 %v2738, %v1283
    %v2771 = vxor.u32 %v2767, 2147483648
    %v2772 = vxor.u32 %v2768, 2147483648
    %v2773 = vxor.u32 %v2769, 2147483648
    %v2774 = vxor.u32 %v2770, 2147483648
    %v2775 = vmul.f32 %v2771, 1.442695
    %v2776 = vpow.pop %v2775
    %v2777 = vmul.f32 %v2772, 1.442695
    %v2778 = vpow.pop %v2777
    %v2779 = vmul.f32 %v2773, 1.442695
    %v2780 = vpow.pop %v2779
    %v2781 = vmul.f32 %v2774, 1.442695
    %v2782 = vpow.pop %v2781
    %v2783 = vadd.f32 %v2776, 1.0
    %v2784 = vadd.f32 %v2778, 1.0
    %v2785 = vadd.f32 %v2780, 1.0
    %v2786 = vadd.f32 %v2782, 1.0
    %v2787 = vrcp.pop %v2783
    %v2788 = vmul.f32 1.0, %v2787
    %v2789 = vrcp.pop %v2784
    %v2790 = vmul.f32 1.0, %v2789
    %v2791 = vrcp.pop %v2785
    %v2792 = vmul.f32 1.0, %v2791
    %v2793 = vrcp.pop %v2786
    %v2794 = vmul.f32 1.0, %v2793
    %v2795 = vadd.f32 %v1218, %v1319
    %v2796 = vadd.f32 %v1224, %v1319
    %v2797 = vadd.f32 %v1230, %v1319
    %v2798 = vadd.f32 %v1236, %v1319
    %v2799 = vadd.f32 %v2717, %v1552
    %v2800 = vadd.f32 %v2722, %v1552
    %v2801 = vadd.f32 %v2727, %v1552
    %v2802 = vadd.f32 %v2732, %v1552
    %2807 = vrot.lane.b32.xlu0 %v2799, 64
    %v2808 = vpop.permute.xlu0 %2807
    %2809 = vrot.lane.b32.xlu0 %v2800, 64
    %v2810 = vpop.permute.xlu0 %2809
    %2811 = vrot.lane.b32.xlu0 %v2801, 64
    %v2812 = vpop.permute.xlu0 %2811
    %2813 = vrot.lane.b32.xlu0 %v2802, 64
    %v2814 = vpop.permute.xlu0 %2813
    %v2819 = vmul.f32 %v2760, %v2808
    %v2820 = vmul.f32 %v2762, %v2810
    %v2821 = vmul.f32 %v2764, %v2812
    %v2822 = vmul.f32 %v2766, %v2814
    %2827 = vrot.lane.b32.xlu0 %v2819, 64
    %v2828 = vpop.permute.xlu0 %2827
    %2829 = vrot.lane.b32.xlu0 %v2820, 64
    %v2830 = vpop.permute.xlu0 %2829
    %2831 = vrot.lane.b32.xlu0 %v2821, 64
    %v2832 = vpop.permute.xlu0 %2831
    %2833 = vrot.lane.b32.xlu0 %v2822, 64
    %v2834 = vpop.permute.xlu0 %2833
    %v2839 = vadd.f32 %v2795, %v2828
    %v2840 = vadd.f32 %v2796, %v2830
    %v2841 = vadd.f32 %v2797, %v2832
    %v2842 = vadd.f32 %v2798, %v2834
    %v2843 = vtanh.pop %v2839
    %v2844 = vtanh.pop %v2840
    %v2845 = vtanh.pop %v2841
    %v2846 = vtanh.pop %v2842
    %v2847 = vsub.f32 1.0, %v2788
    %v2848 = vsub.f32 1.0, %v2790
    %v2849 = vsub.f32 1.0, %v2792
    %v2850 = vsub.f32 1.0, %v2794
    %2855 = vrot.lane.b32.xlu0 %v2843, 96
    %v2856 = vpop.permute.xlu0 %2855
    %2857 = vrot.lane.b32.xlu0 %v2844, 96
    %v2858 = vpop.permute.xlu0 %2857
    %2859 = vrot.lane.b32.xlu0 %v2845, 96
    %v2860 = vpop.permute.xlu0 %2859
    %2861 = vrot.lane.b32.xlu0 %v2846, 96
    %v2862 = vpop.permute.xlu0 %2861
    %v2867 = vmul.f32 %v2847, %v2856
    %v2868 = vmul.f32 %v2848, %v2858
    %v2869 = vmul.f32 %v2849, %v2860
    %v2870 = vmul.f32 %v2850, %v2862
    %v2871 = vmul.f32 %v2788, %v2626
    %v2872 = vmul.f32 %v2790, %v2627
    %v2873 = vmul.f32 %v2792, %v2628
    %v2874 = vmul.f32 %v2794, %v2629
    %v2875 = vadd.f32 %v2867, %v2871
    %v2876 = vadd.f32 %v2868, %v2872
    %v2877 = vadd.f32 %v2869, %v2873
    %v2878 = vadd.f32 %v2870, %v2874
    %2883 = vrot.lane.b32.xlu0 %v2875, 96
    %v2884 = vpop.permute.xlu0 %2883
    %2885 = vrot.lane.b32.xlu0 %v2876, 96
    %v2886 = vpop.permute.xlu0 %2885
    %2887 = vrot.lane.b32.xlu0 %v2877, 96
    %v2888 = vpop.permute.xlu0 %2887
    %2889 = vrot.lane.b32.xlu0 %v2878, 96
    %v2890 = vpop.permute.xlu0 %2889
    %v2891 = vsel %vm176, %v2884, 0
    %v2893 = vsel %vm176, %v2886, 0
    %v2895 = vsel %vm176, %v2888, 0
    %v2897 = vsel %vm176, %v2890, 0
    %2899 = vmatprep.subr.mxu0 0.0
    %2900 = vmatpush1.msra.mxu0 0.0
    %2901 = vmatprep.subr.mxu0 0.0
    %2902 = vmatpush1.msra.mxu0 0.0
    %2903 = vmatprep.subr.mxu0 0.0
    %2904 = vmatpush1.msra.mxu0 0.0
    %2905 = vmatprep.subr.mxu0 0.0
    %2906 = vmatpush1.msra.mxu0 0.0
    %2907 = vmatprep.subr.mxu0 0.0
    %2908 = vmatpush1.msra.mxu0 0.0
    %2909 = vmatprep.subr.mxu0 0.0
    %2910 = vmatpush1.msra.mxu0 0.0
    %2911 = vmatprep.subr.mxu0 0.0
    %2912 = vmatpush1.msra.mxu0 0.0
    %2913 = vmatprep.subr.mxu0 0.0
    %2914 = vmatpush1.msra.mxu0 0.0
    %2915 = vmatprep.subr.mxu0 0.0
    %2916 = vmatpush1.msra.mxu0 0.0
    %2917 = vmatprep.subr.mxu0 0.0
    %2918 = vmatpush1.msra.mxu0 0.0
    %2919 = vmatprep.subr.mxu0 0.0
    %2920 = vmatpush1.msra.mxu0 0.0
    %2921 = vmatprep.subr.mxu0 0.0
    %2922 = vmatpush1.msra.mxu0 0.0
    %2923 = vmatprep.subr.mxu0 0.0
    %2924 = vmatpush1.msra.mxu0 %v1243
    %2925 = vmatprep.subr.mxu0 0.0
    %2926 = vmatpush1.msra.mxu0 %v1242
    %2927 = vmatprep.subr.mxu0 0.0
    %2928 = vmatpush1.msra.mxu0 %v1241
    %2929 = vmatprep.subr.mxu0 0.0
    %2930 = vmatpush1.msra.mxu0 %v1240
    %2931 = vmatprep.subr.mxu0 0.0
    %2932 = vmatpush2.msra.mxu0 0.0
    %2933 = vmatprep.subr.mxu0 0.0
    %2934 = vmatpush2.msra.mxu0 0.0
    %2935 = vmatprep.subr.mxu0 0.0
    %2936 = vmatpush2.msra.mxu0 0.0
    %2937 = vmatprep.subr.mxu0 0.0
    %2938 = vmatpush2.msra.mxu0 0.0
    %2939 = vmatprep.subr.mxu0 0.0
    %2940 = vmatpush2.msra.mxu0 0.0
    %2941 = vmatprep.subr.mxu0 0.0
    %2942 = vmatpush2.msra.mxu0 0.0
    %2943 = vmatprep.subr.mxu0 0.0
    %2944 = vmatpush2.msra.mxu0 0.0
    %2945 = vmatprep.subr.mxu0 0.0
    %2946 = vmatpush2.msra.mxu0 0.0
    %2947 = vmatprep.subr.mxu0 0.0
    %2948 = vmatpush2.msra.mxu0 0.0
    %2949 = vmatprep.subr.mxu0 0.0
    %2950 = vmatpush2.msra.mxu0 0.0
    %2951 = vmatprep.subr.mxu0 0.0
    %2952 = vmatpush2.msra.mxu0 0.0
    %2953 = vmatprep.subr.mxu0 0.0
    %2954 = vmatpush2.msra.mxu0 0.0
    %2955 = vmatprep.subr.mxu0 0.0
    %2956 = vmatpush2.msra.mxu0 0.0
    %2957 = vmatprep.subr.mxu0 0.0
    %2958 = vmatpush2.msra.mxu0 0.0
    %2959 = vmatprep.subr.mxu0 0.0
    %2960 = vmatpush2.msra.mxu0 0.0
    %2961 = vmatprep.subr.mxu0 0.0
    %2962 = vmatpush2.msra.mxu0 0.0
    %2963 = vmatprep.mubr.f32.mxu0 0.0
    %2964 = vmatmul.mubr.f32.gmra.mxu0 %v2891
    %v2965 = vpop.f32.mrf.mxu0
    %v2966 = vadd.f32 0.0, %v2965
    %v2967 = vpop.f32.mrf.mxu0
    %2968 = vmatprep.mubr.f32.mxu0 0.0
    %2969 = vmatmul.mubr.f32.gmra.mxu0 %v2893
    %v2970 = vpop.f32.mrf.mxu0
    %v2971 = vadd.f32 0.0, %v2970
    %v2972 = vpop.f32.mrf.mxu0
    %2973 = vmatprep.mubr.f32.mxu0 0.0
    %2974 = vmatmul.mubr.f32.gmra.mxu0 %v2895
    %v2975 = vpop.f32.mrf.mxu0
    %v2976 = vadd.f32 0.0, %v2975
    %v2977 = vpop.f32.mrf.mxu0
    %2978 = vmatprep.mubr.f32.mxu0 0.0
    %2979 = vmatmul.mubr.f32.gmra.mxu0 %v2897
    %v2980 = vpop.f32.mrf.mxu0
    %v2981 = vadd.f32 0.0, %v2980
    %v2982 = vpop.f32.mrf.mxu0
    %2983 = vdwg.mxu0
    %v2984 = vadd.f32 %v1220, %v2966
    %v2985 = vadd.f32 %v1226, %v2971
    %v2986 = vadd.f32 %v1232, %v2976
    %v2987 = vadd.f32 %v1238, %v2981
    %v2988 = vadd.f32 %v2984, %v1248
    %v2989 = vadd.f32 %v2985, %v1248
    %v2990 = vadd.f32 %v2986, %v1248
    %v2991 = vadd.f32 %v2987, %v1248
    %v2992 = vxor.u32 %v2988, 2147483648
    %v2993 = vxor.u32 %v2989, 2147483648
    %v2994 = vxor.u32 %v2990, 2147483648
    %v2995 = vxor.u32 %v2991, 2147483648
    %v2996 = vmul.f32 %v2992, 1.442695
    %v2997 = vpow.pop %v2996
    %v2998 = vmul.f32 %v2993, 1.442695
    %v2999 = vpow.pop %v2998
    %v3000 = vmul.f32 %v2994, 1.442695
    %v3001 = vpow.pop %v3000
    %v3002 = vmul.f32 %v2995, 1.442695
    %v3003 = vpow.pop %v3002
    %v3004 = vadd.f32 %v2997, 1.0
    %v3005 = vadd.f32 %v2999, 1.0
    %v3006 = vadd.f32 %v3001, 1.0
    %v3007 = vadd.f32 %v3003, 1.0
    %v3008 = vrcp.pop %v3004
    %v3009 = vmul.f32 1.0, %v3008
    %v3010 = vrcp.pop %v3005
    %v3011 = vmul.f32 1.0, %v3010
    %v3012 = vrcp.pop %v3006
    %v3013 = vmul.f32 1.0, %v3012
    %v3014 = vrcp.pop %v3007
    %v3015 = vmul.f32 1.0, %v3014
    %v3016 = vadd.f32 %v2984, %v1283
    %v3017 = vadd.f32 %v2985, %v1283
    %v3018 = vadd.f32 %v2986, %v1283
    %v3019 = vadd.f32 %v2987, %v1283
    %v3020 = vxor.u32 %v3016, 2147483648
    %v3021 = vxor.u32 %v3017, 2147483648
    %v3022 = vxor.u32 %v3018, 2147483648
    %v3023 = vxor.u32 %v3019, 2147483648
    %v3024 = vmul.f32 %v3020, 1.442695
    %v3025 = vpow.pop %v3024
    %v3026 = vmul.f32 %v3021, 1.442695
    %v3027 = vpow.pop %v3026
    %v3028 = vmul.f32 %v3022, 1.442695
    %v3029 = vpow.pop %v3028
    %v3030 = vmul.f32 %v3023, 1.442695
    %v3031 = vpow.pop %v3030
    %v3032 = vadd.f32 %v3025, 1.0
    %v3033 = vadd.f32 %v3027, 1.0
    %v3034 = vadd.f32 %v3029, 1.0
    %v3035 = vadd.f32 %v3031, 1.0
    %v3036 = vrcp.pop %v3032
    %v3037 = vmul.f32 1.0, %v3036
    %v3038 = vrcp.pop %v3033
    %v3039 = vmul.f32 1.0, %v3038
    %v3040 = vrcp.pop %v3034
    %v3041 = vmul.f32 1.0, %v3040
    %v3042 = vrcp.pop %v3035
    %v3043 = vmul.f32 1.0, %v3042
    %v3044 = vadd.f32 %v1220, %v1319
    %v3045 = vadd.f32 %v1226, %v1319
    %v3046 = vadd.f32 %v1232, %v1319
    %v3047 = vadd.f32 %v1238, %v1319
    %v3048 = vadd.f32 %v2966, %v1552
    %v3049 = vadd.f32 %v2971, %v1552
    %v3050 = vadd.f32 %v2976, %v1552
    %v3051 = vadd.f32 %v2981, %v1552
    %3056 = vrot.lane.b32.xlu0 %v3048, 64
    %v3057 = vpop.permute.xlu0 %3056
    %3058 = vrot.lane.b32.xlu0 %v3049, 64
    %v3059 = vpop.permute.xlu0 %3058
    %3060 = vrot.lane.b32.xlu0 %v3050, 64
    %v3061 = vpop.permute.xlu0 %3060
    %3062 = vrot.lane.b32.xlu0 %v3051, 64
    %v3063 = vpop.permute.xlu0 %3062
    %v3068 = vmul.f32 %v3009, %v3057
    %v3069 = vmul.f32 %v3011, %v3059
    %v3070 = vmul.f32 %v3013, %v3061
    %v3071 = vmul.f32 %v3015, %v3063
    %3076 = vrot.lane.b32.xlu0 %v3068, 64
    %v3077 = vpop.permute.xlu0 %3076
    %3078 = vrot.lane.b32.xlu0 %v3069, 64
    %v3079 = vpop.permute.xlu0 %3078
    %3080 = vrot.lane.b32.xlu0 %v3070, 64
    %v3081 = vpop.permute.xlu0 %3080
    %3082 = vrot.lane.b32.xlu0 %v3071, 64
    %v3083 = vpop.permute.xlu0 %3082
    %v3088 = vadd.f32 %v3044, %v3077
    %v3089 = vadd.f32 %v3045, %v3079
    %v3090 = vadd.f32 %v3046, %v3081
    %v3091 = vadd.f32 %v3047, %v3083
    %v3092 = vtanh.pop %v3088
    %v3093 = vtanh.pop %v3089
    %v3094 = vtanh.pop %v3090
    %v3095 = vtanh.pop %v3091
    %v3096 = vsub.f32 1.0, %v3037
    %v3097 = vsub.f32 1.0, %v3039
    %v3098 = vsub.f32 1.0, %v3041
    %v3099 = vsub.f32 1.0, %v3043
    %3104 = vrot.lane.b32.xlu0 %v3092, 96
    %v3105 = vpop.permute.xlu0 %3104
    %3106 = vrot.lane.b32.xlu0 %v3093, 96
    %v3107 = vpop.permute.xlu0 %3106
    %3108 = vrot.lane.b32.xlu0 %v3094, 96
    %v3109 = vpop.permute.xlu0 %3108
    %3110 = vrot.lane.b32.xlu0 %v3095, 96
    %v3111 = vpop.permute.xlu0 %3110
    %v3116 = vmul.f32 %v3096, %v3105
    %v3117 = vmul.f32 %v3097, %v3107
    %v3118 = vmul.f32 %v3098, %v3109
    %v3119 = vmul.f32 %v3099, %v3111
    %v3120 = vmul.f32 %v3037, %v2875
    %v3121 = vmul.f32 %v3039, %v2876
    %v3122 = vmul.f32 %v3041, %v2877
    %v3123 = vmul.f32 %v3043, %v2878
    %v3124 = vadd.f32 %v3116, %v3120
    %v3125 = vadd.f32 %v3117, %v3121
    %v3126 = vadd.f32 %v3118, %v3122
    %v3127 = vadd.f32 %v3119, %v3123
    %v3128 = vld [vmem:[%s9] sm:$0xff]
    %v3129 = vld [vmem:[%s9 + $0x8] sm:$0xff]
    %v3130 = vld [vmem:[%s9 + $0x10] sm:$0xff]
    %v3131 = vld [vmem:[%s9 + $0x18] sm:$0xff]
    %v3132 = vld [vmem:[%s10] sm:$0x1]
    %v3134 = vlaneseq
    %v3135 = vshrl.u32 %v3134, 7
    %v3136 = vsub.s32 0, %v3135
    %v3137 = vrot.slane %v3132, %v3136
    %3143 = vrot.lane.b32.xlu0 %v3124, 96
    %v3144 = vpop.permute.xlu0 %3143
    %3145 = vrot.lane.b32.xlu0 %v3125, 96
    %v3146 = vpop.permute.xlu0 %3145
    %3147 = vrot.lane.b32.xlu0 %v3126, 96
    %v3148 = vpop.permute.xlu0 %3147
    %3149 = vrot.lane.b32.xlu0 %v3127, 96
    %v3150 = vpop.permute.xlu0 %3149
    %v3151 = vsel %vm176, %v3144, 0
    %v3153 = vsel %vm176, %v3146, 0
    %v3155 = vsel %vm176, %v3148, 0
    %v3157 = vsel %vm176, %v3150, 0
    %3159 = vmatprep.subr.mxu0 0.0
    %3160 = vmatpush1.msra.mxu0 0.0
    %3161 = vmatprep.subr.mxu0 0.0
    %3162 = vmatpush1.msra.mxu0 0.0
    %3163 = vmatprep.subr.mxu0 0.0
    %3164 = vmatpush1.msra.mxu0 0.0
    %3165 = vmatprep.subr.mxu0 0.0
    %3166 = vmatpush1.msra.mxu0 0.0
    %3167 = vmatprep.subr.mxu0 0.0
    %3168 = vmatpush1.msra.mxu0 0.0
    %3169 = vmatprep.subr.mxu0 0.0
    %3170 = vmatpush1.msra.mxu0 0.0
    %3171 = vmatprep.subr.mxu0 0.0
    %3172 = vmatpush1.msra.mxu0 0.0
    %3173 = vmatprep.subr.mxu0 0.0
    %3174 = vmatpush1.msra.mxu0 0.0
    %3175 = vmatprep.subr.mxu0 0.0
    %3176 = vmatpush1.msra.mxu0 0.0
    %3177 = vmatprep.subr.mxu0 0.0
    %3178 = vmatpush1.msra.mxu0 0.0
    %3179 = vmatprep.subr.mxu0 0.0
    %3180 = vmatpush1.msra.mxu0 0.0
    %3181 = vmatprep.subr.mxu0 0.0
    %3182 = vmatpush1.msra.mxu0 0.0
    %3183 = vmatprep.subr.mxu0 0.0
    %3184 = vmatpush1.msra.mxu0 %v3131
    %3185 = vmatprep.subr.mxu0 0.0
    %3186 = vmatpush1.msra.mxu0 %v3130
    %3187 = vmatprep.subr.mxu0 0.0
    %3188 = vmatpush1.msra.mxu0 %v3129
    %3189 = vmatprep.subr.mxu0 0.0
    %3190 = vmatpush1.msra.mxu0 %v3128
    %3191 = vmatprep.subr.mxu0 0.0
    %3192 = vmatpush2.msra.mxu0 0.0
    %3193 = vmatprep.subr.mxu0 0.0
    %3194 = vmatpush2.msra.mxu0 0.0
    %3195 = vmatprep.subr.mxu0 0.0
    %3196 = vmatpush2.msra.mxu0 0.0
    %3197 = vmatprep.subr.mxu0 0.0
    %3198 = vmatpush2.msra.mxu0 0.0
    %3199 = vmatprep.subr.mxu0 0.0
    %3200 = vmatpush2.msra.mxu0 0.0
    %3201 = vmatprep.subr.mxu0 0.0
    %3202 = vmatpush2.msra.mxu0 0.0
    %3203 = vmatprep.subr.mxu0 0.0
    %3204 = vmatpush2.msra.mxu0 0.0
    %3205 = vmatprep.subr.mxu0 0.0
    %3206 = vmatpush2.msra.mxu0 0.0
    %3207 = vmatprep.subr.mxu0 0.0
    %3208 = vmatpush2.msra.mxu0 0.0
    %3209 = vmatprep.subr.mxu0 0.0
    %3210 = vmatpush2.msra.mxu0 0.0
    %3211 = vmatprep.subr.mxu0 0.0
    %3212 = vmatpush2.msra.mxu0 0.0
    %3213 = vmatprep.subr.mxu0 0.0
    %3214 = vmatpush2.msra.mxu0 0.0
    %3215 = vmatprep.subr.mxu0 0.0
    %3216 = vmatpush2.msra.mxu0 0.0
    %3217 = vmatprep.subr.mxu0 0.0
    %3218 = vmatpush2.msra.mxu0 0.0
    %3219 = vmatprep.subr.mxu0 0.0
    %3220 = vmatpush2.msra.mxu0 0.0
    %3221 = vmatprep.subr.mxu0 0.0
    %3222 = vmatpush2.msra.mxu0 0.0
    %3223 = vmatprep.mubr.f32.mxu0 0.0
    %3224 = vmatmul.mubr.f32.gmra.mxu0 %v3151
    %v3225 = vpop.f32.mrf.mxu0
    %v3226 = vadd.f32 %v3137, %v3225
    %v3227 = vpop.f32.mrf.mxu0
    %3228 = vmatprep.mubr.f32.mxu0 0.0
    %3229 = vmatmul.mubr.f32.gmra.mxu0 %v3153
    %v3230 = vpop.f32.mrf.mxu0
    %v3231 = vadd.f32 %v3137, %v3230
    %v3232 = vpop.f32.mrf.mxu0
    %3233 = vmatprep.mubr.f32.mxu0 0.0
    %3234 = vmatmul.mubr.f32.gmra.mxu0 %v3155
    %v3235 = vpop.f32.mrf.mxu0
    %v3236 = vadd.f32 %v3137, %v3235
    %v3237 = vpop.f32.mrf.mxu0
    %3238 = vmatprep.mubr.f32.mxu0 0.0
    %3239 = vmatmul.mubr.f32.gmra.mxu0 %v3157
    %v3240 = vpop.f32.mrf.mxu0
    %v3241 = vadd.f32 %v3137, %v3240
    %v3242 = vpop.f32.mrf.mxu0
    %3243 = vdwg.mxu0
    %vm3244 = vcmask 31744
    %3245 = vst.msk [vmem:[%s11] sm:$0xff] %vm3244, %v3226
    %3246 = vst.msk [vmem:[%s11 + $0x8] sm:$0xff] %vm3244, %v3231
    %3247 = vst.msk [vmem:[%s11 + $0x10] sm:$0xff] %vm3244, %v3236
    %3248 = vst.msk [vmem:[%s11 + $0x18] sm:$0xff] %vm3244, %v3241
    // Predicated region
    $region50: #{tpu_custom_call.1} parent=1 // pred_check
      _
    $region51: #{tpu_custom_call.1} parent=1 // pred_check_branch
      %3250 = sbr.rel (0) target = $region53
    $region52: #{tpu_custom_call.1} parent=1 // pred_region
      _
    $region53: #{tpu_custom_call.1} parent=1 // pred_fallthru
      _
    // Predicated region
    $region54: #{tpu_custom_call.1} parent=1 // pred_check
      _
    $region55: #{tpu_custom_call.1} parent=1 // pred_check_branch
      %3252 = sbr.rel (0) target = $region57
    $region56: #{tpu_custom_call.1} parent=1 // pred_region
      _
    $region57: #{tpu_custom_call.1} parent=1 // pred_fallthru
      _
    %3253 = vsyncpa [#allocation3], 1

</llo_original>
